<compile_context>
chip_gen: v5e
topology: v5e:2x2
jax: 0.10.0
libtpu: 0.0.40
codegen_flags: <defaults>
</compile_context>

<pallas_src>
import jax
import jax.numpy as jnp
from jax.experimental import pallas as pl
from jax.experimental.pallas import tpu as pltpu


# --------------------------------------------------------------------------- #
# Kernel
# --------------------------------------------------------------------------- #
def rec_net_kernel(x_ref, xc_ref, wbig_ref, wsfc_ref, bsfc_ref, out_ref,
                   g_acc, gc_acc):
    """Grid = (batch_tiles, k_tiles).  One step = TB batch rows x TK reduction cols.

    x_ref, xc_ref : (TB, TK)   support / support_cons, NCHW flattened to C*HW
    wbig_ref      : (TK, C)    expanded channel-mix weight: (sigmoid(Wc).T + I)/HW
                               repeated over the HW positions of each channel
    wsfc_ref      : (C, NOUT)  SFC weight transposed, lane-padded to 128
    bsfc_ref      : (1, NOUT)  SFC bias, lane-padded
    out_ref       : (TB, NOUT) logits block (resident across the k axis)
    g_acc, gc_acc : (TB, C)    f32 VMEM accumulators (pooled conv+skip embeddings)
    """
    k = pl.program_id(1)

    @pl.when(k == 0)
    def _init():
        g_acc[...] = jnp.zeros_like(g_acc)
        gc_acc[...] = jnp.zeros_like(gc_acc)

    # Pool + 1x1 conv + skip, fused: g[b, o] = mean_hw(x)[b, :] @ (sigmoid(W).T + I).
    g_acc[...] += jnp.dot(x_ref[...], wbig_ref[...],
                          preferred_element_type=jnp.float32)
    gc_acc[...] += jnp.dot(xc_ref[...], wbig_ref[...],
                           preferred_element_type=jnp.float32)

    @pl.when(k == pl.num_programs(1) - 1)
    def _finalize():
        g = g_acc[...]
        gc = gc_acc[...]
        # L2 normalization:  v / (||v||_2 + 1e-6)   (exact divide: zero-padded
        # batch rows stay exactly 0 instead of NaN-ing under an approx recip).
        gn = g / (jnp.sqrt(jnp.sum(g * g, axis=-1, keepdims=True)) + 1e-6)
        gcn = gc / (jnp.sqrt(jnp.sum(gc * gc, axis=-1, keepdims=True)) + 1e-6)
        # is_query=False path; Dropout(0.5) is identity in eval mode.
        bdc = 0.5 * (gn + gcn)
        logits = jnp.dot(bdc, wsfc_ref[...],
                         preferred_element_type=jnp.float32) + bsfc_ref[...]
        out_ref[...] = logits.astype(out_ref.dtype)


# --------------------------------------------------------------------------- #
# Tiling helpers
# --------------------------------------------------------------------------- #
def _round_up(x, m):
    return ((x + m - 1) // m) * m


def _cdiv(a, b):
    return (a + b - 1) // b


def _vmem_capacity_bytes():
    try:
        return int(pltpu.get_tpu_info().vmem_capacity_bytes)
    except Exception:
        return 64 * 1024 * 1024   # conservative: v7x per-TC physical VMEM


def _choose_tiles(B, C, CHW, itemsize, block_budget_bytes):
    """Pick (tb, tk): batch tile and flattened-reduction tile.

    Per-step footprint model (double-buffered BlockSpec pipeline):
      inputs  : 2 arrays * 2 buffers * tb * tk * itemsize
      W_big   : 2 buffers * tk * C * 4   (counted even when resident: conservative)
      output  : 2 buffers * tb * 128 * 4
      scratch : 2 * tb * C * 4
    Prefer >= 2 batch grid steps when B >= 16 so the "parallel" batch axis can
    shard across v7x's two TensorCores; the extra ~0.35us/step is negligible on
    single-TC v5e/v6e.
    """
    Bp8 = _round_up(max(B, 1), 8)
    tb_pref = Bp8 if Bp8 < 16 else _round_up(_cdiv(Bp8, 2), 8)

    small = 2 * (C * 128 * 4) + 2 * (8 * 128 * 4)   # SFC weight + bias blocks
    n_k = 1
    while True:
        tk = _round_up(_cdiv(CHW, n_k), 128)
        fixed = 2 * tk * C * 4 + small
        per_tb = 2 * 2 * tk * itemsize + 2 * 128 * 4 + 2 * C * 4
        avail = block_budget_bytes - fixed
        if avail >= 8 * per_tb:
            tb = max(8, min(tb_pref, (avail // per_tb) // 8 * 8))
            return int(tb), int(tk)
        if tk <= 128:
            # Even the minimum legal tile exceeds the budget; take the smallest
            # tiles and rely on the raised vmem_limit_bytes headroom.
            return 8, 128
        n_k *= 2


# --------------------------------------------------------------------------- #
# Wrapper
# --------------------------------------------------------------------------- #
def rec_net_forward(x_nchw, xc_nchw, w_conv, w_sfc, b_sfc, *, tb=None, tk=None):
    B, C, H, W = x_nchw.shape
    HW = H * W
    CHW = C * HW
    n_cls = w_sfc.shape[0]
    NOUT = _round_up(n_cls, 128)          # lane-dense output / SFC columns
    itemsize = x_nchw.dtype.itemsize

    cap = _vmem_capacity_bytes()
    tb_auto, tk_auto = _choose_tiles(B, C, CHW, itemsize, int(0.45 * cap))
    if tb is None:
        tb = tb_auto
    if tk is None:
        tk = tk_auto
    tb = _round_up(int(tb), 8)
    tk = min(_round_up(int(tk), 128), _round_up(CHW, 128))
    n_k = _cdiv(CHW, tk)
    K_pad = n_k * tk

    # NCHW -> (B, C*HW): a free reshape of the contiguous layout, no transpose.
    x = x_nchw.reshape(B, CHW)
    xc = xc_nchw.reshape(B, CHW)

    Bp = _round_up(B, tb)
    if Bp != B or K_pad != CHW:
        # Zero padding is harmless: padded rows give 0/(0+1e-6)=0 and padded
        # reduction columns multiply zero weight rows.
        x = jnp.pad(x, ((0, Bp - B), (0, K_pad - CHW)))
        xc = jnp.pad(xc, ((0, Bp - B), (0, K_pad - CHW)))
    n_b = Bp // tb

    # ---- one-time weight prep (hoisted out of the kernel) ------------------
    #   conv_soft.weight = sigmoid(conv.weight); skip connection adds identity;
    #   AdaptiveAvgPool2d(1) folds into the weight as a 1/HW scale, expanded
    #   over the HW positions of every channel.
    ws = jax.nn.sigmoid(w_conv.reshape(C, C).astype(jnp.float32))       # (Cout, Cin)
    w_eff = ws.T + jnp.eye(C, dtype=jnp.float32)                        # (Cin, Cout)
    w_big = jnp.repeat(w_eff / HW, HW, axis=0)                          # (C*HW, Cout)
    if K_pad != CHW:
        w_big = jnp.pad(w_big, ((0, K_pad - CHW), (0, 0)))
    if x.dtype == jnp.bfloat16:
        w_big = w_big.astype(jnp.bfloat16)                              # f32 acc in-kernel

    wsfc = jnp.zeros((C, NOUT), jnp.float32).at[:, :n_cls].set(
        jnp.transpose(w_sfc).astype(jnp.float32))
    bsfc = jnp.zeros((1, NOUT), jnp.float32).at[:, :n_cls].set(
        b_sfc.astype(jnp.float32).reshape(1, n_cls))

    # Advisory cost estimate: this call is a pure HBM stream.
    wbig_reads = 1 if n_k == 1 else n_b
    cost = pl.CostEstimate(
        flops=int(2 * 2 * Bp * K_pad * C + 2 * Bp * C * NOUT),
        transcendentals=0,
        bytes_accessed=int(2 * Bp * K_pad * itemsize
                           + wbig_reads * K_pad * C * w_big.dtype.itemsize
                           + Bp * NOUT * 4 + C * NOUT * 4 + NOUT * 4),
    )

    out = pl.pallas_call(
        rec_net_kernel,
        out_shape=jax.ShapeDtypeStruct((Bp, NOUT), jnp.float32),
        grid_spec=pltpu.PrefetchScalarGridSpec(
            num_scalar_prefetch=0,
            grid=(n_b, n_k),
            in_specs=[
                pl.BlockSpec((tb, tk), lambda b, k: (b, k)),
                pl.BlockSpec((tb, tk), lambda b, k: (b, k)),
                pl.BlockSpec((tk, C), lambda b, k: (k, 0)),
                pl.BlockSpec((C, NOUT), lambda b, k: (0, 0)),
                pl.BlockSpec((1, NOUT), lambda b, k: (0, 0)),
            ],
            # Output block resident across the k (reduction) axis; per-batch-tile
            # block keeps the batch axis safely megacore-parallel.
            out_specs=pl.BlockSpec((tb, NOUT), lambda b, k: (b, 0)),
            scratch_shapes=[
                pltpu.VMEM((tb, C), jnp.float32),
                pltpu.VMEM((tb, C), jnp.float32),
            ],
        ),
        compiler_params=pltpu.CompilerParams(
            dimension_semantics=("parallel", "arbitrary"),
            vmem_limit_bytes=int(min(0.85 * cap, 96 * 1024 * 1024)),
        ),
        cost_estimate=cost,
    )(x, xc, w_big, wsfc, bsfc)

    return out[:B, :n_cls]


# --------------------------------------------------------------------------- #
# Pure-JAX reference (literal PyTorch forward, eval mode)
# --------------------------------------------------------------------------- #
def rec_net_reference(x_nchw, xc_nchw, w_conv, w_sfc, b_sfc):
    ws = jax.nn.sigmoid(w_conv.reshape(w_conv.shape[0], w_conv.shape[1]))  # (Cout, Cin)

    def branch(x):
        y = jnp.einsum('oc,bchw->bohw', ws, x) + x          # 1x1 conv + skip
        g = jnp.mean(y, axis=(2, 3))                        # global avg pool -> (B, C)
        n = jnp.sqrt(jnp.sum(g * g, axis=1, keepdims=True))
        return g / (n + 1e-6)

    bdc = 0.5 * (branch(x_nchw) + branch(xc_nchw))
    return bdc @ w_sfc.T + b_sfc[None, :]


# --------------------------------------------------------------------------- #
# Test
# --------------------------------------------------------------------------- #
if __name__ == "__main__":
    key = jax.random.PRNGKey(0)
    kx, kxc, kw, kwsfc, kbsfc = jax.random.split(key, 5)

    B, C, H, W = 16, 128, 8, 8          # reduce_dim=128 is fixed by the module
    n_cls = 5

    x = jax.random.normal(kx, (B, C, H, W), dtype=jnp.float32)
    xc = jax.random.normal(kxc, (B, C, H, W), dtype=jnp.float32)

    # Deterministic synthetic parameters (shapes match Conv2d(128,128,1) / Linear(128,5)).
    w_conv = 0.05 * jax.random.normal(kw, (C, C, 1, 1), dtype=jnp.float32)
    w_sfc = 0.05 * jax.random.normal(kwsfc, (n_cls, C), dtype=jnp.float32)
    b_sfc = 0.01 * jax.random.normal(kbsfc, (n_cls,), dtype=jnp.float32)

    ref = jax.block_until_ready(rec_net_reference(x, xc, w_conv, w_sfc, b_sfc))

    # 1) Auto-tiled path (n_k == 1, >= 2 batch grid steps).
    out = jax.block_until_ready(rec_net_forward(x, xc, w_conv, w_sfc, b_sfc))
    assert out.shape == (B, n_cls)
    assert jnp.allclose(out, ref, rtol=1e-4, atol=1e-4), (out, ref)

    # 2) Forced small tiles: exercises both the batch grid and the
    #    k-accumulation (large-HW fallback) path.  grid = (2, 4).
    out2 = jax.block_until_ready(
        rec_net_forward(x, xc, w_conv, w_sfc, b_sfc, tb=8, tk=2048))
    assert out2.shape == (B, n_cls)
    assert jnp.allclose(out2, ref, rtol=1e-4, atol=1e-4), (out2, ref)

    print("KERNEL_OK")
</pallas_src>

<mosaic_0001>
module attributes {stable_mosaic.version = 11 : i64} {
  func.func @rec_net_kernel(%arg0: i32, %arg1: i32, %arg2: memref<8x8192xf32, #tpu.memory_space<vmem>>, %arg3: memref<8x8192xf32, #tpu.memory_space<vmem>>, %arg4: memref<8192x128xf32, #tpu.memory_space<vmem>>, %arg5: memref<128x128xf32, #tpu.memory_space<vmem>>, %arg6: memref<1x128xf32, #tpu.memory_space<vmem>>, %arg7: memref<8x128xf32, #tpu.memory_space<vmem>>, %arg8: memref<8x128xf32, #tpu.memory_space<vmem>>, %arg9: memref<8x128xf32, #tpu.memory_space<vmem>>) attributes {dimension_semantics = [#tpu.dimension_semantics<parallel>, #tpu.dimension_semantics<arbitrary>], iteration_bounds = array<i64: 2, 1>, scalar_prefetch = 0 : i64, scratch_operands = 2 : i64, tpu.core_type = #tpu.core_type<tc>, window_params = [{transform_indices = @transform_0, window_bounds = array<i64: 8, 8192>}, {transform_indices = @transform_1, window_bounds = array<i64: 8, 8192>}, {transform_indices = @transform_2, window_bounds = array<i64: 8192, 128>}, {pipeline_mode = #tpu.pipeline_mode<synchronous>, transform_indices = @transform_3, window_bounds = array<i64: 128, 128>}, {pipeline_mode = #tpu.pipeline_mode<synchronous>, transform_indices = @transform_4, window_bounds = array<i64: 1, 128>}, {transform_indices = @transform_5, window_bounds = array<i64: 8, 128>}]} {
    %c0_i32 = arith.constant 0 : i32
    %0 = arith.cmpi eq, %arg1, %c0_i32 : i32
    %1 = arith.extui %0 : i1 to i32
    %c0_i32_0 = arith.constant 0 : i32
    %2 = arith.cmpi ne, %1, %c0_i32_0 : i32
    scf.if %2 {
      %cst_19 = arith.constant 0.000000e+00 : f32
      %18 = vector.broadcast %cst_19 : f32 to vector<8x128xf32>
      %c0_20 = arith.constant 0 : index
      %c0_21 = arith.constant 0 : index
      %19 = vector.load %arg8[%c0_20, %c0_21] : memref<8x128xf32, #tpu.memory_space<vmem>>, vector<8x128xf32>
      tpu.vector_store %arg8[%c0_20, %c0_21], %18 {strides = array<i32>} : memref<8x128xf32, #tpu.memory_space<vmem>>, vector<8x128xf32>,
      %cst_22 = arith.constant 0.000000e+00 : f32
      %20 = vector.broadcast %cst_22 : f32 to vector<8x128xf32>
      %c0_23 = arith.constant 0 : index
      %c0_24 = arith.constant 0 : index
      %21 = vector.load %arg9[%c0_23, %c0_24] : memref<8x128xf32, #tpu.memory_space<vmem>>, vector<8x128xf32>
      tpu.vector_store %arg9[%c0_23, %c0_24], %20 {strides = array<i32>} : memref<8x128xf32, #tpu.memory_space<vmem>>, vector<8x128xf32>,
    } else {
    }
    %c0 = arith.constant 0 : index
    %c0_1 = arith.constant 0 : index
    %3 = vector.load %arg8[%c0, %c0_1] : memref<8x128xf32, #tpu.memory_space<vmem>>, vector<8x128xf32>
    %c0_2 = arith.constant 0 : index
    %c0_3 = arith.constant 0 : index
    %4 = vector.load %arg2[%c0_2, %c0_3] : memref<8x8192xf32, #tpu.memory_space<vmem>>, vector<8x8192xf32>
    %c0_4 = arith.constant 0 : index
    %c0_5 = arith.constant 0 : index
    %5 = vector.load %arg4[%c0_4, %c0_5] : memref<8192x128xf32, #tpu.memory_space<vmem>>, vector<8192x128xf32>
    %cst = arith.constant dense<0.000000e+00> : vector<8x128xf32>
    %6 = tpu.matmul %4, %5, %cst {dimension_numbers = #tpu.dot_dimension_numbers<[1], [0], [0], [1], [0, 0, 1, 1], [], []>} : vector<8x8192xf32>, vector<8192x128xf32>, vector<8x128xf32> -> vector<8x128xf32>
    %7 = arith.addf %3, %6 : vector<8x128xf32>
    %c0_6 = arith.constant 0 : index
    %c0_7 = arith.constant 0 : index
    %8 = vector.load %arg8[%c0_6, %c0_7] : memref<8x128xf32, #tpu.memory_space<vmem>>, vector<8x128xf32>
    tpu.vector_store %arg8[%c0_6, %c0_7], %7 {strides = array<i32>} : memref<8x128xf32, #tpu.memory_space<vmem>>, vector<8x128xf32>,
    %c0_8 = arith.constant 0 : index
    %c0_9 = arith.constant 0 : index
    %9 = vector.load %arg9[%c0_8, %c0_9] : memref<8x128xf32, #tpu.memory_space<vmem>>, vector<8x128xf32>
    %c0_10 = arith.constant 0 : index
    %c0_11 = arith.constant 0 : index
    %10 = vector.load %arg3[%c0_10, %c0_11] : memref<8x8192xf32, #tpu.memory_space<vmem>>, vector<8x8192xf32>
    %c0_12 = arith.constant 0 : index
    %c0_13 = arith.constant 0 : index
    %11 = vector.load %arg4[%c0_12, %c0_13] : memref<8192x128xf32, #tpu.memory_space<vmem>>, vector<8192x128xf32>
    %cst_14 = arith.constant dense<0.000000e+00> : vector<8x128xf32>
    %12 = tpu.matmul %10, %11, %cst_14 {dimension_numbers = #tpu.dot_dimension_numbers<[1], [0], [0], [1], [0, 0, 1, 1], [], []>} : vector<8x8192xf32>, vector<8192x128xf32>, vector<8x128xf32> -> vector<8x128xf32>
    %13 = arith.addf %9, %12 : vector<8x128xf32>
    %c0_15 = arith.constant 0 : index
    %c0_16 = arith.constant 0 : index
    %14 = vector.load %arg9[%c0_15, %c0_16] : memref<8x128xf32, #tpu.memory_space<vmem>>, vector<8x128xf32>
    tpu.vector_store %arg9[%c0_15, %c0_16], %13 {strides = array<i32>} : memref<8x128xf32, #tpu.memory_space<vmem>>, vector<8x128xf32>,
    %c0_i32_17 = arith.constant 0 : i32
    %15 = arith.cmpi eq, %arg1, %c0_i32_17 : i32
    %16 = arith.extui %15 : i1 to i32
    %c0_i32_18 = arith.constant 0 : i32
    %17 = arith.cmpi ne, %16, %c0_i32_18 : i32
    scf.if %17 {
      %c0_19 = arith.constant 0 : index
      %c0_20 = arith.constant 0 : index
      %18 = vector.load %arg8[%c0_19, %c0_20] : memref<8x128xf32, #tpu.memory_space<vmem>>, vector<8x128xf32>
      %c0_21 = arith.constant 0 : index
      %c0_22 = arith.constant 0 : index
      %19 = vector.load %arg9[%c0_21, %c0_22] : memref<8x128xf32, #tpu.memory_space<vmem>>, vector<8x128xf32>
      %20 = arith.mulf %18, %18 : vector<8x128xf32>
      %cst_23 = arith.constant dense<0.000000e+00> : vector<8xf32>
      %21 = vector.multi_reduction <add>, %20, %cst_23 [1] : vector<8x128xf32> to vector<8xf32>
      %22 = vector.shape_cast %21 : vector<8xf32> to vector<8x1xf32>
      %23 = math.sqrt %22 : vector<8x1xf32>
      %cst_24 = arith.constant 9.99999997E-7 : f32
      %24 = vector.broadcast %cst_24 : f32 to vector<8x1xf32>
      %25 = arith.addf %23, %24 : vector<8x1xf32>
      %26 = vector.broadcast %25 : vector<8x1xf32> to vector<8x128xf32>
      %27 = arith.divf %18, %26 : vector<8x128xf32>
      %28 = arith.mulf %19, %19 : vector<8x128xf32>
      %cst_25 = arith.constant dense<0.000000e+00> : vector<8xf32>
      %29 = vector.multi_reduction <add>, %28, %cst_25 [1] : vector<8x128xf32> to vector<8xf32>
      %30 = vector.shape_cast %29 : vector<8xf32> to vector<8x1xf32>
      %31 = math.sqrt %30 : vector<8x1xf32>
      %cst_26 = arith.constant 9.99999997E-7 : f32
      %32 = vector.broadcast %cst_26 : f32 to vector<8x1xf32>
      %33 = arith.addf %31, %32 : vector<8x1xf32>
      %34 = vector.broadcast %33 : vector<8x1xf32> to vector<8x128xf32>
      %35 = arith.divf %19, %34 : vector<8x128xf32>
      %36 = arith.addf %27, %35 : vector<8x128xf32>
      %cst_27 = arith.constant 5.000000e-01 : f32
      %37 = vector.broadcast %cst_27 : f32 to vector<8x128xf32>
      %38 = arith.mulf %37, %36 : vector<8x128xf32>
      %c0_28 = arith.constant 0 : index
      %c0_29 = arith.constant 0 : index
      %39 = vector.load %arg5[%c0_28, %c0_29] : memref<128x128xf32, #tpu.memory_space<vmem>>, vector<128x128xf32>
      %cst_30 = arith.constant dense<0.000000e+00> : vector<8x128xf32>
      %40 = tpu.matmul %38, %39, %cst_30 {dimension_numbers = #tpu.dot_dimension_numbers<[1], [0], [0], [1], [0, 0, 1, 1], [], []>} : vector<8x128xf32>, vector<128x128xf32>, vector<8x128xf32> -> vector<8x128xf32>
      %c0_31 = arith.constant 0 : index
      %c0_32 = arith.constant 0 : index
      %41 = vector.load %arg6[%c0_31, %c0_32] : memref<1x128xf32, #tpu.memory_space<vmem>>, vector<1x128xf32>
      %42 = vector.broadcast %41 : vector<1x128xf32> to vector<8x128xf32>
      %43 = arith.addf %40, %42 : vector<8x128xf32>
      %c0_33 = arith.constant 0 : index
      %c0_34 = arith.constant 0 : index
      %44 = vector.load %arg7[%c0_33, %c0_34] : memref<8x128xf32, #tpu.memory_space<vmem>>, vector<8x128xf32>
      tpu.vector_store %arg7[%c0_33, %c0_34], %43 {strides = array<i32>} : memref<8x128xf32, #tpu.memory_space<vmem>>, vector<8x128xf32>,
    } else {
    }
    return
  }
  func.func @transform_0(%arg0: i32, %arg1: i32) -> (i32, i32) {
    %c0_i32 = arith.constant 0 : i32
    return %arg0, %arg1 : i32, i32
  }
  func.func @transform_1(%arg0: i32, %arg1: i32) -> (i32, i32) {
    %c0_i32 = arith.constant 0 : i32
    return %arg0, %arg1 : i32, i32
  }
  func.func @transform_2(%arg0: i32, %arg1: i32) -> (i32, i32) {
    %c0_i32 = arith.constant 0 : i32
    %c0_i32_0 = arith.constant 0 : i32
    return %arg1, %c0_i32 : i32, i32
  }
  func.func @transform_3(%arg0: i32, %arg1: i32) -> (i32, i32) {
    %c0_i32 = arith.constant 0 : i32
    %c0_i32_0 = arith.constant 0 : i32
    %c0_i32_1 = arith.constant 0 : i32
    return %c0_i32, %c0_i32_0 : i32, i32
  }
  func.func @transform_4(%arg0: i32, %arg1: i32) -> (i32, i32) {
    %c0_i32 = arith.constant 0 : i32
    %c0_i32_0 = arith.constant 0 : i32
    %c0_i32_1 = arith.constant 0 : i32
    return %c0_i32, %c0_i32_0 : i32, i32
  }
  func.func @transform_5(%arg0: i32, %arg1: i32) -> (i32, i32) {
    %c0_i32 = arith.constant 0 : i32
    %c0_i32_0 = arith.constant 0 : i32
    return %arg0, %c0_i32 : i32, i32
  }
}

</mosaic_0001>

<llo_original>
// kernel: tpu_custom_call.1
$region0: #{tpu_custom_call.1}
  #allocation0 [shape = 'u32[]', space=smem, size = 0x4, offset = 0x4, fixed_abs, tag = 'smem constant byte address 0x4 - core index']
  #allocation1 [shape = 'u32[72,128]{1,0:T(1,128)}', space=vmem, size = 0x9000, scoped, tag = 'internal scratch']
  #allocation2 [shape = 'f32[8,128]{1,0:T(8,128)}', space=vmem, size = 0x1000, scoped, tag = 'scratch operand']
  #allocation3 [shape = 'f32[8,128]{1,0:T(8,128)}', space=vmem, size = 0x1000, scoped, tag = 'scratch operand']
  %s0 = inlined_call_operand.hbm [shape: f32[16,8192], index: 0, kind: input, shape index: {}]
  %s1 = inlined_call_operand.hbm [shape: f32[16,8192], index: 1, kind: input, shape index: {}]
  %s2 = inlined_call_operand.hbm [shape: f32[8192,128], index: 2, kind: input, shape index: {}]
  %s3 = inlined_call_operand.hbm [shape: f32[128,128], index: 3, kind: input, shape index: {}]
  %s4 = inlined_call_operand.hbm [shape: f32[1,128], index: 4, kind: input, shape index: {}]
  %s5 = inlined_call_operand.hbm [shape: f32[16,128], index: 5, kind: output, shape index: {}]
  %s6 = sld [smem:[#allocation0]]
  $region81: #{tpu_custom_call.1} parent=0
    _
  %s8 = ssub.s32 1, %s6
  %s9 = scalar_select 0, %s8, %s6
  $region1: #{tpu_custom_call.1} parent=0
    #allocation4 [shape = 'u8[524288]{0}', space=vmem, size = 0x80000, scoped, tag = 'input window, operand 0']
    #allocation5 [shape = 's32[2]{0}', space=sflag, size = 0x8, scoped, tag = 'scoped memory for tpu_custom_call.1']
    #allocation6 [shape = 's32[2]{0}', space=sflag, size = 0x8, scoped, tag = 'scoped memory for tpu_custom_call.1']
    #allocation7 [shape = 'u8[524288]{0}', space=vmem, size = 0x80000, scoped, tag = 'input window, operand 1']
    #allocation8 [shape = 's32[2]{0}', space=sflag, size = 0x8, scoped, tag = 'scoped memory for tpu_custom_call.1']
    #allocation9 [shape = 'u8[4194304]{0}', space=vmem, size = 0x400000, scoped, tag = 'input window, operand 2, single buffered']
    #allocation10 [shape = 'u8[65536]{0}', space=vmem, size = 0x10000, scoped, tag = 'input window, operand 3, single buffered']
    #allocation11 [shape = 's32[1]{0}', space=sflag, size = 0x4, scoped, tag = 'scoped memory for tpu_custom_call.1']
    #allocation12 [shape = 'u8[512]{0}', space=vmem, size = 0x400, scoped, tag = 'input window, operand 4, single buffered']
    #allocation13 [shape = 'u8[8192]{0}', space=vmem, size = 0x2000, scoped, tag = 'output window, operand 0']
    %10 = vsyncpa [#allocation5], 0
    %s11 = scalar_lea.sflag [#allocation5], 1
    %12 = vsyncpa %s11, 0
    %13 = vsyncpa [#allocation8], 0
    %s14 = scalar_lea.sflag [#allocation8], 1
    %15 = vsyncpa %s14, 0
    %16 = vsyncpa [#allocation11], 0
    %17 = vsyncpa [#allocation6], 0
    %s18 = scalar_lea.sflag [#allocation6], 1
    %19 = vsyncpa %s18, 0
    loop: start=0, step=1, limit=4
    $region2: #{tpu_custom_call.1} parent=1 // loop_pre_header
      _
    $region3: #{tpu_custom_call.1} parent=1 // loop_header
      %s21 = sphi 0, %s25
      %p22 = scmp.ge.s32.totalorder %s21, 4
      %s28 = sphi 0, %s40
      %s29 = sphi 0, %s36
      %s30 = sphi 0, %s28
      %s31 = sphi 0, %s29
      %s32 = sphi 0, %s30
      %s33 = sphi 0, %s31
      %s45 = sphi 0, %s47
      %s48 = sphi 0, %s45
      %s49 = sphi 0, %s48
      %s65 = sphi 0, %s49
      %s73 = sphi 0, %s75
      %s76 = sphi 0, %s73
      %s77 = sphi 0, %s76
      %s93 = sphi 0, %s77
      %s99 = sphi 0, %s101
      %s102 = sphi 0, %s99
      %s103 = sphi 0, %s102
      %s119 = sphi 0, %s103
      %s123 = sphi 0, %s123
      %s125 = sphi 0, %s123
      %s126 = sphi 0, %s125
      %s140 = sphi 0, %s126
      %s144 = sphi 0, %s144
      %s146 = sphi 0, %s144
      %s147 = sphi 0, %s146
      %s161 = sphi 0, %s147
      %s167 = sphi 0, %s169
      %s170 = sphi 0, %s167
      %s171 = sphi 0, %s170
      %s187 = sphi 0, %s171
    $region4: #{tpu_custom_call.1} parent=1 // loop_header_branch
      %24 = sbr.rel (%p22) target = $region8
    $region5: #{tpu_custom_call.1} parent=1 // loop_body
      %s26 = ssub.s32 %s21, 1
      %s27 = ssub.s32 %s21, 2
      %s34 = sadd.s32 1, %s29
      %p35 = scmp.ge.s32.totalorder %s34, 1
      %s36 = scalar_select %p35, 0, %s34
      %s37 = sadd.s32 1, %s28
      %s38 = scalar_select %p35, %s37, %s28
      %p39 = scmp.ge.s32.totalorder %s38, 2
      %s40 = scalar_select %p39, 0, %s38
      %s41 = ssub.s32 %s28, %s40
      %s42 = ssub.s32 %s29, %s36
      %s43 = sor.u32 %s41, %s42
      %p44 = scmp.eq.s32.totalorder %s43, 0
      %s46 = sadd.s32 %s45, 1
      %s47 = scalar_select %p44, %s45, %s46
      %p50 = pneg %p44
      %p51 = scmp.eq.s32.totalorder %s21, 1
      %p52 = por %p50, %p51
      %p53 = scmp.ne.s32.totalorder %s45, %s48
      %p54 = scmp.eq.s32.totalorder %s21, 0
      %p55 = por %p53, %p54
      %p56 = scmp.ne.s32.totalorder %s45, %s48
      %p57 = scmp.eq.s32.totalorder %s26, 1
      %p58 = por %p56, %p57
      %p59 = scmp.ne.s32.totalorder %s48, %s49
      %p60 = scmp.eq.s32.totalorder %s26, 0
      %p61 = por %p59, %p60
      %p62 = scmp.ne.s32.totalorder %s48, %s49
      %p63 = scmp.eq.s32.totalorder %s27, 1
      %p64 = por %p62, %p63
      %p66 = scmp.ne.s32.totalorder %s49, %s65
      %p67 = scmp.eq.s32.totalorder %s27, 0
      %p68 = por %p66, %p67
      %s69 = ssub.s32 %s28, %s40
      %s70 = ssub.s32 %s29, %s36
      %s71 = sor.u32 %s69, %s70
      %p72 = scmp.eq.s32.totalorder %s71, 0
      %s74 = sadd.s32 %s73, 1
      %s75 = scalar_select %p72, %s73, %s74
      %p78 = pneg %p72
      %p79 = scmp.eq.s32.totalorder %s21, 1
      %p80 = por %p78, %p79
      %p81 = scmp.ne.s32.totalorder %s73, %s76
      %p82 = scmp.eq.s32.totalorder %s21, 0
      %p83 = por %p81, %p82
      %p84 = scmp.ne.s32.totalorder %s73, %s76
      %p85 = scmp.eq.s32.totalorder %s26, 1
      %p86 = por %p84, %p85
      %p87 = scmp.ne.s32.totalorder %s76, %s77
      %p88 = scmp.eq.s32.totalorder %s26, 0
      %p89 = por %p87, %p88
      %p90 = scmp.ne.s32.totalorder %s76, %s77
      %p91 = scmp.eq.s32.totalorder %s27, 1
      %p92 = por %p90, %p91
      %p94 = scmp.ne.s32.totalorder %s77, %s93
      %p95 = scmp.eq.s32.totalorder %s27, 0
      %p96 = por %p94, %p95
      %s97 = ssub.s32 %s29, %s36
      %p98 = scmp.eq.s32.totalorder %s97, 0
      %s100 = sadd.s32 %s99, 1
      %s101 = scalar_select %p98, %s99, %s100
      %p104 = pneg %p98
      %p105 = scmp.eq.s32.totalorder %s21, 1
      %p106 = por %p104, %p105
      %p107 = scmp.ne.s32.totalorder %s99, %s102
      %p108 = scmp.eq.s32.totalorder %s21, 0
      %p109 = por %p107, %p108
      %p110 = scmp.ne.s32.totalorder %s99, %s102
      %p111 = scmp.eq.s32.totalorder %s26, 1
      %p112 = por %p110, %p111
      %p113 = scmp.ne.s32.totalorder %s102, %s103
      %p114 = scmp.eq.s32.totalorder %s26, 0
      %p115 = por %p113, %p114
      %p116 = scmp.ne.s32.totalorder %s102, %s103
      %p117 = scmp.eq.s32.totalorder %s27, 1
      %p118 = por %p116, %p117
      %p120 = scmp.ne.s32.totalorder %s103, %s119
      %p121 = scmp.eq.s32.totalorder %s27, 0
      %p122 = por %p120, %p121
      %s124 = sadd.s32 %s123, 1
      %p127 = scmp.eq.s32.totalorder %s21, 1
      %p128 = scmp.ne.s32.totalorder %s123, %s125
      %p129 = scmp.eq.s32.totalorder %s21, 0
      %p130 = por %p128, %p129
      %p131 = scmp.ne.s32.totalorder %s123, %s125
      %p132 = scmp.eq.s32.totalorder %s26, 1
      %p133 = por %p131, %p132
      %p134 = scmp.ne.s32.totalorder %s125, %s126
      %p135 = scmp.eq.s32.totalorder %s26, 0
      %p136 = por %p134, %p135
      %p137 = scmp.ne.s32.totalorder %s125, %s126
      %p138 = scmp.eq.s32.totalorder %s27, 1
      %p139 = por %p137, %p138
      %p141 = scmp.ne.s32.totalorder %s126, %s140
      %p142 = scmp.eq.s32.totalorder %s27, 0
      %p143 = por %p141, %p142
      %s145 = sadd.s32 %s144, 1
      %p148 = scmp.eq.s32.totalorder %s21, 1
      %p149 = scmp.ne.s32.totalorder %s144, %s146
      %p150 = scmp.eq.s32.totalorder %s21, 0
      %p151 = por %p149, %p150
      %p152 = scmp.ne.s32.totalorder %s144, %s146
      %p153 = scmp.eq.s32.totalorder %s26, 1
      %p154 = por %p152, %p153
      %p155 = scmp.ne.s32.totalorder %s146, %s147
      %p156 = scmp.eq.s32.totalorder %s26, 0
      %p157 = por %p155, %p156
      %p158 = scmp.ne.s32.totalorder %s146, %s147
      %p159 = scmp.eq.s32.totalorder %s27, 1
      %p160 = por %p158, %p159
      %p162 = scmp.ne.s32.totalorder %s147, %s161
      %p163 = scmp.eq.s32.totalorder %s27, 0
      %p164 = por %p162, %p163
      %s165 = ssub.s32 %s28, %s40
      %p166 = scmp.eq.s32.totalorder %s165, 0
      %s168 = sadd.s32 %s167, 1
      %s169 = scalar_select %p166, %s167, %s168
      %p172 = pneg %p166
      %p173 = scmp.eq.s32.totalorder %s21, 1
      %p174 = por %p172, %p173
      %p175 = scmp.ne.s32.totalorder %s167, %s170
      %p176 = scmp.eq.s32.totalorder %s21, 0
      %p177 = por %p175, %p176
      %p178 = scmp.ne.s32.totalorder %s167, %s170
      %p179 = scmp.eq.s32.totalorder %s26, 1
      %p180 = por %p178, %p179
      %p181 = scmp.ne.s32.totalorder %s170, %s171
      %p182 = scmp.eq.s32.totalorder %s26, 0
      %p183 = por %p181, %p182
      %p184 = scmp.ne.s32.totalorder %s170, %s171
      %p185 = scmp.eq.s32.totalorder %s27, 1
      %p186 = por %p184, %p185
      %p188 = scmp.ne.s32.totalorder %s171, %s187
      %p189 = scmp.eq.s32.totalorder %s27, 0
      %p190 = por %p188, %p189
      %p191 = scmp.le.s32.totalorder 1, %s21
      %p192 = scmp.lt.s32.totalorder %s21, 3
      %p193 = pnand %p191, %p192
      %p194 = pneg %p193
      // Predicated region
      $region9: #{tpu_custom_call.1} parent=5 // pred_check
        _
      $region10: #{tpu_custom_call.1} parent=5 // pred_check_branch
        %196 = sbr.rel (%p193) target = $region12
      $region11: #{tpu_custom_call.1} parent=5 // pred_region
        %s197 = ssub.s32 %s21, 1
        // Predicated region
        $region13: #{tpu_custom_call.1} parent=11 // pred_check
          %p198 = pneg %p115
        $region14: #{tpu_custom_call.1} parent=11 // pred_check_branch
          %200 = sbr.rel (%p198) target = $region16
        $region15: #{tpu_custom_call.1} parent=11 // pred_region
          %s201 = smul.u32 1024, %s31
          %203 = vsyncadd [#allocation8], 0
          %s204 = smul.addr %s201, 8
          %s205 = scalar_lea.hbm %s2, %s204
          %s206 = sshll.u32 %s205, 4
          %s207 = int_to_ptr.hbm [resolvable:$true] %s206
          %s208 = sshll.u32 [#allocation9], 4
          %s209 = int_to_ptr.vmem [resolvable:$true] %s208
          %214 = dma.hbm_to_vmem [thread:$0]  %s207, 131072, %s209, [#allocation8], 128, 128, 8
        $region16: #{tpu_custom_call.1} parent=11 // pred_fallthru
          _
        // Predicated region
        $region17: #{tpu_custom_call.1} parent=11 // pred_check
          %p215 = pneg %p136
        $region18: #{tpu_custom_call.1} parent=11 // pred_check_branch
          %217 = sbr.rel (%p215) target = $region20
        $region19: #{tpu_custom_call.1} parent=11 // pred_region
          %219 = vsyncadd [#allocation11], 0
          %s220 = sshll.u32 %s3, 4
          %s221 = int_to_ptr.hbm [resolvable:$true] %s220
          %s222 = sshll.u32 [#allocation10], 4
          %s223 = int_to_ptr.vmem [resolvable:$true] %s222
          %228 = dma.hbm_to_vmem [thread:$0]  %s221, 2048, %s223, [#allocation11], 128, 128, 8
        $region20: #{tpu_custom_call.1} parent=11 // pred_fallthru
          _
        // Predicated region
        $region21: #{tpu_custom_call.1} parent=11 // pred_check
          %p229 = pneg %p157
        $region22: #{tpu_custom_call.1} parent=11 // pred_check_branch
          %231 = sbr.rel (%p229) target = $region24
        $region23: #{tpu_custom_call.1} parent=11 // pred_region
          %233 = vsyncadd [#allocation11], 0
          %s235 = sshll.u32 %s4, 4
          %s236 = int_to_ptr.hbm [resolvable:$true] %s235
          %s237 = sshll.u32 [#allocation12], 4
          %s238 = int_to_ptr.vmem [resolvable:$true] %s237
          %240 = dma.hbm_to_vmem [thread:$0]  %s236, 16, %s238, [#allocation11]
        $region24: #{tpu_custom_call.1} parent=11 // pred_fallthru
          _
      $region12: #{tpu_custom_call.1} parent=5 // pred_fallthru
        _
      %p241 = scmp.lt.s32.totalorder %s21, 2
      // Predicated region
      $region25: #{tpu_custom_call.1} parent=5 // pred_check
        %p242 = pneg %p241
      $region26: #{tpu_custom_call.1} parent=5 // pred_check_branch
        %244 = sbr.rel (%p242) target = $region28
      $region27: #{tpu_custom_call.1} parent=5 // pred_region
        // Predicated region
        $region29: #{tpu_custom_call.1} parent=27 // pred_check
          %p245 = pneg %p55
        $region30: #{tpu_custom_call.1} parent=27 // pred_check_branch
          %247 = sbr.rel (%p245) target = $region32
        $region31: #{tpu_custom_call.1} parent=27 // pred_region
          %s248 = sand.u32 %s45, 1
          %s249 = scalar_lea.sflag [#allocation5], %s248
          %s250 = sand.u32 %s45, 1
          %s251 = smul.addr %s250, 512
          %s252 = scalar_lea.vmem [#allocation4], %s251
          %s253 = smul.u32 64, %s29
          %255 = vsyncadd %s249, 0
          %s256 = smul.addr %s28, 64
          %s257 = sadd.s32 %s253, %s256
          %s258 = smul.addr %s257, 8
          %s259 = scalar_lea.hbm %s0, %s258
          %s261 = sshll.u32 %s259, 4
          %s262 = int_to_ptr.hbm [resolvable:$true] %s261
          %s263 = sshll.u32 %s252, 4
          %s264 = int_to_ptr.vmem [resolvable:$true] %s263
          %266 = dma.hbm_to_vmem [thread:$0]  %s262, 8192, %s264, %s249
        $region32: #{tpu_custom_call.1} parent=27 // pred_fallthru
          _
        // Predicated region
        $region33: #{tpu_custom_call.1} parent=27 // pred_check
          %p267 = pneg %p83
        $region34: #{tpu_custom_call.1} parent=27 // pred_check_branch
          %269 = sbr.rel (%p267) target = $region36
        $region35: #{tpu_custom_call.1} parent=27 // pred_region
          %s270 = sand.u32 %s21, 1
          %s271 = scalar_lea.sflag [#allocation8], %s270
          %s272 = sand.u32 %s73, 1
          %s273 = smul.addr %s272, 512
          %s274 = scalar_lea.vmem [#allocation7], %s273
          %s275 = smul.u32 64, %s29
          %277 = vsyncadd %s271, 0
          %s278 = smul.addr %s28, 64
          %s279 = sadd.s32 %s275, %s278
          %s280 = smul.addr %s279, 8
          %s281 = scalar_lea.hbm %s1, %s280
          %s283 = sshll.u32 %s281, 4
          %s284 = int_to_ptr.hbm [resolvable:$true] %s283
          %s285 = sshll.u32 %s274, 4
          %s286 = int_to_ptr.vmem [resolvable:$true] %s285
          %288 = dma.hbm_to_vmem [thread:$0]  %s284, 8192, %s286, %s271
        $region36: #{tpu_custom_call.1} parent=27 // pred_fallthru
          _
      $region28: #{tpu_custom_call.1} parent=5 // pred_fallthru
        _
      %p289 = scmp.le.s32.totalorder 1, %s21
      %p290 = scmp.lt.s32.totalorder %s21, 3
      %p291 = pnand %p289, %p290
      %p292 = pneg %p291
      // Predicated region
      $region37: #{tpu_custom_call.1} parent=5 // pred_check
        _
      $region38: #{tpu_custom_call.1} parent=5 // pred_check_branch
        %294 = sbr.rel (%p291) target = $region40
      $region39: #{tpu_custom_call.1} parent=5 // pred_region
        %s295 = ssub.s32 %s21, 1
        %s296 = sand.u32 %s48, 1
        %s297 = scalar_lea.sflag [#allocation5], %s296
        %s298 = sand.u32 %s48, 1
        %s299 = smul.addr %s298, 512
        %s300 = scalar_lea.vmem [#allocation4], %s299
        // Predicated region
        $region41: #{tpu_custom_call.1} parent=39 // pred_check
          %p301 = pneg %p61
        $region42: #{tpu_custom_call.1} parent=39 // pred_check_branch
          %303 = sbr.rel (%p301) target = $region44
        $region43: #{tpu_custom_call.1} parent=39 // pred_region
          %305 = dma.done %s297, 8192
        $region44: #{tpu_custom_call.1} parent=39 // pred_fallthru
          _
        %s306 = sand.u32 %s26, 1
        %s307 = scalar_lea.sflag [#allocation8], %s306
        %s308 = sand.u32 %s76, 1
        %s309 = smul.addr %s308, 512
        %s310 = scalar_lea.vmem [#allocation7], %s309
        // Predicated region
        $region45: #{tpu_custom_call.1} parent=39 // pred_check
          %p311 = pneg %p89
        $region46: #{tpu_custom_call.1} parent=39 // pred_check_branch
          %313 = sbr.rel (%p311) target = $region48
        $region47: #{tpu_custom_call.1} parent=39 // pred_region
          %315 = dma.done %s307, 8192
        $region48: #{tpu_custom_call.1} parent=39 // pred_fallthru
          _
        // Predicated region
        $region49: #{tpu_custom_call.1} parent=39 // pred_check
          %p316 = pneg %p115
        $region50: #{tpu_custom_call.1} parent=39 // pred_check_branch
          %318 = sbr.rel (%p316) target = $region52
        $region51: #{tpu_custom_call.1} parent=39 // pred_region
          %320 = dma.done [#allocation8], 131072
        $region52: #{tpu_custom_call.1} parent=39 // pred_fallthru
          _
        // Predicated region
        $region53: #{tpu_custom_call.1} parent=39 // pred_check
          %p321 = pneg %p136
        $region54: #{tpu_custom_call.1} parent=39 // pred_check_branch
          %323 = sbr.rel (%p321) target = $region56
        $region55: #{tpu_custom_call.1} parent=39 // pred_region
          %325 = dma.done [#allocation11], 2048
        $region56: #{tpu_custom_call.1} parent=39 // pred_fallthru
          _
        // Predicated region
        $region57: #{tpu_custom_call.1} parent=39 // pred_check
          %p326 = pneg %p157
        $region58: #{tpu_custom_call.1} parent=39 // pred_check_branch
          %328 = sbr.rel (%p326) target = $region60
        $region59: #{tpu_custom_call.1} parent=39 // pred_region
          %330 = dma.done [#allocation11], 16
        $region60: #{tpu_custom_call.1} parent=39 // pred_fallthru
          _
        %s331 = sand.u32 %s48, 1
        %s332 = scalar_lea.sflag [#allocation5], %s331
        %s333 = sand.u32 %s48, 1
        %s334 = smul.addr %s333, 512
        %s335 = scalar_lea.vmem [#allocation4], %s334
        %p336 = pneg %p61
        %p337 = pneg %p58
        %s338 = sand.u32 %s26, 1
        %s339 = scalar_lea.sflag [#allocation8], %s338
        %s340 = sand.u32 %s76, 1
        %s341 = smul.addr %s340, 512
        %s342 = scalar_lea.vmem [#allocation7], %s341
        %p343 = pneg %p89
        %p344 = pneg %p86
        %p345 = pneg %p115
        %p346 = pneg %p112
        %p347 = pneg %p136
        %p348 = pneg %p133
        %p349 = pneg %p157
        %p350 = pneg %p154
        %p351 = pneg %p183
        %p352 = pneg %p180
        %s353 = sand.u32 %s170, 1
        %s354 = scalar_lea.sflag [#allocation6], %s353
        %s355 = sand.u32 %s170, 1
        %s356 = smul.addr %s355, 8
        %s357 = scalar_lea.vmem [#allocation13], %s356
        %s358 = smul.u32 64, %s31
        %s359 = smul.u32 64, %s31
        %s360 = smul.u32 1024, %s31
        %p361 = scmp.eq.s32.totalorder %s31, 0
        // Predicated region
        $region61: #{tpu_custom_call.1} parent=39 // pred_check
          %p362 = pneg %p361
        $region62: #{tpu_custom_call.1} parent=39 // pred_check_branch
          %364 = sbr.rel (%p362) target = $region64
        $region63: #{tpu_custom_call.1} parent=39 // pred_region
          %365 = vst [vmem:[#allocation2] sm:$0xff] 0.0
          %366 = vst [vmem:[#allocation3] sm:$0xff] 0.0
        $region64: #{tpu_custom_call.1} parent=39 // pred_fallthru
          _
        %v367 = vld [vmem:[#allocation2] sm:$0xff]
        %v368 = vld [vmem:[%s300] sm:$0xff]
        %v369 = vld [vmem:[%s300 + $0x8] sm:$0xff]
        %v370 = vld [vmem:[%s300 + $0x10] sm:$0xff]
        %v371 = vld [vmem:[%s300 + $0x18] sm:$0xff]
        %v372 = vld [vmem:[%s300 + $0x20] sm:$0xff]
        %v373 = vld [vmem:[%s300 + $0x28] sm:$0xff]
        %v374 = vld [vmem:[%s300 + $0x30] sm:$0xff]
        %v375 = vld [vmem:[%s300 + $0x38] sm:$0xff]
        %v376 = vld [vmem:[%s300 + $0x40] sm:$0xff]
        %v377 = vld [vmem:[%s300 + $0x48] sm:$0xff]
        %v378 = vld [vmem:[%s300 + $0x50] sm:$0xff]
        %v379 = vld [vmem:[%s300 + $0x58] sm:$0xff]
        %v380 = vld [vmem:[%s300 + $0x60] sm:$0xff]
        %v381 = vld [vmem:[%s300 + $0x68] sm:$0xff]
        %v382 = vld [vmem:[%s300 + $0x70] sm:$0xff]
        %v383 = vld [vmem:[%s300 + $0x78] sm:$0xff]
        %v384 = vld [vmem:[%s300 + $0x80] sm:$0xff]
        %v385 = vld [vmem:[%s300 + $0x88] sm:$0xff]
        %v386 = vld [vmem:[%s300 + $0x90] sm:$0xff]
        %v387 = vld [vmem:[%s300 + $0x98] sm:$0xff]
        %v388 = vld [vmem:[%s300 + $0xa0] sm:$0xff]
        %v389 = vld [vmem:[%s300 + $0xa8] sm:$0xff]
        %v390 = vld [vmem:[%s300 + $0xb0] sm:$0xff]
        %v391 = vld [vmem:[%s300 + $0xb8] sm:$0xff]
        %v392 = vld [vmem:[%s300 + $0xc0] sm:$0xff]
        %v393 = vld [vmem:[%s300 + $0xc8] sm:$0xff]
        %v394 = vld [vmem:[%s300 + $0xd0] sm:$0xff]
        %v395 = vld [vmem:[%s300 + $0xd8] sm:$0xff]
        %v396 = vld [vmem:[%s300 + $0xe0] sm:$0xff]
        %v397 = vld [vmem:[%s300 + $0xe8] sm:$0xff]
        %v398 = vld [vmem:[%s300 + $0xf0] sm:$0xff]
        %v399 = vld [vmem:[%s300 + $0xf8] sm:$0xff]
        %v400 = vld [vmem:[%s300 + $0x100] sm:$0xff]
        %v401 = vld [vmem:[%s300 + $0x108] sm:$0xff]
        %v402 = vld [vmem:[%s300 + $0x110] sm:$0xff]
        %v403 = vld [vmem:[%s300 + $0x118] sm:$0xff]
        %v404 = vld [vmem:[%s300 + $0x120] sm:$0xff]
        %v405 = vld [vmem:[%s300 + $0x128] sm:$0xff]
        %v406 = vld [vmem:[%s300 + $0x130] sm:$0xff]
        %v407 = vld [vmem:[%s300 + $0x138] sm:$0xff]
        %v408 = vld [vmem:[%s300 + $0x140] sm:$0xff]
        %v409 = vld [vmem:[%s300 + $0x148] sm:$0xff]
        %v410 = vld [vmem:[%s300 + $0x150] sm:$0xff]
        %v411 = vld [vmem:[%s300 + $0x158] sm:$0xff]
        %v412 = vld [vmem:[%s300 + $0x160] sm:$0xff]
        %v413 = vld [vmem:[%s300 + $0x168] sm:$0xff]
        %v414 = vld [vmem:[%s300 + $0x170] sm:$0xff]
        %v415 = vld [vmem:[%s300 + $0x178] sm:$0xff]
        %v416 = vld [vmem:[%s300 + $0x180] sm:$0xff]
        %v417 = vld [vmem:[%s300 + $0x188] sm:$0xff]
        %v418 = vld [vmem:[%s300 + $0x190] sm:$0xff]
        %v419 = vld [vmem:[%s300 + $0x198] sm:$0xff]
        %v420 = vld [vmem:[%s300 + $0x1a0] sm:$0xff]
        %v421 = vld [vmem:[%s300 + $0x1a8] sm:$0xff]
        %v422 = vld [vmem:[%s300 + $0x1b0] sm:$0xff]
        %v423 = vld [vmem:[%s300 + $0x1b8] sm:$0xff]
        %v424 = vld [vmem:[%s300 + $0x1c0] sm:$0xff]
        %v425 = vld [vmem:[%s300 + $0x1c8] sm:$0xff]
        %v426 = vld [vmem:[%s300 + $0x1d0] sm:$0xff]
        %v427 = vld [vmem:[%s300 + $0x1d8] sm:$0xff]
        %v428 = vld [vmem:[%s300 + $0x1e0] sm:$0xff]
        %v429 = vld [vmem:[%s300 + $0x1e8] sm:$0xff]
        %v430 = vld [vmem:[%s300 + $0x1f0] sm:$0xff]
        %v431 = vld [vmem:[%s300 + $0x1f8] sm:$0xff]
        %v432 = vld [vmem:[#allocation9] sm:$0xff]
        %v433 = vld [vmem:[#allocation9 + $0x8] sm:$0xff]
        %v434 = vld [vmem:[#allocation9 + $0x10] sm:$0xff]
        %v435 = vld [vmem:[#allocation9 + $0x18] sm:$0xff]
        %v436 = vld [vmem:[#allocation9 + $0x20] sm:$0xff]
        %v437 = vld [vmem:[#allocation9 + $0x28] sm:$0xff]
        %v438 = vld [vmem:[#allocation9 + $0x30] sm:$0xff]
        %v439 = vld [vmem:[#allocation9 + $0x38] sm:$0xff]
        %v440 = vld [vmem:[#allocation9 + $0x40] sm:$0xff]
        %v441 = vld [vmem:[#allocation9 + $0x48] sm:$0xff]
        %v442 = vld [vmem:[#allocation9 + $0x50] sm:$0xff]
        %v443 = vld [vmem:[#allocation9 + $0x58] sm:$0xff]
        %v444 = vld [vmem:[#allocation9 + $0x60] sm:$0xff]
        %v445 = vld [vmem:[#allocation9 + $0x68] sm:$0xff]
        %v446 = vld [vmem:[#allocation9 + $0x70] sm:$0xff]
        %v447 = vld [vmem:[#allocation9 + $0x78] sm:$0xff]
        %v448 = vld [vmem:[#allocation9 + $0x80] sm:$0xff]
        %v449 = vld [vmem:[#allocation9 + $0x88] sm:$0xff]
        %v450 = vld [vmem:[#allocation9 + $0x90] sm:$0xff]
        %v451 = vld [vmem:[#allocation9 + $0x98] sm:$0xff]
        %v452 = vld [vmem:[#allocation9 + $0xa0] sm:$0xff]
        %v453 = vld [vmem:[#allocation9 + $0xa8] sm:$0xff]
        %v454 = vld [vmem:[#allocation9 + $0xb0] sm:$0xff]
        %v455 = vld [vmem:[#allocation9 + $0xb8] sm:$0xff]
        %v456 = vld [vmem:[#allocation9 + $0xc0] sm:$0xff]
        %v457 = vld [vmem:[#allocation9 + $0xc8] sm:$0xff]
        %v458 = vld [vmem:[#allocation9 + $0xd0] sm:$0xff]
        %v459 = vld [vmem:[#allocation9 + $0xd8] sm:$0xff]
        %v460 = vld [vmem:[#allocation9 + $0xe0] sm:$0xff]
        %v461 = vld [vmem:[#allocation9 + $0xe8] sm:$0xff]
        %v462 = vld [vmem:[#allocation9 + $0xf0] sm:$0xff]
        %v463 = vld [vmem:[#allocation9 + $0xf8] sm:$0xff]
        %v464 = vld [vmem:[#allocation9 + $0x100] sm:$0xff]
        %v465 = vld [vmem:[#allocation9 + $0x108] sm:$0xff]
        %v466 = vld [vmem:[#allocation9 + $0x110] sm:$0xff]
        %v467 = vld [vmem:[#allocation9 + $0x118] sm:$0xff]
        %v468 = vld [vmem:[#allocation9 + $0x120] sm:$0xff]
        %v469 = vld [vmem:[#allocation9 + $0x128] sm:$0xff]
        %v470 = vld [vmem:[#allocation9 + $0x130] sm:$0xff]
        %v471 = vld [vmem:[#allocation9 + $0x138] sm:$0xff]
        %v472 = vld [vmem:[#allocation9 + $0x140] sm:$0xff]
        %v473 = vld [vmem:[#allocation9 + $0x148] sm:$0xff]
        %v474 = vld [vmem:[#allocation9 + $0x150] sm:$0xff]
        %v475 = vld [vmem:[#allocation9 + $0x158] sm:$0xff]
        %v476 = vld [vmem:[#allocation9 + $0x160] sm:$0xff]
        %v477 = vld [vmem:[#allocation9 + $0x168] sm:$0xff]
        %v478 = vld [vmem:[#allocation9 + $0x170] sm:$0xff]
        %v479 = vld [vmem:[#allocation9 + $0x178] sm:$0xff]
        %v480 = vld [vmem:[#allocation9 + $0x180] sm:$0xff]
        %v481 = vld [vmem:[#allocation9 + $0x188] sm:$0xff]
        %v482 = vld [vmem:[#allocation9 + $0x190] sm:$0xff]
        %v483 = vld [vmem:[#allocation9 + $0x198] sm:$0xff]
        %v484 = vld [vmem:[#allocation9 + $0x1a0] sm:$0xff]
        %v485 = vld [vmem:[#allocation9 + $0x1a8] sm:$0xff]
        %v486 = vld [vmem:[#allocation9 + $0x1b0] sm:$0xff]
        %v487 = vld [vmem:[#allocation9 + $0x1b8] sm:$0xff]
        %v488 = vld [vmem:[#allocation9 + $0x1c0] sm:$0xff]
        %v489 = vld [vmem:[#allocation9 + $0x1c8] sm:$0xff]
        %v490 = vld [vmem:[#allocation9 + $0x1d0] sm:$0xff]
        %v491 = vld [vmem:[#allocation9 + $0x1d8] sm:$0xff]
        %v492 = vld [vmem:[#allocation9 + $0x1e0] sm:$0xff]
        %v493 = vld [vmem:[#allocation9 + $0x1e8] sm:$0xff]
        %v494 = vld [vmem:[#allocation9 + $0x1f0] sm:$0xff]
        %v495 = vld [vmem:[#allocation9 + $0x1f8] sm:$0xff]
        %v496 = vld [vmem:[#allocation9 + $0x200] sm:$0xff]
        %v497 = vld [vmem:[#allocation9 + $0x208] sm:$0xff]
        %v498 = vld [vmem:[#allocation9 + $0x210] sm:$0xff]
        %v499 = vld [vmem:[#allocation9 + $0x218] sm:$0xff]
        %v500 = vld [vmem:[#allocation9 + $0x220] sm:$0xff]
        %v501 = vld [vmem:[#allocation9 + $0x228] sm:$0xff]
        %v502 = vld [vmem:[#allocation9 + $0x230] sm:$0xff]
        %v503 = vld [vmem:[#allocation9 + $0x238] sm:$0xff]
        %v504 = vld [vmem:[#allocation9 + $0x240] sm:$0xff]
        %v505 = vld [vmem:[#allocation9 + $0x248] sm:$0xff]
        %v506 = vld [vmem:[#allocation9 + $0x250] sm:$0xff]
        %v507 = vld [vmem:[#allocation9 + $0x258] sm:$0xff]
        %v508 = vld [vmem:[#allocation9 + $0x260] sm:$0xff]
        %v509 = vld [vmem:[#allocation9 + $0x268] sm:$0xff]
        %v510 = vld [vmem:[#allocation9 + $0x270] sm:$0xff]
        %v511 = vld [vmem:[#allocation9 + $0x278] sm:$0xff]
        %v512 = vld [vmem:[#allocation9 + $0x280] sm:$0xff]
        %v513 = vld [vmem:[#allocation9 + $0x288] sm:$0xff]
        %v514 = vld [vmem:[#allocation9 + $0x290] sm:$0xff]
        %v515 = vld [vmem:[#allocation9 + $0x298] sm:$0xff]
        %v516 = vld [vmem:[#allocation9 + $0x2a0] sm:$0xff]
        %v517 = vld [vmem:[#allocation9 + $0x2a8] sm:$0xff]
        %v518 = vld [vmem:[#allocation9 + $0x2b0] sm:$0xff]
        %v519 = vld [vmem:[#allocation9 + $0x2b8] sm:$0xff]
        %v520 = vld [vmem:[#allocation9 + $0x2c0] sm:$0xff]
        %v521 = vld [vmem:[#allocation9 + $0x2c8] sm:$0xff]
        %v522 = vld [vmem:[#allocation9 + $0x2d0] sm:$0xff]
        %v523 = vld [vmem:[#allocation9 + $0x2d8] sm:$0xff]
        %v524 = vld [vmem:[#allocation9 + $0x2e0] sm:$0xff]
        %v525 = vld [vmem:[#allocation9 + $0x2e8] sm:$0xff]
        %v526 = vld [vmem:[#allocation9 + $0x2f0] sm:$0xff]
        %v527 = vld [vmem:[#allocation9 + $0x2f8] sm:$0xff]
        %v528 = vld [vmem:[#allocation9 + $0x300] sm:$0xff]
        %v529 = vld [vmem:[#allocation9 + $0x308] sm:$0xff]
        %v530 = vld [vmem:[#allocation9 + $0x310] sm:$0xff]
        %v531 = vld [vmem:[#allocation9 + $0x318] sm:$0xff]
        %v532 = vld [vmem:[#allocation9 + $0x320] sm:$0xff]
        %v533 = vld [vmem:[#allocation9 + $0x328] sm:$0xff]
        %v534 = vld [vmem:[#allocation9 + $0x330] sm:$0xff]
        %v535 = vld [vmem:[#allocation9 + $0x338] sm:$0xff]
        %v536 = vld [vmem:[#allocation9 + $0x340] sm:$0xff]
        %v537 = vld [vmem:[#allocation9 + $0x348] sm:$0xff]
        %v538 = vld [vmem:[#allocation9 + $0x350] sm:$0xff]
        %v539 = vld [vmem:[#allocation9 + $0x358] sm:$0xff]
        %v540 = vld [vmem:[#allocation9 + $0x360] sm:$0xff]
        %v541 = vld [vmem:[#allocation9 + $0x368] sm:$0xff]
        %v542 = vld [vmem:[#allocation9 + $0x370] sm:$0xff]
        %v543 = vld [vmem:[#allocation9 + $0x378] sm:$0xff]
        %v544 = vld [vmem:[#allocation9 + $0x380] sm:$0xff]
        %v545 = vld [vmem:[#allocation9 + $0x388] sm:$0xff]
        %v546 = vld [vmem:[#allocation9 + $0x390] sm:$0xff]
        %v547 = vld [vmem:[#allocation9 + $0x398] sm:$0xff]
        %v548 = vld [vmem:[#allocation9 + $0x3a0] sm:$0xff]
        %v549 = vld [vmem:[#allocation9 + $0x3a8] sm:$0xff]
        %v550 = vld [vmem:[#allocation9 + $0x3b0] sm:$0xff]
        %v551 = vld [vmem:[#allocation9 + $0x3b8] sm:$0xff]
        %v552 = vld [vmem:[#allocation9 + $0x3c0] sm:$0xff]
        %v553 = vld [vmem:[#allocation9 + $0x3c8] sm:$0xff]
        %v554 = vld [vmem:[#allocation9 + $0x3d0] sm:$0xff]
        %v555 = vld [vmem:[#allocation9 + $0x3d8] sm:$0xff]
        %v556 = vld [vmem:[#allocation9 + $0x3e0] sm:$0xff]
        %v557 = vld [vmem:[#allocation9 + $0x3e8] sm:$0xff]
        %v558 = vld [vmem:[#allocation9 + $0x3f0] sm:$0xff]
        %v559 = vld [vmem:[#allocation9 + $0x3f8] sm:$0xff]
        %v560 = vld [vmem:[#allocation9 + $0x400] sm:$0xff]
        %v561 = vld [vmem:[#allocation9 + $0x408] sm:$0xff]
        %v562 = vld [vmem:[#allocation9 + $0x410] sm:$0xff]
        %v563 = vld [vmem:[#allocation9 + $0x418] sm:$0xff]
        %v564 = vld [vmem:[#allocation9 + $0x420] sm:$0xff]
        %v565 = vld [vmem:[#allocation9 + $0x428] sm:$0xff]
        %v566 = vld [vmem:[#allocation9 + $0x430] sm:$0xff]
        %v567 = vld [vmem:[#allocation9 + $0x438] sm:$0xff]
        %v568 = vld [vmem:[#allocation9 + $0x440] sm:$0xff]
        %v569 = vld [vmem:[#allocation9 + $0x448] sm:$0xff]
        %v570 = vld [vmem:[#allocation9 + $0x450] sm:$0xff]
        %v571 = vld [vmem:[#allocation9 + $0x458] sm:$0xff]
        %v572 = vld [vmem:[#allocation9 + $0x460] sm:$0xff]
        %v573 = vld [vmem:[#allocation9 + $0x468] sm:$0xff]
        %v574 = vld [vmem:[#allocation9 + $0x470] sm:$0xff]
        %v575 = vld [vmem:[#allocation9 + $0x478] sm:$0xff]
        %v576 = vld [vmem:[#allocation9 + $0x480] sm:$0xff]
        %v577 = vld [vmem:[#allocation9 + $0x488] sm:$0xff]
        %v578 = vld [vmem:[#allocation9 + $0x490] sm:$0xff]
        %v579 = vld [vmem:[#allocation9 + $0x498] sm:$0xff]
        %v580 = vld [vmem:[#allocation9 + $0x4a0] sm:$0xff]
        %v581 = vld [vmem:[#allocation9 + $0x4a8] sm:$0xff]
        %v582 = vld [vmem:[#allocation9 + $0x4b0] sm:$0xff]
        %v583 = vld [vmem:[#allocation9 + $0x4b8] sm:$0xff]
        %v584 = vld [vmem:[#allocation9 + $0x4c0] sm:$0xff]
        %v585 = vld [vmem:[#allocation9 + $0x4c8] sm:$0xff]
        %v586 = vld [vmem:[#allocation9 + $0x4d0] sm:$0xff]
        %v587 = vld [vmem:[#allocation9 + $0x4d8] sm:$0xff]
        %v588 = vld [vmem:[#allocation9 + $0x4e0] sm:$0xff]
        %v589 = vld [vmem:[#allocation9 + $0x4e8] sm:$0xff]
        %v590 = vld [vmem:[#allocation9 + $0x4f0] sm:$0xff]
        %v591 = vld [vmem:[#allocation9 + $0x4f8] sm:$0xff]
        %v592 = vld [vmem:[#allocation9 + $0x500] sm:$0xff]
        %v593 = vld [vmem:[#allocation9 + $0x508] sm:$0xff]
        %v594 = vld [vmem:[#allocation9 + $0x510] sm:$0xff]
        %v595 = vld [vmem:[#allocation9 + $0x518] sm:$0xff]
        %v596 = vld [vmem:[#allocation9 + $0x520] sm:$0xff]
        %v597 = vld [vmem:[#allocation9 + $0x528] sm:$0xff]
        %v598 = vld [vmem:[#allocation9 + $0x530] sm:$0xff]
        %v599 = vld [vmem:[#allocation9 + $0x538] sm:$0xff]
        %v600 = vld [vmem:[#allocation9 + $0x540] sm:$0xff]
        %v601 = vld [vmem:[#allocation9 + $0x548] sm:$0xff]
        %v602 = vld [vmem:[#allocation9 + $0x550] sm:$0xff]
        %v603 = vld [vmem:[#allocation9 + $0x558] sm:$0xff]
        %v604 = vld [vmem:[#allocation9 + $0x560] sm:$0xff]
        %v605 = vld [vmem:[#allocation9 + $0x568] sm:$0xff]
        %v606 = vld [vmem:[#allocation9 + $0x570] sm:$0xff]
        %v607 = vld [vmem:[#allocation9 + $0x578] sm:$0xff]
        %v608 = vld [vmem:[#allocation9 + $0x580] sm:$0xff]
        %v609 = vld [vmem:[#allocation9 + $0x588] sm:$0xff]
        %v610 = vld [vmem:[#allocation9 + $0x590] sm:$0xff]
        %v611 = vld [vmem:[#allocation9 + $0x598] sm:$0xff]
        %v612 = vld [vmem:[#allocation9 + $0x5a0] sm:$0xff]
        %v613 = vld [vmem:[#allocation9 + $0x5a8] sm:$0xff]
        %v614 = vld [vmem:[#allocation9 + $0x5b0] sm:$0xff]
        %v615 = vld [vmem:[#allocation9 + $0x5b8] sm:$0xff]
        %v616 = vld [vmem:[#allocation9 + $0x5c0] sm:$0xff]
        %v617 = vld [vmem:[#allocation9 + $0x5c8] sm:$0xff]
        %v618 = vld [vmem:[#allocation9 + $0x5d0] sm:$0xff]
        %v619 = vld [vmem:[#allocation9 + $0x5d8] sm:$0xff]
        %v620 = vld [vmem:[#allocation9 + $0x5e0] sm:$0xff]
        %v621 = vld [vmem:[#allocation9 + $0x5e8] sm:$0xff]
        %v622 = vld [vmem:[#allocation9 + $0x5f0] sm:$0xff]
        %v623 = vld [vmem:[#allocation9 + $0x5f8] sm:$0xff]
        %v624 = vld [vmem:[#allocation9 + $0x600] sm:$0xff]
        %v625 = vld [vmem:[#allocation9 + $0x608] sm:$0xff]
        %v626 = vld [vmem:[#allocation9 + $0x610] sm:$0xff]
        %v627 = vld [vmem:[#allocation9 + $0x618] sm:$0xff]
        %v628 = vld [vmem:[#allocation9 + $0x620] sm:$0xff]
        %v629 = vld [vmem:[#allocation9 + $0x628] sm:$0xff]
        %v630 = vld [vmem:[#allocation9 + $0x630] sm:$0xff]
        %v631 = vld [vmem:[#allocation9 + $0x638] sm:$0xff]
        %v632 = vld [vmem:[#allocation9 + $0x640] sm:$0xff]
        %v633 = vld [vmem:[#allocation9 + $0x648] sm:$0xff]
        %v634 = vld [vmem:[#allocation9 + $0x650] sm:$0xff]
        %v635 = vld [vmem:[#allocation9 + $0x658] sm:$0xff]
        %v636 = vld [vmem:[#allocation9 + $0x660] sm:$0xff]
        %v637 = vld [vmem:[#allocation9 + $0x668] sm:$0xff]
        %v638 = vld [vmem:[#allocation9 + $0x670] sm:$0xff]
        %v639 = vld [vmem:[#allocation9 + $0x678] sm:$0xff]
        %v640 = vld [vmem:[#allocation9 + $0x680] sm:$0xff]
        %v641 = vld [vmem:[#allocation9 + $0x688] sm:$0xff]
        %v642 = vld [vmem:[#allocation9 + $0x690] sm:$0xff]
        %v643 = vld [vmem:[#allocation9 + $0x698] sm:$0xff]
        %v644 = vld [vmem:[#allocation9 + $0x6a0] sm:$0xff]
        %v645 = vld [vmem:[#allocation9 + $0x6a8] sm:$0xff]
        %v646 = vld [vmem:[#allocation9 + $0x6b0] sm:$0xff]
        %v647 = vld [vmem:[#allocation9 + $0x6b8] sm:$0xff]
        %v648 = vld [vmem:[#allocation9 + $0x6c0] sm:$0xff]
        %v649 = vld [vmem:[#allocation9 + $0x6c8] sm:$0xff]
        %v650 = vld [vmem:[#allocation9 + $0x6d0] sm:$0xff]
        %v651 = vld [vmem:[#allocation9 + $0x6d8] sm:$0xff]
        %v652 = vld [vmem:[#allocation9 + $0x6e0] sm:$0xff]
        %v653 = vld [vmem:[#allocation9 + $0x6e8] sm:$0xff]
        %v654 = vld [vmem:[#allocation9 + $0x6f0] sm:$0xff]
        %v655 = vld [vmem:[#allocation9 + $0x6f8] sm:$0xff]
        %v656 = vld [vmem:[#allocation9 + $0x700] sm:$0xff]
        %v657 = vld [vmem:[#allocation9 + $0x708] sm:$0xff]
        %v658 = vld [vmem:[#allocation9 + $0x710] sm:$0xff]
        %v659 = vld [vmem:[#allocation9 + $0x718] sm:$0xff]
        %v660 = vld [vmem:[#allocation9 + $0x720] sm:$0xff]
        %v661 = vld [vmem:[#allocation9 + $0x728] sm:$0xff]
        %v662 = vld [vmem:[#allocation9 + $0x730] sm:$0xff]
        %v663 = vld [vmem:[#allocation9 + $0x738] sm:$0xff]
        %v664 = vld [vmem:[#allocation9 + $0x740] sm:$0xff]
        %v665 = vld [vmem:[#allocation9 + $0x748] sm:$0xff]
        %v666 = vld [vmem:[#allocation9 + $0x750] sm:$0xff]
        %v667 = vld [vmem:[#allocation9 + $0x758] sm:$0xff]
        %v668 = vld [vmem:[#allocation9 + $0x760] sm:$0xff]
        %v669 = vld [vmem:[#allocation9 + $0x768] sm:$0xff]
        %v670 = vld [vmem:[#allocation9 + $0x770] sm:$0xff]
        %v671 = vld [vmem:[#allocation9 + $0x778] sm:$0xff]
        %v672 = vld [vmem:[#allocation9 + $0x780] sm:$0xff]
        %v673 = vld [vmem:[#allocation9 + $0x788] sm:$0xff]
        %v674 = vld [vmem:[#allocation9 + $0x790] sm:$0xff]
        %v675 = vld [vmem:[#allocation9 + $0x798] sm:$0xff]
        %v676 = vld [vmem:[#allocation9 + $0x7a0] sm:$0xff]
        %v677 = vld [vmem:[#allocation9 + $0x7a8] sm:$0xff]
        %v678 = vld [vmem:[#allocation9 + $0x7b0] sm:$0xff]
        %v679 = vld [vmem:[#allocation9 + $0x7b8] sm:$0xff]
        %v680 = vld [vmem:[#allocation9 + $0x7c0] sm:$0xff]
        %v681 = vld [vmem:[#allocation9 + $0x7c8] sm:$0xff]
        %v682 = vld [vmem:[#allocation9 + $0x7d0] sm:$0xff]
        %v683 = vld [vmem:[#allocation9 + $0x7d8] sm:$0xff]
        %v684 = vld [vmem:[#allocation9 + $0x7e0] sm:$0xff]
        %v685 = vld [vmem:[#allocation9 + $0x7e8] sm:$0xff]
        %v686 = vld [vmem:[#allocation9 + $0x7f0] sm:$0xff]
        %v687 = vld [vmem:[#allocation9 + $0x7f8] sm:$0xff]
        %v688 = vld [vmem:[#allocation9 + $0x800] sm:$0xff]
        %v689 = vld [vmem:[#allocation9 + $0x808] sm:$0xff]
        %v690 = vld [vmem:[#allocation9 + $0x810] sm:$0xff]
        %v691 = vld [vmem:[#allocation9 + $0x818] sm:$0xff]
        %v692 = vld [vmem:[#allocation9 + $0x820] sm:$0xff]
        %v693 = vld [vmem:[#allocation9 + $0x828] sm:$0xff]
        %v694 = vld [vmem:[#allocation9 + $0x830] sm:$0xff]
        %v695 = vld [vmem:[#allocation9 + $0x838] sm:$0xff]
        %v696 = vld [vmem:[#allocation9 + $0x840] sm:$0xff]
        %v697 = vld [vmem:[#allocation9 + $0x848] sm:$0xff]
        %v698 = vld [vmem:[#allocation9 + $0x850] sm:$0xff]
        %v699 = vld [vmem:[#allocation9 + $0x858] sm:$0xff]
        %v700 = vld [vmem:[#allocation9 + $0x860] sm:$0xff]
        %v701 = vld [vmem:[#allocation9 + $0x868] sm:$0xff]
        %v702 = vld [vmem:[#allocation9 + $0x870] sm:$0xff]
        %v703 = vld [vmem:[#allocation9 + $0x878] sm:$0xff]
        %v704 = vld [vmem:[#allocation9 + $0x880] sm:$0xff]
        %v705 = vld [vmem:[#allocation9 + $0x888] sm:$0xff]
        %v706 = vld [vmem:[#allocation9 + $0x890] sm:$0xff]
        %v707 = vld [vmem:[#allocation9 + $0x898] sm:$0xff]
        %v708 = vld [vmem:[#allocation9 + $0x8a0] sm:$0xff]
        %v709 = vld [vmem:[#allocation9 + $0x8a8] sm:$0xff]
        %v710 = vld [vmem:[#allocation9 + $0x8b0] sm:$0xff]
        %v711 = vld [vmem:[#allocation9 + $0x8b8] sm:$0xff]
        %v712 = vld [vmem:[#allocation9 + $0x8c0] sm:$0xff]
        %v713 = vld [vmem:[#allocation9 + $0x8c8] sm:$0xff]
        %v714 = vld [vmem:[#allocation9 + $0x8d0] sm:$0xff]
        %v715 = vld [vmem:[#allocation9 + $0x8d8] sm:$0xff]
        %v716 = vld [vmem:[#allocation9 + $0x8e0] sm:$0xff]
        %v717 = vld [vmem:[#allocation9 + $0x8e8] sm:$0xff]
        %v718 = vld [vmem:[#allocation9 + $0x8f0] sm:$0xff]
        %v719 = vld [vmem:[#allocation9 + $0x8f8] sm:$0xff]
        %v720 = vld [vmem:[#allocation9 + $0x900] sm:$0xff]
        %v721 = vld [vmem:[#allocation9 + $0x908] sm:$0xff]
        %v722 = vld [vmem:[#allocation9 + $0x910] sm:$0xff]
        %v723 = vld [vmem:[#allocation9 + $0x918] sm:$0xff]
        %v724 = vld [vmem:[#allocation9 + $0x920] sm:$0xff]
        %v725 = vld [vmem:[#allocation9 + $0x928] sm:$0xff]
        %v726 = vld [vmem:[#allocation9 + $0x930] sm:$0xff]
        %v727 = vld [vmem:[#allocation9 + $0x938] sm:$0xff]
        %v728 = vld [vmem:[#allocation9 + $0x940] sm:$0xff]
        %v729 = vld [vmem:[#allocation9 + $0x948] sm:$0xff]
        %v730 = vld [vmem:[#allocation9 + $0x950] sm:$0xff]
        %v731 = vld [vmem:[#allocation9 + $0x958] sm:$0xff]
        %v732 = vld [vmem:[#allocation9 + $0x960] sm:$0xff]
        %v733 = vld [vmem:[#allocation9 + $0x968] sm:$0xff]
        %v734 = vld [vmem:[#allocation9 + $0x970] sm:$0xff]
        %v735 = vld [vmem:[#allocation9 + $0x978] sm:$0xff]
        %v736 = vld [vmem:[#allocation9 + $0x980] sm:$0xff]
        %v737 = vld [vmem:[#allocation9 + $0x988] sm:$0xff]
        %v738 = vld [vmem:[#allocation9 + $0x990] sm:$0xff]
        %v739 = vld [vmem:[#allocation9 + $0x998] sm:$0xff]
        %v740 = vld [vmem:[#allocation9 + $0x9a0] sm:$0xff]
        %v741 = vld [vmem:[#allocation9 + $0x9a8] sm:$0xff]
        %v742 = vld [vmem:[#allocation9 + $0x9b0] sm:$0xff]
        %v743 = vld [vmem:[#allocation9 + $0x9b8] sm:$0xff]
        %v744 = vld [vmem:[#allocation9 + $0x9c0] sm:$0xff]
        %v745 = vld [vmem:[#allocation9 + $0x9c8] sm:$0xff]
        %v746 = vld [vmem:[#allocation9 + $0x9d0] sm:$0xff]
        %v747 = vld [vmem:[#allocation9 + $0x9d8] sm:$0xff]
        %v748 = vld [vmem:[#allocation9 + $0x9e0] sm:$0xff]
        %v749 = vld [vmem:[#allocation9 + $0x9e8] sm:$0xff]
        %v750 = vld [vmem:[#allocation9 + $0x9f0] sm:$0xff]
        %v751 = vld [vmem:[#allocation9 + $0x9f8] sm:$0xff]
        %v752 = vld [vmem:[#allocation9 + $0xa00] sm:$0xff]
        %v753 = vld [vmem:[#allocation9 + $0xa08] sm:$0xff]
        %v754 = vld [vmem:[#allocation9 + $0xa10] sm:$0xff]
        %v755 = vld [vmem:[#allocation9 + $0xa18] sm:$0xff]
        %v756 = vld [vmem:[#allocation9 + $0xa20] sm:$0xff]
        %v757 = vld [vmem:[#allocation9 + $0xa28] sm:$0xff]
        %v758 = vld [vmem:[#allocation9 + $0xa30] sm:$0xff]
        %v759 = vld [vmem:[#allocation9 + $0xa38] sm:$0xff]
        %v760 = vld [vmem:[#allocation9 + $0xa40] sm:$0xff]
        %v761 = vld [vmem:[#allocation9 + $0xa48] sm:$0xff]
        %v762 = vld [vmem:[#allocation9 + $0xa50] sm:$0xff]
        %v763 = vld [vmem:[#allocation9 + $0xa58] sm:$0xff]
        %v764 = vld [vmem:[#allocation9 + $0xa60] sm:$0xff]
        %v765 = vld [vmem:[#allocation9 + $0xa68] sm:$0xff]
        %v766 = vld [vmem:[#allocation9 + $0xa70] sm:$0xff]
        %v767 = vld [vmem:[#allocation9 + $0xa78] sm:$0xff]
        %v768 = vld [vmem:[#allocation9 + $0xa80] sm:$0xff]
        %v769 = vld [vmem:[#allocation9 + $0xa88] sm:$0xff]
        %v770 = vld [vmem:[#allocation9 + $0xa90] sm:$0xff]
        %v771 = vld [vmem:[#allocation9 + $0xa98] sm:$0xff]
        %v772 = vld [vmem:[#allocation9 + $0xaa0] sm:$0xff]
        %v773 = vld [vmem:[#allocation9 + $0xaa8] sm:$0xff]
        %v774 = vld [vmem:[#allocation9 + $0xab0] sm:$0xff]
        %v775 = vld [vmem:[#allocation9 + $0xab8] sm:$0xff]
        %v776 = vld [vmem:[#allocation9 + $0xac0] sm:$0xff]
        %v777 = vld [vmem:[#allocation9 + $0xac8] sm:$0xff]
        %v778 = vld [vmem:[#allocation9 + $0xad0] sm:$0xff]
        %v779 = vld [vmem:[#allocation9 + $0xad8] sm:$0xff]
        %v780 = vld [vmem:[#allocation9 + $0xae0] sm:$0xff]
        %v781 = vld [vmem:[#allocation9 + $0xae8] sm:$0xff]
        %v782 = vld [vmem:[#allocation9 + $0xaf0] sm:$0xff]
        %v783 = vld [vmem:[#allocation9 + $0xaf8] sm:$0xff]
        %v784 = vld [vmem:[#allocation9 + $0xb00] sm:$0xff]
        %v785 = vld [vmem:[#allocation9 + $0xb08] sm:$0xff]
        %v786 = vld [vmem:[#allocation9 + $0xb10] sm:$0xff]
        %v787 = vld [vmem:[#allocation9 + $0xb18] sm:$0xff]
        %v788 = vld [vmem:[#allocation9 + $0xb20] sm:$0xff]
        %v789 = vld [vmem:[#allocation9 + $0xb28] sm:$0xff]
        %v790 = vld [vmem:[#allocation9 + $0xb30] sm:$0xff]
        %v791 = vld [vmem:[#allocation9 + $0xb38] sm:$0xff]
        %v792 = vld [vmem:[#allocation9 + $0xb40] sm:$0xff]
        %v793 = vld [vmem:[#allocation9 + $0xb48] sm:$0xff]
        %v794 = vld [vmem:[#allocation9 + $0xb50] sm:$0xff]
        %v795 = vld [vmem:[#allocation9 + $0xb58] sm:$0xff]
        %v796 = vld [vmem:[#allocation9 + $0xb60] sm:$0xff]
        %v797 = vld [vmem:[#allocation9 + $0xb68] sm:$0xff]
        %v798 = vld [vmem:[#allocation9 + $0xb70] sm:$0xff]
        %v799 = vld [vmem:[#allocation9 + $0xb78] sm:$0xff]
        %v800 = vld [vmem:[#allocation9 + $0xb80] sm:$0xff]
        %v801 = vld [vmem:[#allocation9 + $0xb88] sm:$0xff]
        %v802 = vld [vmem:[#allocation9 + $0xb90] sm:$0xff]
        %v803 = vld [vmem:[#allocation9 + $0xb98] sm:$0xff]
        %v804 = vld [vmem:[#allocation9 + $0xba0] sm:$0xff]
        %v805 = vld [vmem:[#allocation9 + $0xba8] sm:$0xff]
        %v806 = vld [vmem:[#allocation9 + $0xbb0] sm:$0xff]
        %v807 = vld [vmem:[#allocation9 + $0xbb8] sm:$0xff]
        %v808 = vld [vmem:[#allocation9 + $0xbc0] sm:$0xff]
        %v809 = vld [vmem:[#allocation9 + $0xbc8] sm:$0xff]
        %v810 = vld [vmem:[#allocation9 + $0xbd0] sm:$0xff]
        %v811 = vld [vmem:[#allocation9 + $0xbd8] sm:$0xff]
        %v812 = vld [vmem:[#allocation9 + $0xbe0] sm:$0xff]
        %v813 = vld [vmem:[#allocation9 + $0xbe8] sm:$0xff]
        %v814 = vld [vmem:[#allocation9 + $0xbf0] sm:$0xff]
        %v815 = vld [vmem:[#allocation9 + $0xbf8] sm:$0xff]
        %v816 = vld [vmem:[#allocation9 + $0xc00] sm:$0xff]
        %v817 = vld [vmem:[#allocation9 + $0xc08] sm:$0xff]
        %v818 = vld [vmem:[#allocation9 + $0xc10] sm:$0xff]
        %v819 = vld [vmem:[#allocation9 + $0xc18] sm:$0xff]
        %v820 = vld [vmem:[#allocation9 + $0xc20] sm:$0xff]
        %v821 = vld [vmem:[#allocation9 + $0xc28] sm:$0xff]
        %v822 = vld [vmem:[#allocation9 + $0xc30] sm:$0xff]
        %v823 = vld [vmem:[#allocation9 + $0xc38] sm:$0xff]
        %v824 = vld [vmem:[#allocation9 + $0xc40] sm:$0xff]
        %v825 = vld [vmem:[#allocation9 + $0xc48] sm:$0xff]
        %v826 = vld [vmem:[#allocation9 + $0xc50] sm:$0xff]
        %v827 = vld [vmem:[#allocation9 + $0xc58] sm:$0xff]
        %v828 = vld [vmem:[#allocation9 + $0xc60] sm:$0xff]
        %v829 = vld [vmem:[#allocation9 + $0xc68] sm:$0xff]
        %v830 = vld [vmem:[#allocation9 + $0xc70] sm:$0xff]
        %v831 = vld [vmem:[#allocation9 + $0xc78] sm:$0xff]
        %v832 = vld [vmem:[#allocation9 + $0xc80] sm:$0xff]
        %v833 = vld [vmem:[#allocation9 + $0xc88] sm:$0xff]
        %v834 = vld [vmem:[#allocation9 + $0xc90] sm:$0xff]
        %v835 = vld [vmem:[#allocation9 + $0xc98] sm:$0xff]
        %v836 = vld [vmem:[#allocation9 + $0xca0] sm:$0xff]
        %v837 = vld [vmem:[#allocation9 + $0xca8] sm:$0xff]
        %v838 = vld [vmem:[#allocation9 + $0xcb0] sm:$0xff]
        %v839 = vld [vmem:[#allocation9 + $0xcb8] sm:$0xff]
        %v840 = vld [vmem:[#allocation9 + $0xcc0] sm:$0xff]
        %v841 = vld [vmem:[#allocation9 + $0xcc8] sm:$0xff]
        %v842 = vld [vmem:[#allocation9 + $0xcd0] sm:$0xff]
        %v843 = vld [vmem:[#allocation9 + $0xcd8] sm:$0xff]
        %v844 = vld [vmem:[#allocation9 + $0xce0] sm:$0xff]
        %v845 = vld [vmem:[#allocation9 + $0xce8] sm:$0xff]
        %v846 = vld [vmem:[#allocation9 + $0xcf0] sm:$0xff]
        %v847 = vld [vmem:[#allocation9 + $0xcf8] sm:$0xff]
        %v848 = vld [vmem:[#allocation9 + $0xd00] sm:$0xff]
        %v849 = vld [vmem:[#allocation9 + $0xd08] sm:$0xff]
        %v850 = vld [vmem:[#allocation9 + $0xd10] sm:$0xff]
        %v851 = vld [vmem:[#allocation9 + $0xd18] sm:$0xff]
        %v852 = vld [vmem:[#allocation9 + $0xd20] sm:$0xff]
        %v853 = vld [vmem:[#allocation9 + $0xd28] sm:$0xff]
        %v854 = vld [vmem:[#allocation9 + $0xd30] sm:$0xff]
        %v855 = vld [vmem:[#allocation9 + $0xd38] sm:$0xff]
        %v856 = vld [vmem:[#allocation9 + $0xd40] sm:$0xff]
        %v857 = vld [vmem:[#allocation9 + $0xd48] sm:$0xff]
        %v858 = vld [vmem:[#allocation9 + $0xd50] sm:$0xff]
        %v859 = vld [vmem:[#allocation9 + $0xd58] sm:$0xff]
        %v860 = vld [vmem:[#allocation9 + $0xd60] sm:$0xff]
        %v861 = vld [vmem:[#allocation9 + $0xd68] sm:$0xff]
        %v862 = vld [vmem:[#allocation9 + $0xd70] sm:$0xff]
        %v863 = vld [vmem:[#allocation9 + $0xd78] sm:$0xff]
        %v864 = vld [vmem:[#allocation9 + $0xd80] sm:$0xff]
        %v865 = vld [vmem:[#allocation9 + $0xd88] sm:$0xff]
        %v866 = vld [vmem:[#allocation9 + $0xd90] sm:$0xff]
        %v867 = vld [vmem:[#allocation9 + $0xd98] sm:$0xff]
        %v868 = vld [vmem:[#allocation9 + $0xda0] sm:$0xff]
        %v869 = vld [vmem:[#allocation9 + $0xda8] sm:$0xff]
        %v870 = vld [vmem:[#allocation9 + $0xdb0] sm:$0xff]
        %v871 = vld [vmem:[#allocation9 + $0xdb8] sm:$0xff]
        %v872 = vld [vmem:[#allocation9 + $0xdc0] sm:$0xff]
        %v873 = vld [vmem:[#allocation9 + $0xdc8] sm:$0xff]
        %v874 = vld [vmem:[#allocation9 + $0xdd0] sm:$0xff]
        %v875 = vld [vmem:[#allocation9 + $0xdd8] sm:$0xff]
        %v876 = vld [vmem:[#allocation9 + $0xde0] sm:$0xff]
        %v877 = vld [vmem:[#allocation9 + $0xde8] sm:$0xff]
        %v878 = vld [vmem:[#allocation9 + $0xdf0] sm:$0xff]
        %v879 = vld [vmem:[#allocation9 + $0xdf8] sm:$0xff]
        %v880 = vld [vmem:[#allocation9 + $0xe00] sm:$0xff]
        %v881 = vld [vmem:[#allocation9 + $0xe08] sm:$0xff]
        %v882 = vld [vmem:[#allocation9 + $0xe10] sm:$0xff]
        %v883 = vld [vmem:[#allocation9 + $0xe18] sm:$0xff]
        %v884 = vld [vmem:[#allocation9 + $0xe20] sm:$0xff]
        %v885 = vld [vmem:[#allocation9 + $0xe28] sm:$0xff]
        %v886 = vld [vmem:[#allocation9 + $0xe30] sm:$0xff]
        %v887 = vld [vmem:[#allocation9 + $0xe38] sm:$0xff]
        %v888 = vld [vmem:[#allocation9 + $0xe40] sm:$0xff]
        %v889 = vld [vmem:[#allocation9 + $0xe48] sm:$0xff]
        %v890 = vld [vmem:[#allocation9 + $0xe50] sm:$0xff]
        %v891 = vld [vmem:[#allocation9 + $0xe58] sm:$0xff]
        %v892 = vld [vmem:[#allocation9 + $0xe60] sm:$0xff]
        %v893 = vld [vmem:[#allocation9 + $0xe68] sm:$0xff]
        %v894 = vld [vmem:[#allocation9 + $0xe70] sm:$0xff]
        %v895 = vld [vmem:[#allocation9 + $0xe78] sm:$0xff]
        %v896 = vld [vmem:[#allocation9 + $0xe80] sm:$0xff]
        %v897 = vld [vmem:[#allocation9 + $0xe88] sm:$0xff]
        %v898 = vld [vmem:[#allocation9 + $0xe90] sm:$0xff]
        %v899 = vld [vmem:[#allocation9 + $0xe98] sm:$0xff]
        %v900 = vld [vmem:[#allocation9 + $0xea0] sm:$0xff]
        %v901 = vld [vmem:[#allocation9 + $0xea8] sm:$0xff]
        %v902 = vld [vmem:[#allocation9 + $0xeb0] sm:$0xff]
        %v903 = vld [vmem:[#allocation9 + $0xeb8] sm:$0xff]
        %v904 = vld [vmem:[#allocation9 + $0xec0] sm:$0xff]
        %v905 = vld [vmem:[#allocation9 + $0xec8] sm:$0xff]
        %v906 = vld [vmem:[#allocation9 + $0xed0] sm:$0xff]
        %v907 = vld [vmem:[#allocation9 + $0xed8] sm:$0xff]
        %v908 = vld [vmem:[#allocation9 + $0xee0] sm:$0xff]
        %v909 = vld [vmem:[#allocation9 + $0xee8] sm:$0xff]
        %v910 = vld [vmem:[#allocation9 + $0xef0] sm:$0xff]
        %v911 = vld [vmem:[#allocation9 + $0xef8] sm:$0xff]
        %v912 = vld [vmem:[#allocation9 + $0xf00] sm:$0xff]
        %v913 = vld [vmem:[#allocation9 + $0xf08] sm:$0xff]
        %v914 = vld [vmem:[#allocation9 + $0xf10] sm:$0xff]
        %v915 = vld [vmem:[#allocation9 + $0xf18] sm:$0xff]
        %v916 = vld [vmem:[#allocation9 + $0xf20] sm:$0xff]
        %v917 = vld [vmem:[#allocation9 + $0xf28] sm:$0xff]
        %v918 = vld [vmem:[#allocation9 + $0xf30] sm:$0xff]
        %v919 = vld [vmem:[#allocation9 + $0xf38] sm:$0xff]
        %v920 = vld [vmem:[#allocation9 + $0xf40] sm:$0xff]
        %v921 = vld [vmem:[#allocation9 + $0xf48] sm:$0xff]
        %v922 = vld [vmem:[#allocation9 + $0xf50] sm:$0xff]
        %v923 = vld [vmem:[#allocation9 + $0xf58] sm:$0xff]
        %v924 = vld [vmem:[#allocation9 + $0xf60] sm:$0xff]
        %v925 = vld [vmem:[#allocation9 + $0xf68] sm:$0xff]
        %v926 = vld [vmem:[#allocation9 + $0xf70] sm:$0xff]
        %v927 = vld [vmem:[#allocation9 + $0xf78] sm:$0xff]
        %v928 = vld [vmem:[#allocation9 + $0xf80] sm:$0xff]
        %v929 = vld [vmem:[#allocation9 + $0xf88] sm:$0xff]
        %v930 = vld [vmem:[#allocation9 + $0xf90] sm:$0xff]
        %v931 = vld [vmem:[#allocation9 + $0xf98] sm:$0xff]
        %v932 = vld [vmem:[#allocation9 + $0xfa0] sm:$0xff]
        %v933 = vld [vmem:[#allocation9 + $0xfa8] sm:$0xff]
        %v934 = vld [vmem:[#allocation9 + $0xfb0] sm:$0xff]
        %v935 = vld [vmem:[#allocation9 + $0xfb8] sm:$0xff]
        %v936 = vld [vmem:[#allocation9 + $0xfc0] sm:$0xff]
        %v937 = vld [vmem:[#allocation9 + $0xfc8] sm:$0xff]
        %v938 = vld [vmem:[#allocation9 + $0xfd0] sm:$0xff]
        %v939 = vld [vmem:[#allocation9 + $0xfd8] sm:$0xff]
        %v940 = vld [vmem:[#allocation9 + $0xfe0] sm:$0xff]
        %v941 = vld [vmem:[#allocation9 + $0xfe8] sm:$0xff]
        %v942 = vld [vmem:[#allocation9 + $0xff0] sm:$0xff]
        %v943 = vld [vmem:[#allocation9 + $0xff8] sm:$0xff]
        %v944 = vld [vmem:[#allocation9 + $0x1000] sm:$0xff]
        %v945 = vld [vmem:[#allocation9 + $0x1008] sm:$0xff]
        %v946 = vld [vmem:[#allocation9 + $0x1010] sm:$0xff]
        %v947 = vld [vmem:[#allocation9 + $0x1018] sm:$0xff]
        %v948 = vld [vmem:[#allocation9 + $0x1020] sm:$0xff]
        %v949 = vld [vmem:[#allocation9 + $0x1028] sm:$0xff]
        %v950 = vld [vmem:[#allocation9 + $0x1030] sm:$0xff]
        %v951 = vld [vmem:[#allocation9 + $0x1038] sm:$0xff]
        %v952 = vld [vmem:[#allocation9 + $0x1040] sm:$0xff]
        %v953 = vld [vmem:[#allocation9 + $0x1048] sm:$0xff]
        %v954 = vld [vmem:[#allocation9 + $0x1050] sm:$0xff]
        %v955 = vld [vmem:[#allocation9 + $0x1058] sm:$0xff]
        %v956 = vld [vmem:[#allocation9 + $0x1060] sm:$0xff]
        %v957 = vld [vmem:[#allocation9 + $0x1068] sm:$0xff]
        %v958 = vld [vmem:[#allocation9 + $0x1070] sm:$0xff]
        %v959 = vld [vmem:[#allocation9 + $0x1078] sm:$0xff]
        %v960 = vld [vmem:[#allocation9 + $0x1080] sm:$0xff]
        %v961 = vld [vmem:[#allocation9 + $0x1088] sm:$0xff]
        %v962 = vld [vmem:[#allocation9 + $0x1090] sm:$0xff]
        %v963 = vld [vmem:[#allocation9 + $0x1098] sm:$0xff]
        %v964 = vld [vmem:[#allocation9 + $0x10a0] sm:$0xff]
        %v965 = vld [vmem:[#allocation9 + $0x10a8] sm:$0xff]
        %v966 = vld [vmem:[#allocation9 + $0x10b0] sm:$0xff]
        %v967 = vld [vmem:[#allocation9 + $0x10b8] sm:$0xff]
        %v968 = vld [vmem:[#allocation9 + $0x10c0] sm:$0xff]
        %v969 = vld [vmem:[#allocation9 + $0x10c8] sm:$0xff]
        %v970 = vld [vmem:[#allocation9 + $0x10d0] sm:$0xff]
        %v971 = vld [vmem:[#allocation9 + $0x10d8] sm:$0xff]
        %v972 = vld [vmem:[#allocation9 + $0x10e0] sm:$0xff]
        %v973 = vld [vmem:[#allocation9 + $0x10e8] sm:$0xff]
        %v974 = vld [vmem:[#allocation9 + $0x10f0] sm:$0xff]
        %v975 = vld [vmem:[#allocation9 + $0x10f8] sm:$0xff]
        %v976 = vld [vmem:[#allocation9 + $0x1100] sm:$0xff]
        %v977 = vld [vmem:[#allocation9 + $0x1108] sm:$0xff]
        %v978 = vld [vmem:[#allocation9 + $0x1110] sm:$0xff]
        %v979 = vld [vmem:[#allocation9 + $0x1118] sm:$0xff]
        %v980 = vld [vmem:[#allocation9 + $0x1120] sm:$0xff]
        %v981 = vld [vmem:[#allocation9 + $0x1128] sm:$0xff]
        %v982 = vld [vmem:[#allocation9 + $0x1130] sm:$0xff]
        %v983 = vld [vmem:[#allocation9 + $0x1138] sm:$0xff]
        %v984 = vld [vmem:[#allocation9 + $0x1140] sm:$0xff]
        %v985 = vld [vmem:[#allocation9 + $0x1148] sm:$0xff]
        %v986 = vld [vmem:[#allocation9 + $0x1150] sm:$0xff]
        %v987 = vld [vmem:[#allocation9 + $0x1158] sm:$0xff]
        %v988 = vld [vmem:[#allocation9 + $0x1160] sm:$0xff]
        %v989 = vld [vmem:[#allocation9 + $0x1168] sm:$0xff]
        %v990 = vld [vmem:[#allocation9 + $0x1170] sm:$0xff]
        %v991 = vld [vmem:[#allocation9 + $0x1178] sm:$0xff]
        %v992 = vld [vmem:[#allocation9 + $0x1180] sm:$0xff]
        %v993 = vld [vmem:[#allocation9 + $0x1188] sm:$0xff]
        %v994 = vld [vmem:[#allocation9 + $0x1190] sm:$0xff]
        %v995 = vld [vmem:[#allocation9 + $0x1198] sm:$0xff]
        %v996 = vld [vmem:[#allocation9 + $0x11a0] sm:$0xff]
        %v997 = vld [vmem:[#allocation9 + $0x11a8] sm:$0xff]
        %v998 = vld [vmem:[#allocation9 + $0x11b0] sm:$0xff]
        %v999 = vld [vmem:[#allocation9 + $0x11b8] sm:$0xff]
        %v1000 = vld [vmem:[#allocation9 + $0x11c0] sm:$0xff]
        %v1001 = vld [vmem:[#allocation9 + $0x11c8] sm:$0xff]
        %v1002 = vld [vmem:[#allocation9 + $0x11d0] sm:$0xff]
        %v1003 = vld [vmem:[#allocation9 + $0x11d8] sm:$0xff]
        %v1004 = vld [vmem:[#allocation9 + $0x11e0] sm:$0xff]
        %v1005 = vld [vmem:[#allocation9 + $0x11e8] sm:$0xff]
        %v1006 = vld [vmem:[#allocation9 + $0x11f0] sm:$0xff]
        %v1007 = vld [vmem:[#allocation9 + $0x11f8] sm:$0xff]
        %v1008 = vld [vmem:[#allocation9 + $0x1200] sm:$0xff]
        %v1009 = vld [vmem:[#allocation9 + $0x1208] sm:$0xff]
        %v1010 = vld [vmem:[#allocation9 + $0x1210] sm:$0xff]
        %v1011 = vld [vmem:[#allocation9 + $0x1218] sm:$0xff]
        %v1012 = vld [vmem:[#allocation9 + $0x1220] sm:$0xff]
        %v1013 = vld [vmem:[#allocation9 + $0x1228] sm:$0xff]
        %v1014 = vld [vmem:[#allocation9 + $0x1230] sm:$0xff]
        %v1015 = vld [vmem:[#allocation9 + $0x1238] sm:$0xff]
        %v1016 = vld [vmem:[#allocation9 + $0x1240] sm:$0xff]
        %v1017 = vld [vmem:[#allocation9 + $0x1248] sm:$0xff]
        %v1018 = vld [vmem:[#allocation9 + $0x1250] sm:$0xff]
        %v1019 = vld [vmem:[#allocation9 + $0x1258] sm:$0xff]
        %v1020 = vld [vmem:[#allocation9 + $0x1260] sm:$0xff]
        %v1021 = vld [vmem:[#allocation9 + $0x1268] sm:$0xff]
        %v1022 = vld [vmem:[#allocation9 + $0x1270] sm:$0xff]
        %v1023 = vld [vmem:[#allocation9 + $0x1278] sm:$0xff]
        %v1024 = vld [vmem:[#allocation9 + $0x1280] sm:$0xff]
        %v1025 = vld [vmem:[#allocation9 + $0x1288] sm:$0xff]
        %v1026 = vld [vmem:[#allocation9 + $0x1290] sm:$0xff]
        %v1027 = vld [vmem:[#allocation9 + $0x1298] sm:$0xff]
        %v1028 = vld [vmem:[#allocation9 + $0x12a0] sm:$0xff]
        %v1029 = vld [vmem:[#allocation9 + $0x12a8] sm:$0xff]
        %v1030 = vld [vmem:[#allocation9 + $0x12b0] sm:$0xff]
        %v1031 = vld [vmem:[#allocation9 + $0x12b8] sm:$0xff]
        %v1032 = vld [vmem:[#allocation9 + $0x12c0] sm:$0xff]
        %v1033 = vld [vmem:[#allocation9 + $0x12c8] sm:$0xff]
        %v1034 = vld [vmem:[#allocation9 + $0x12d0] sm:$0xff]
        %v1035 = vld [vmem:[#allocation9 + $0x12d8] sm:$0xff]
        %v1036 = vld [vmem:[#allocation9 + $0x12e0] sm:$0xff]
        %v1037 = vld [vmem:[#allocation9 + $0x12e8] sm:$0xff]
        %v1038 = vld [vmem:[#allocation9 + $0x12f0] sm:$0xff]
        %v1039 = vld [vmem:[#allocation9 + $0x12f8] sm:$0xff]
        %v1040 = vld [vmem:[#allocation9 + $0x1300] sm:$0xff]
        %v1041 = vld [vmem:[#allocation9 + $0x1308] sm:$0xff]
        %v1042 = vld [vmem:[#allocation9 + $0x1310] sm:$0xff]
        %v1043 = vld [vmem:[#allocation9 + $0x1318] sm:$0xff]
        %v1044 = vld [vmem:[#allocation9 + $0x1320] sm:$0xff]
        %v1045 = vld [vmem:[#allocation9 + $0x1328] sm:$0xff]
        %v1046 = vld [vmem:[#allocation9 + $0x1330] sm:$0xff]
        %v1047 = vld [vmem:[#allocation9 + $0x1338] sm:$0xff]
        %v1048 = vld [vmem:[#allocation9 + $0x1340] sm:$0xff]
        %v1049 = vld [vmem:[#allocation9 + $0x1348] sm:$0xff]
        %v1050 = vld [vmem:[#allocation9 + $0x1350] sm:$0xff]
        %v1051 = vld [vmem:[#allocation9 + $0x1358] sm:$0xff]
        %v1052 = vld [vmem:[#allocation9 + $0x1360] sm:$0xff]
        %v1053 = vld [vmem:[#allocation9 + $0x1368] sm:$0xff]
        %v1054 = vld [vmem:[#allocation9 + $0x1370] sm:$0xff]
        %v1055 = vld [vmem:[#allocation9 + $0x1378] sm:$0xff]
        %v1056 = vld [vmem:[#allocation9 + $0x1380] sm:$0xff]
        %v1057 = vld [vmem:[#allocation9 + $0x1388] sm:$0xff]
        %v1058 = vld [vmem:[#allocation9 + $0x1390] sm:$0xff]
        %v1059 = vld [vmem:[#allocation9 + $0x1398] sm:$0xff]
        %v1060 = vld [vmem:[#allocation9 + $0x13a0] sm:$0xff]
        %v1061 = vld [vmem:[#allocation9 + $0x13a8] sm:$0xff]
        %v1062 = vld [vmem:[#allocation9 + $0x13b0] sm:$0xff]
        %v1063 = vld [vmem:[#allocation9 + $0x13b8] sm:$0xff]
        %v1064 = vld [vmem:[#allocation9 + $0x13c0] sm:$0xff]
        %v1065 = vld [vmem:[#allocation9 + $0x13c8] sm:$0xff]
        %v1066 = vld [vmem:[#allocation9 + $0x13d0] sm:$0xff]
        %v1067 = vld [vmem:[#allocation9 + $0x13d8] sm:$0xff]
        %v1068 = vld [vmem:[#allocation9 + $0x13e0] sm:$0xff]
        %v1069 = vld [vmem:[#allocation9 + $0x13e8] sm:$0xff]
        %v1070 = vld [vmem:[#allocation9 + $0x13f0] sm:$0xff]
        %v1071 = vld [vmem:[#allocation9 + $0x13f8] sm:$0xff]
        %v1072 = vld [vmem:[#allocation9 + $0x1400] sm:$0xff]
        %v1073 = vld [vmem:[#allocation9 + $0x1408] sm:$0xff]
        %v1074 = vld [vmem:[#allocation9 + $0x1410] sm:$0xff]
        %v1075 = vld [vmem:[#allocation9 + $0x1418] sm:$0xff]
        %v1076 = vld [vmem:[#allocation9 + $0x1420] sm:$0xff]
        %v1077 = vld [vmem:[#allocation9 + $0x1428] sm:$0xff]
        %v1078 = vld [vmem:[#allocation9 + $0x1430] sm:$0xff]
        %v1079 = vld [vmem:[#allocation9 + $0x1438] sm:$0xff]
        %v1080 = vld [vmem:[#allocation9 + $0x1440] sm:$0xff]
        %v1081 = vld [vmem:[#allocation9 + $0x1448] sm:$0xff]
        %v1082 = vld [vmem:[#allocation9 + $0x1450] sm:$0xff]
        %v1083 = vld [vmem:[#allocation9 + $0x1458] sm:$0xff]
        %v1084 = vld [vmem:[#allocation9 + $0x1460] sm:$0xff]
        %v1085 = vld [vmem:[#allocation9 + $0x1468] sm:$0xff]
        %v1086 = vld [vmem:[#allocation9 + $0x1470] sm:$0xff]
        %v1087 = vld [vmem:[#allocation9 + $0x1478] sm:$0xff]
        %v1088 = vld [vmem:[#allocation9 + $0x1480] sm:$0xff]
        %v1089 = vld [vmem:[#allocation9 + $0x1488] sm:$0xff]
        %v1090 = vld [vmem:[#allocation9 + $0x1490] sm:$0xff]
        %v1091 = vld [vmem:[#allocation9 + $0x1498] sm:$0xff]
        %v1092 = vld [vmem:[#allocation9 + $0x14a0] sm:$0xff]
        %v1093 = vld [vmem:[#allocation9 + $0x14a8] sm:$0xff]
        %v1094 = vld [vmem:[#allocation9 + $0x14b0] sm:$0xff]
        %v1095 = vld [vmem:[#allocation9 + $0x14b8] sm:$0xff]
        %v1096 = vld [vmem:[#allocation9 + $0x14c0] sm:$0xff]
        %v1097 = vld [vmem:[#allocation9 + $0x14c8] sm:$0xff]
        %v1098 = vld [vmem:[#allocation9 + $0x14d0] sm:$0xff]
        %v1099 = vld [vmem:[#allocation9 + $0x14d8] sm:$0xff]
        %v1100 = vld [vmem:[#allocation9 + $0x14e0] sm:$0xff]
        %v1101 = vld [vmem:[#allocation9 + $0x14e8] sm:$0xff]
        %v1102 = vld [vmem:[#allocation9 + $0x14f0] sm:$0xff]
        %v1103 = vld [vmem:[#allocation9 + $0x14f8] sm:$0xff]
        %v1104 = vld [vmem:[#allocation9 + $0x1500] sm:$0xff]
        %v1105 = vld [vmem:[#allocation9 + $0x1508] sm:$0xff]
        %v1106 = vld [vmem:[#allocation9 + $0x1510] sm:$0xff]
        %v1107 = vld [vmem:[#allocation9 + $0x1518] sm:$0xff]
        %v1108 = vld [vmem:[#allocation9 + $0x1520] sm:$0xff]
        %v1109 = vld [vmem:[#allocation9 + $0x1528] sm:$0xff]
        %v1110 = vld [vmem:[#allocation9 + $0x1530] sm:$0xff]
        %v1111 = vld [vmem:[#allocation9 + $0x1538] sm:$0xff]
        %v1112 = vld [vmem:[#allocation9 + $0x1540] sm:$0xff]
        %v1113 = vld [vmem:[#allocation9 + $0x1548] sm:$0xff]
        %v1114 = vld [vmem:[#allocation9 + $0x1550] sm:$0xff]
        %v1115 = vld [vmem:[#allocation9 + $0x1558] sm:$0xff]
        %v1116 = vld [vmem:[#allocation9 + $0x1560] sm:$0xff]
        %v1117 = vld [vmem:[#allocation9 + $0x1568] sm:$0xff]
        %v1118 = vld [vmem:[#allocation9 + $0x1570] sm:$0xff]
        %v1119 = vld [vmem:[#allocation9 + $0x1578] sm:$0xff]
        %v1120 = vld [vmem:[#allocation9 + $0x1580] sm:$0xff]
        %v1121 = vld [vmem:[#allocation9 + $0x1588] sm:$0xff]
        %v1122 = vld [vmem:[#allocation9 + $0x1590] sm:$0xff]
        %v1123 = vld [vmem:[#allocation9 + $0x1598] sm:$0xff]
        %v1124 = vld [vmem:[#allocation9 + $0x15a0] sm:$0xff]
        %v1125 = vld [vmem:[#allocation9 + $0x15a8] sm:$0xff]
        %v1126 = vld [vmem:[#allocation9 + $0x15b0] sm:$0xff]
        %v1127 = vld [vmem:[#allocation9 + $0x15b8] sm:$0xff]
        %v1128 = vld [vmem:[#allocation9 + $0x15c0] sm:$0xff]
        %v1129 = vld [vmem:[#allocation9 + $0x15c8] sm:$0xff]
        %v1130 = vld [vmem:[#allocation9 + $0x15d0] sm:$0xff]
        %v1131 = vld [vmem:[#allocation9 + $0x15d8] sm:$0xff]
        %v1132 = vld [vmem:[#allocation9 + $0x15e0] sm:$0xff]
        %v1133 = vld [vmem:[#allocation9 + $0x15e8] sm:$0xff]
        %v1134 = vld [vmem:[#allocation9 + $0x15f0] sm:$0xff]
        %v1135 = vld [vmem:[#allocation9 + $0x15f8] sm:$0xff]
        %v1136 = vld [vmem:[#allocation9 + $0x1600] sm:$0xff]
        %v1137 = vld [vmem:[#allocation9 + $0x1608] sm:$0xff]
        %v1138 = vld [vmem:[#allocation9 + $0x1610] sm:$0xff]
        %v1139 = vld [vmem:[#allocation9 + $0x1618] sm:$0xff]
        %v1140 = vld [vmem:[#allocation9 + $0x1620] sm:$0xff]
        %v1141 = vld [vmem:[#allocation9 + $0x1628] sm:$0xff]
        %v1142 = vld [vmem:[#allocation9 + $0x1630] sm:$0xff]
        %v1143 = vld [vmem:[#allocation9 + $0x1638] sm:$0xff]
        %v1144 = vld [vmem:[#allocation9 + $0x1640] sm:$0xff]
        %v1145 = vld [vmem:[#allocation9 + $0x1648] sm:$0xff]
        %v1146 = vld [vmem:[#allocation9 + $0x1650] sm:$0xff]
        %v1147 = vld [vmem:[#allocation9 + $0x1658] sm:$0xff]
        %v1148 = vld [vmem:[#allocation9 + $0x1660] sm:$0xff]
        %v1149 = vld [vmem:[#allocation9 + $0x1668] sm:$0xff]
        %v1150 = vld [vmem:[#allocation9 + $0x1670] sm:$0xff]
        %v1151 = vld [vmem:[#allocation9 + $0x1678] sm:$0xff]
        %v1152 = vld [vmem:[#allocation9 + $0x1680] sm:$0xff]
        %v1153 = vld [vmem:[#allocation9 + $0x1688] sm:$0xff]
        %v1154 = vld [vmem:[#allocation9 + $0x1690] sm:$0xff]
        %v1155 = vld [vmem:[#allocation9 + $0x1698] sm:$0xff]
        %v1156 = vld [vmem:[#allocation9 + $0x16a0] sm:$0xff]
        %v1157 = vld [vmem:[#allocation9 + $0x16a8] sm:$0xff]
        %v1158 = vld [vmem:[#allocation9 + $0x16b0] sm:$0xff]
        %v1159 = vld [vmem:[#allocation9 + $0x16b8] sm:$0xff]
        %v1160 = vld [vmem:[#allocation9 + $0x16c0] sm:$0xff]
        %v1161 = vld [vmem:[#allocation9 + $0x16c8] sm:$0xff]
        %v1162 = vld [vmem:[#allocation9 + $0x16d0] sm:$0xff]
        %v1163 = vld [vmem:[#allocation9 + $0x16d8] sm:$0xff]
        %v1164 = vld [vmem:[#allocation9 + $0x16e0] sm:$0xff]
        %v1165 = vld [vmem:[#allocation9 + $0x16e8] sm:$0xff]
        %v1166 = vld [vmem:[#allocation9 + $0x16f0] sm:$0xff]
        %v1167 = vld [vmem:[#allocation9 + $0x16f8] sm:$0xff]
        %v1168 = vld [vmem:[#allocation9 + $0x1700] sm:$0xff]
        %v1169 = vld [vmem:[#allocation9 + $0x1708] sm:$0xff]
        %v1170 = vld [vmem:[#allocation9 + $0x1710] sm:$0xff]
        %v1171 = vld [vmem:[#allocation9 + $0x1718] sm:$0xff]
        %v1172 = vld [vmem:[#allocation9 + $0x1720] sm:$0xff]
        %v1173 = vld [vmem:[#allocation9 + $0x1728] sm:$0xff]
        %v1174 = vld [vmem:[#allocation9 + $0x1730] sm:$0xff]
        %v1175 = vld [vmem:[#allocation9 + $0x1738] sm:$0xff]
        %v1176 = vld [vmem:[#allocation9 + $0x1740] sm:$0xff]
        %v1177 = vld [vmem:[#allocation9 + $0x1748] sm:$0xff]
        %v1178 = vld [vmem:[#allocation9 + $0x1750] sm:$0xff]
        %v1179 = vld [vmem:[#allocation9 + $0x1758] sm:$0xff]
        %v1180 = vld [vmem:[#allocation9 + $0x1760] sm:$0xff]
        %v1181 = vld [vmem:[#allocation9 + $0x1768] sm:$0xff]
        %v1182 = vld [vmem:[#allocation9 + $0x1770] sm:$0xff]
        %v1183 = vld [vmem:[#allocation9 + $0x1778] sm:$0xff]
        %v1184 = vld [vmem:[#allocation9 + $0x1780] sm:$0xff]
        %v1185 = vld [vmem:[#allocation9 + $0x1788] sm:$0xff]
        %v1186 = vld [vmem:[#allocation9 + $0x1790] sm:$0xff]
        %v1187 = vld [vmem:[#allocation9 + $0x1798] sm:$0xff]
        %v1188 = vld [vmem:[#allocation9 + $0x17a0] sm:$0xff]
        %v1189 = vld [vmem:[#allocation9 + $0x17a8] sm:$0xff]
        %v1190 = vld [vmem:[#allocation9 + $0x17b0] sm:$0xff]
        %v1191 = vld [vmem:[#allocation9 + $0x17b8] sm:$0xff]
        %v1192 = vld [vmem:[#allocation9 + $0x17c0] sm:$0xff]
        %v1193 = vld [vmem:[#allocation9 + $0x17c8] sm:$0xff]
        %v1194 = vld [vmem:[#allocation9 + $0x17d0] sm:$0xff]
        %v1195 = vld [vmem:[#allocation9 + $0x17d8] sm:$0xff]
        %v1196 = vld [vmem:[#allocation9 + $0x17e0] sm:$0xff]
        %v1197 = vld [vmem:[#allocation9 + $0x17e8] sm:$0xff]
        %v1198 = vld [vmem:[#allocation9 + $0x17f0] sm:$0xff]
        %v1199 = vld [vmem:[#allocation9 + $0x17f8] sm:$0xff]
        %v1200 = vld [vmem:[#allocation9 + $0x1800] sm:$0xff]
        %v1201 = vld [vmem:[#allocation9 + $0x1808] sm:$0xff]
        %v1202 = vld [vmem:[#allocation9 + $0x1810] sm:$0xff]
        %v1203 = vld [vmem:[#allocation9 + $0x1818] sm:$0xff]
        %v1204 = vld [vmem:[#allocation9 + $0x1820] sm:$0xff]
        %v1205 = vld [vmem:[#allocation9 + $0x1828] sm:$0xff]
        %v1206 = vld [vmem:[#allocation9 + $0x1830] sm:$0xff]
        %v1207 = vld [vmem:[#allocation9 + $0x1838] sm:$0xff]
        %v1208 = vld [vmem:[#allocation9 + $0x1840] sm:$0xff]
        %v1209 = vld [vmem:[#allocation9 + $0x1848] sm:$0xff]
        %v1210 = vld [vmem:[#allocation9 + $0x1850] sm:$0xff]
        %v1211 = vld [vmem:[#allocation9 + $0x1858] sm:$0xff]
        %v1212 = vld [vmem:[#allocation9 + $0x1860] sm:$0xff]
        %v1213 = vld [vmem:[#allocation9 + $0x1868] sm:$0xff]
        %v1214 = vld [vmem:[#allocation9 + $0x1870] sm:$0xff]
        %v1215 = vld [vmem:[#allocation9 + $0x1878] sm:$0xff]
        %v1216 = vld [vmem:[#allocation9 + $0x1880] sm:$0xff]
        %v1217 = vld [vmem:[#allocation9 + $0x1888] sm:$0xff]
        %v1218 = vld [vmem:[#allocation9 + $0x1890] sm:$0xff]
        %v1219 = vld [vmem:[#allocation9 + $0x1898] sm:$0xff]
        %v1220 = vld [vmem:[#allocation9 + $0x18a0] sm:$0xff]
        %v1221 = vld [vmem:[#allocation9 + $0x18a8] sm:$0xff]
        %v1222 = vld [vmem:[#allocation9 + $0x18b0] sm:$0xff]
        %v1223 = vld [vmem:[#allocation9 + $0x18b8] sm:$0xff]
        %v1224 = vld [vmem:[#allocation9 + $0x18c0] sm:$0xff]
        %v1225 = vld [vmem:[#allocation9 + $0x18c8] sm:$0xff]
        %v1226 = vld [vmem:[#allocation9 + $0x18d0] sm:$0xff]
        %v1227 = vld [vmem:[#allocation9 + $0x18d8] sm:$0xff]
        %v1228 = vld [vmem:[#allocation9 + $0x18e0] sm:$0xff]
        %v1229 = vld [vmem:[#allocation9 + $0x18e8] sm:$0xff]
        %v1230 = vld [vmem:[#allocation9 + $0x18f0] sm:$0xff]
        %v1231 = vld [vmem:[#allocation9 + $0x18f8] sm:$0xff]
        %v1232 = vld [vmem:[#allocation9 + $0x1900] sm:$0xff]
        %v1233 = vld [vmem:[#allocation9 + $0x1908] sm:$0xff]
        %v1234 = vld [vmem:[#allocation9 + $0x1910] sm:$0xff]
        %v1235 = vld [vmem:[#allocation9 + $0x1918] sm:$0xff]
        %v1236 = vld [vmem:[#allocation9 + $0x1920] sm:$0xff]
        %v1237 = vld [vmem:[#allocation9 + $0x1928] sm:$0xff]
        %v1238 = vld [vmem:[#allocation9 + $0x1930] sm:$0xff]
        %v1239 = vld [vmem:[#allocation9 + $0x1938] sm:$0xff]
        %v1240 = vld [vmem:[#allocation9 + $0x1940] sm:$0xff]
        %v1241 = vld [vmem:[#allocation9 + $0x1948] sm:$0xff]
        %v1242 = vld [vmem:[#allocation9 + $0x1950] sm:$0xff]
        %v1243 = vld [vmem:[#allocation9 + $0x1958] sm:$0xff]
        %v1244 = vld [vmem:[#allocation9 + $0x1960] sm:$0xff]
        %v1245 = vld [vmem:[#allocation9 + $0x1968] sm:$0xff]
        %v1246 = vld [vmem:[#allocation9 + $0x1970] sm:$0xff]
        %v1247 = vld [vmem:[#allocation9 + $0x1978] sm:$0xff]
        %v1248 = vld [vmem:[#allocation9 + $0x1980] sm:$0xff]
        %v1249 = vld [vmem:[#allocation9 + $0x1988] sm:$0xff]
        %v1250 = vld [vmem:[#allocation9 + $0x1990] sm:$0xff]
        %v1251 = vld [vmem:[#allocation9 + $0x1998] sm:$0xff]
        %v1252 = vld [vmem:[#allocation9 + $0x19a0] sm:$0xff]
        %v1253 = vld [vmem:[#allocation9 + $0x19a8] sm:$0xff]
        %v1254 = vld [vmem:[#allocation9 + $0x19b0] sm:$0xff]
        %v1255 = vld [vmem:[#allocation9 + $0x19b8] sm:$0xff]
        %v1256 = vld [vmem:[#allocation9 + $0x19c0] sm:$0xff]
        %v1257 = vld [vmem:[#allocation9 + $0x19c8] sm:$0xff]
        %v1258 = vld [vmem:[#allocation9 + $0x19d0] sm:$0xff]
        %v1259 = vld [vmem:[#allocation9 + $0x19d8] sm:$0xff]
        %v1260 = vld [vmem:[#allocation9 + $0x19e0] sm:$0xff]
        %v1261 = vld [vmem:[#allocation9 + $0x19e8] sm:$0xff]
        %v1262 = vld [vmem:[#allocation9 + $0x19f0] sm:$0xff]
        %v1263 = vld [vmem:[#allocation9 + $0x19f8] sm:$0xff]
        %v1264 = vld [vmem:[#allocation9 + $0x1a00] sm:$0xff]
        %v1265 = vld [vmem:[#allocation9 + $0x1a08] sm:$0xff]
        %v1266 = vld [vmem:[#allocation9 + $0x1a10] sm:$0xff]
        %v1267 = vld [vmem:[#allocation9 + $0x1a18] sm:$0xff]
        %v1268 = vld [vmem:[#allocation9 + $0x1a20] sm:$0xff]
        %v1269 = vld [vmem:[#allocation9 + $0x1a28] sm:$0xff]
        %v1270 = vld [vmem:[#allocation9 + $0x1a30] sm:$0xff]
        %v1271 = vld [vmem:[#allocation9 + $0x1a38] sm:$0xff]
        %v1272 = vld [vmem:[#allocation9 + $0x1a40] sm:$0xff]
        %v1273 = vld [vmem:[#allocation9 + $0x1a48] sm:$0xff]
        %v1274 = vld [vmem:[#allocation9 + $0x1a50] sm:$0xff]
        %v1275 = vld [vmem:[#allocation9 + $0x1a58] sm:$0xff]
        %v1276 = vld [vmem:[#allocation9 + $0x1a60] sm:$0xff]
        %v1277 = vld [vmem:[#allocation9 + $0x1a68] sm:$0xff]
        %v1278 = vld [vmem:[#allocation9 + $0x1a70] sm:$0xff]
        %v1279 = vld [vmem:[#allocation9 + $0x1a78] sm:$0xff]
        %v1280 = vld [vmem:[#allocation9 + $0x1a80] sm:$0xff]
        %v1281 = vld [vmem:[#allocation9 + $0x1a88] sm:$0xff]
        %v1282 = vld [vmem:[#allocation9 + $0x1a90] sm:$0xff]
        %v1283 = vld [vmem:[#allocation9 + $0x1a98] sm:$0xff]
        %v1284 = vld [vmem:[#allocation9 + $0x1aa0] sm:$0xff]
        %v1285 = vld [vmem:[#allocation9 + $0x1aa8] sm:$0xff]
        %v1286 = vld [vmem:[#allocation9 + $0x1ab0] sm:$0xff]
        %v1287 = vld [vmem:[#allocation9 + $0x1ab8] sm:$0xff]
        %v1288 = vld [vmem:[#allocation9 + $0x1ac0] sm:$0xff]
        %v1289 = vld [vmem:[#allocation9 + $0x1ac8] sm:$0xff]
        %v1290 = vld [vmem:[#allocation9 + $0x1ad0] sm:$0xff]
        %v1291 = vld [vmem:[#allocation9 + $0x1ad8] sm:$0xff]
        %v1292 = vld [vmem:[#allocation9 + $0x1ae0] sm:$0xff]
        %v1293 = vld [vmem:[#allocation9 + $0x1ae8] sm:$0xff]
        %v1294 = vld [vmem:[#allocation9 + $0x1af0] sm:$0xff]
        %v1295 = vld [vmem:[#allocation9 + $0x1af8] sm:$0xff]
        %v1296 = vld [vmem:[#allocation9 + $0x1b00] sm:$0xff]
        %v1297 = vld [vmem:[#allocation9 + $0x1b08] sm:$0xff]
        %v1298 = vld [vmem:[#allocation9 + $0x1b10] sm:$0xff]
        %v1299 = vld [vmem:[#allocation9 + $0x1b18] sm:$0xff]
        %v1300 = vld [vmem:[#allocation9 + $0x1b20] sm:$0xff]
        %v1301 = vld [vmem:[#allocation9 + $0x1b28] sm:$0xff]
        %v1302 = vld [vmem:[#allocation9 + $0x1b30] sm:$0xff]
        %v1303 = vld [vmem:[#allocation9 + $0x1b38] sm:$0xff]
        %v1304 = vld [vmem:[#allocation9 + $0x1b40] sm:$0xff]
        %v1305 = vld [vmem:[#allocation9 + $0x1b48] sm:$0xff]
        %v1306 = vld [vmem:[#allocation9 + $0x1b50] sm:$0xff]
        %v1307 = vld [vmem:[#allocation9 + $0x1b58] sm:$0xff]
        %v1308 = vld [vmem:[#allocation9 + $0x1b60] sm:$0xff]
        %v1309 = vld [vmem:[#allocation9 + $0x1b68] sm:$0xff]
        %v1310 = vld [vmem:[#allocation9 + $0x1b70] sm:$0xff]
        %v1311 = vld [vmem:[#allocation9 + $0x1b78] sm:$0xff]
        %v1312 = vld [vmem:[#allocation9 + $0x1b80] sm:$0xff]
        %v1313 = vld [vmem:[#allocation9 + $0x1b88] sm:$0xff]
        %v1314 = vld [vmem:[#allocation9 + $0x1b90] sm:$0xff]
        %v1315 = vld [vmem:[#allocation9 + $0x1b98] sm:$0xff]
        %v1316 = vld [vmem:[#allocation9 + $0x1ba0] sm:$0xff]
        %v1317 = vld [vmem:[#allocation9 + $0x1ba8] sm:$0xff]
        %v1318 = vld [vmem:[#allocation9 + $0x1bb0] sm:$0xff]
        %v1319 = vld [vmem:[#allocation9 + $0x1bb8] sm:$0xff]
        %v1320 = vld [vmem:[#allocation9 + $0x1bc0] sm:$0xff]
        %v1321 = vld [vmem:[#allocation9 + $0x1bc8] sm:$0xff]
        %v1322 = vld [vmem:[#allocation9 + $0x1bd0] sm:$0xff]
        %v1323 = vld [vmem:[#allocation9 + $0x1bd8] sm:$0xff]
        %v1324 = vld [vmem:[#allocation9 + $0x1be0] sm:$0xff]
        %v1325 = vld [vmem:[#allocation9 + $0x1be8] sm:$0xff]
        %v1326 = vld [vmem:[#allocation9 + $0x1bf0] sm:$0xff]
        %v1327 = vld [vmem:[#allocation9 + $0x1bf8] sm:$0xff]
        %v1328 = vld [vmem:[#allocation9 + $0x1c00] sm:$0xff]
        %v1329 = vld [vmem:[#allocation9 + $0x1c08] sm:$0xff]
        %v1330 = vld [vmem:[#allocation9 + $0x1c10] sm:$0xff]
        %v1331 = vld [vmem:[#allocation9 + $0x1c18] sm:$0xff]
        %v1332 = vld [vmem:[#allocation9 + $0x1c20] sm:$0xff]
        %v1333 = vld [vmem:[#allocation9 + $0x1c28] sm:$0xff]
        %v1334 = vld [vmem:[#allocation9 + $0x1c30] sm:$0xff]
        %v1335 = vld [vmem:[#allocation9 + $0x1c38] sm:$0xff]
        %v1336 = vld [vmem:[#allocation9 + $0x1c40] sm:$0xff]
        %v1337 = vld [vmem:[#allocation9 + $0x1c48] sm:$0xff]
        %v1338 = vld [vmem:[#allocation9 + $0x1c50] sm:$0xff]
        %v1339 = vld [vmem:[#allocation9 + $0x1c58] sm:$0xff]
        %v1340 = vld [vmem:[#allocation9 + $0x1c60] sm:$0xff]
        %v1341 = vld [vmem:[#allocation9 + $0x1c68] sm:$0xff]
        %v1342 = vld [vmem:[#allocation9 + $0x1c70] sm:$0xff]
        %v1343 = vld [vmem:[#allocation9 + $0x1c78] sm:$0xff]
        %v1344 = vld [vmem:[#allocation9 + $0x1c80] sm:$0xff]
        %v1345 = vld [vmem:[#allocation9 + $0x1c88] sm:$0xff]
        %v1346 = vld [vmem:[#allocation9 + $0x1c90] sm:$0xff]
        %v1347 = vld [vmem:[#allocation9 + $0x1c98] sm:$0xff]
        %v1348 = vld [vmem:[#allocation9 + $0x1ca0] sm:$0xff]
        %v1349 = vld [vmem:[#allocation9 + $0x1ca8] sm:$0xff]
        %v1350 = vld [vmem:[#allocation9 + $0x1cb0] sm:$0xff]
        %v1351 = vld [vmem:[#allocation9 + $0x1cb8] sm:$0xff]
        %v1352 = vld [vmem:[#allocation9 + $0x1cc0] sm:$0xff]
        %v1353 = vld [vmem:[#allocation9 + $0x1cc8] sm:$0xff]
        %v1354 = vld [vmem:[#allocation9 + $0x1cd0] sm:$0xff]
        %v1355 = vld [vmem:[#allocation9 + $0x1cd8] sm:$0xff]
        %v1356 = vld [vmem:[#allocation9 + $0x1ce0] sm:$0xff]
        %v1357 = vld [vmem:[#allocation9 + $0x1ce8] sm:$0xff]
        %v1358 = vld [vmem:[#allocation9 + $0x1cf0] sm:$0xff]
        %v1359 = vld [vmem:[#allocation9 + $0x1cf8] sm:$0xff]
        %v1360 = vld [vmem:[#allocation9 + $0x1d00] sm:$0xff]
        %v1361 = vld [vmem:[#allocation9 + $0x1d08] sm:$0xff]
        %v1362 = vld [vmem:[#allocation9 + $0x1d10] sm:$0xff]
        %v1363 = vld [vmem:[#allocation9 + $0x1d18] sm:$0xff]
        %v1364 = vld [vmem:[#allocation9 + $0x1d20] sm:$0xff]
        %v1365 = vld [vmem:[#allocation9 + $0x1d28] sm:$0xff]
        %v1366 = vld [vmem:[#allocation9 + $0x1d30] sm:$0xff]
        %v1367 = vld [vmem:[#allocation9 + $0x1d38] sm:$0xff]
        %v1368 = vld [vmem:[#allocation9 + $0x1d40] sm:$0xff]
        %v1369 = vld [vmem:[#allocation9 + $0x1d48] sm:$0xff]
        %v1370 = vld [vmem:[#allocation9 + $0x1d50] sm:$0xff]
        %v1371 = vld [vmem:[#allocation9 + $0x1d58] sm:$0xff]
        %v1372 = vld [vmem:[#allocation9 + $0x1d60] sm:$0xff]
        %v1373 = vld [vmem:[#allocation9 + $0x1d68] sm:$0xff]
        %v1374 = vld [vmem:[#allocation9 + $0x1d70] sm:$0xff]
        %v1375 = vld [vmem:[#allocation9 + $0x1d78] sm:$0xff]
        %v1376 = vld [vmem:[#allocation9 + $0x1d80] sm:$0xff]
        %v1377 = vld [vmem:[#allocation9 + $0x1d88] sm:$0xff]
        %v1378 = vld [vmem:[#allocation9 + $0x1d90] sm:$0xff]
        %v1379 = vld [vmem:[#allocation9 + $0x1d98] sm:$0xff]
        %v1380 = vld [vmem:[#allocation9 + $0x1da0] sm:$0xff]
        %v1381 = vld [vmem:[#allocation9 + $0x1da8] sm:$0xff]
        %v1382 = vld [vmem:[#allocation9 + $0x1db0] sm:$0xff]
        %v1383 = vld [vmem:[#allocation9 + $0x1db8] sm:$0xff]
        %v1384 = vld [vmem:[#allocation9 + $0x1dc0] sm:$0xff]
        %v1385 = vld [vmem:[#allocation9 + $0x1dc8] sm:$0xff]
        %v1386 = vld [vmem:[#allocation9 + $0x1dd0] sm:$0xff]
        %v1387 = vld [vmem:[#allocation9 + $0x1dd8] sm:$0xff]
        %v1388 = vld [vmem:[#allocation9 + $0x1de0] sm:$0xff]
        %v1389 = vld [vmem:[#allocation9 + $0x1de8] sm:$0xff]
        %v1390 = vld [vmem:[#allocation9 + $0x1df0] sm:$0xff]
        %v1391 = vld [vmem:[#allocation9 + $0x1df8] sm:$0xff]
        %v1392 = vld [vmem:[#allocation9 + $0x1e00] sm:$0xff]
        %v1393 = vld [vmem:[#allocation9 + $0x1e08] sm:$0xff]
        %v1394 = vld [vmem:[#allocation9 + $0x1e10] sm:$0xff]
        %v1395 = vld [vmem:[#allocation9 + $0x1e18] sm:$0xff]
        %v1396 = vld [vmem:[#allocation9 + $0x1e20] sm:$0xff]
        %v1397 = vld [vmem:[#allocation9 + $0x1e28] sm:$0xff]
        %v1398 = vld [vmem:[#allocation9 + $0x1e30] sm:$0xff]
        %v1399 = vld [vmem:[#allocation9 + $0x1e38] sm:$0xff]
        %v1400 = vld [vmem:[#allocation9 + $0x1e40] sm:$0xff]
        %v1401 = vld [vmem:[#allocation9 + $0x1e48] sm:$0xff]
        %v1402 = vld [vmem:[#allocation9 + $0x1e50] sm:$0xff]
        %v1403 = vld [vmem:[#allocation9 + $0x1e58] sm:$0xff]
        %v1404 = vld [vmem:[#allocation9 + $0x1e60] sm:$0xff]
        %v1405 = vld [vmem:[#allocation9 + $0x1e68] sm:$0xff]
        %v1406 = vld [vmem:[#allocation9 + $0x1e70] sm:$0xff]
        %v1407 = vld [vmem:[#allocation9 + $0x1e78] sm:$0xff]
        %v1408 = vld [vmem:[#allocation9 + $0x1e80] sm:$0xff]
        %v1409 = vld [vmem:[#allocation9 + $0x1e88] sm:$0xff]
        %v1410 = vld [vmem:[#allocation9 + $0x1e90] sm:$0xff]
        %v1411 = vld [vmem:[#allocation9 + $0x1e98] sm:$0xff]
        %v1412 = vld [vmem:[#allocation9 + $0x1ea0] sm:$0xff]
        %v1413 = vld [vmem:[#allocation9 + $0x1ea8] sm:$0xff]
        %v1414 = vld [vmem:[#allocation9 + $0x1eb0] sm:$0xff]
        %v1415 = vld [vmem:[#allocation9 + $0x1eb8] sm:$0xff]
        %v1416 = vld [vmem:[#allocation9 + $0x1ec0] sm:$0xff]
        %v1417 = vld [vmem:[#allocation9 + $0x1ec8] sm:$0xff]
        %v1418 = vld [vmem:[#allocation9 + $0x1ed0] sm:$0xff]
        %v1419 = vld [vmem:[#allocation9 + $0x1ed8] sm:$0xff]
        %v1420 = vld [vmem:[#allocation9 + $0x1ee0] sm:$0xff]
        %v1421 = vld [vmem:[#allocation9 + $0x1ee8] sm:$0xff]
        %v1422 = vld [vmem:[#allocation9 + $0x1ef0] sm:$0xff]
        %v1423 = vld [vmem:[#allocation9 + $0x1ef8] sm:$0xff]
        %v1424 = vld [vmem:[#allocation9 + $0x1f00] sm:$0xff]
        %v1425 = vld [vmem:[#allocation9 + $0x1f08] sm:$0xff]
        %v1426 = vld [vmem:[#allocation9 + $0x1f10] sm:$0xff]
        %v1427 = vld [vmem:[#allocation9 + $0x1f18] sm:$0xff]
        %v1428 = vld [vmem:[#allocation9 + $0x1f20] sm:$0xff]
        %v1429 = vld [vmem:[#allocation9 + $0x1f28] sm:$0xff]
        %v1430 = vld [vmem:[#allocation9 + $0x1f30] sm:$0xff]
        %v1431 = vld [vmem:[#allocation9 + $0x1f38] sm:$0xff]
        %v1432 = vld [vmem:[#allocation9 + $0x1f40] sm:$0xff]
        %v1433 = vld [vmem:[#allocation9 + $0x1f48] sm:$0xff]
        %v1434 = vld [vmem:[#allocation9 + $0x1f50] sm:$0xff]
        %v1435 = vld [vmem:[#allocation9 + $0x1f58] sm:$0xff]
        %v1436 = vld [vmem:[#allocation9 + $0x1f60] sm:$0xff]
        %v1437 = vld [vmem:[#allocation9 + $0x1f68] sm:$0xff]
        %v1438 = vld [vmem:[#allocation9 + $0x1f70] sm:$0xff]
        %v1439 = vld [vmem:[#allocation9 + $0x1f78] sm:$0xff]
        %v1440 = vld [vmem:[#allocation9 + $0x1f80] sm:$0xff]
        %v1441 = vld [vmem:[#allocation9 + $0x1f88] sm:$0xff]
        %v1442 = vld [vmem:[#allocation9 + $0x1f90] sm:$0xff]
        %v1443 = vld [vmem:[#allocation9 + $0x1f98] sm:$0xff]
        %v1444 = vld [vmem:[#allocation9 + $0x1fa0] sm:$0xff]
        %v1445 = vld [vmem:[#allocation9 + $0x1fa8] sm:$0xff]
        %v1446 = vld [vmem:[#allocation9 + $0x1fb0] sm:$0xff]
        %v1447 = vld [vmem:[#allocation9 + $0x1fb8] sm:$0xff]
        %v1448 = vld [vmem:[#allocation9 + $0x1fc0] sm:$0xff]
        %v1449 = vld [vmem:[#allocation9 + $0x1fc8] sm:$0xff]
        %v1450 = vld [vmem:[#allocation9 + $0x1fd0] sm:$0xff]
        %v1451 = vld [vmem:[#allocation9 + $0x1fd8] sm:$0xff]
        %v1452 = vld [vmem:[#allocation9 + $0x1fe0] sm:$0xff]
        %v1453 = vld [vmem:[#allocation9 + $0x1fe8] sm:$0xff]
        %v1454 = vld [vmem:[#allocation9 + $0x1ff0] sm:$0xff]
        %v1455 = vld [vmem:[#allocation9 + $0x1ff8] sm:$0xff]
        %1456 = vmatpush.msra.mxu0 %v447
        %1457 = vmatpush.msra.mxu0 %v446
        %1458 = vmatpush.msra.mxu0 %v445
        %1459 = vmatpush.msra.mxu0 %v444
        %1460 = vmatpush.msra.mxu0 %v443
        %1461 = vmatpush.msra.mxu0 %v442
        %1462 = vmatpush.msra.mxu0 %v441
        %1463 = vmatpush.msra.mxu0 %v440
        %1464 = vmatpush.msra.mxu0 %v439
        %1465 = vmatpush.msra.mxu0 %v438
        %1466 = vmatpush.msra.mxu0 %v437
        %1467 = vmatpush.msra.mxu0 %v436
        %1468 = vmatpush.msra.mxu0 %v435
        %1469 = vmatpush.msra.mxu0 %v434
        %1470 = vmatpush.msra.mxu0 %v433
        %1471 = vmatpush.msra.mxu0 %v432
        %1472 = vmatmul.f32.gmra.mxu0 %v368
        %v1473 = vpop.f32.mrf.mxu0
        %v1474 = vadd.f32 0.0, %v1473
        %1475 = vdwg.mxu0
        %1476 = vmatpush.msra.mxu0 %v463
        %1477 = vmatpush.msra.mxu0 %v462
        %1478 = vmatpush.msra.mxu0 %v461
        %1479 = vmatpush.msra.mxu0 %v460
        %1480 = vmatpush.msra.mxu0 %v459
        %1481 = vmatpush.msra.mxu0 %v458
        %1482 = vmatpush.msra.mxu0 %v457
        %1483 = vmatpush.msra.mxu0 %v456
        %1484 = vmatpush.msra.mxu0 %v455
        %1485 = vmatpush.msra.mxu0 %v454
        %1486 = vmatpush.msra.mxu0 %v453
        %1487 = vmatpush.msra.mxu0 %v452
        %1488 = vmatpush.msra.mxu0 %v451
        %1489 = vmatpush.msra.mxu0 %v450
        %1490 = vmatpush.msra.mxu0 %v449
        %1491 = vmatpush.msra.mxu0 %v448
        %1492 = vmatmul.f32.gmra.mxu0 %v369
        %v1493 = vpop.f32.mrf.mxu0
        %v1494 = vadd.f32 %v1474, %v1493
        %1495 = vdwg.mxu0
        %1496 = vmatpush.msra.mxu0 %v479
        %1497 = vmatpush.msra.mxu0 %v478
        %1498 = vmatpush.msra.mxu0 %v477
        %1499 = vmatpush.msra.mxu0 %v476
        %1500 = vmatpush.msra.mxu0 %v475
        %1501 = vmatpush.msra.mxu0 %v474
        %1502 = vmatpush.msra.mxu0 %v473
        %1503 = vmatpush.msra.mxu0 %v472
        %1504 = vmatpush.msra.mxu0 %v471
        %1505 = vmatpush.msra.mxu0 %v470
        %1506 = vmatpush.msra.mxu0 %v469
        %1507 = vmatpush.msra.mxu0 %v468
        %1508 = vmatpush.msra.mxu0 %v467
        %1509 = vmatpush.msra.mxu0 %v466
        %1510 = vmatpush.msra.mxu0 %v465
        %1511 = vmatpush.msra.mxu0 %v464
        %1512 = vmatmul.f32.gmra.mxu0 %v370
        %v1513 = vpop.f32.mrf.mxu0
        %v1514 = vadd.f32 %v1494, %v1513
        %1515 = vdwg.mxu0
        %1516 = vmatpush.msra.mxu0 %v495
        %1517 = vmatpush.msra.mxu0 %v494
        %1518 = vmatpush.msra.mxu0 %v493
        %1519 = vmatpush.msra.mxu0 %v492
        %1520 = vmatpush.msra.mxu0 %v491
        %1521 = vmatpush.msra.mxu0 %v490
        %1522 = vmatpush.msra.mxu0 %v489
        %1523 = vmatpush.msra.mxu0 %v488
        %1524 = vmatpush.msra.mxu0 %v487
        %1525 = vmatpush.msra.mxu0 %v486
        %1526 = vmatpush.msra.mxu0 %v485
        %1527 = vmatpush.msra.mxu0 %v484
        %1528 = vmatpush.msra.mxu0 %v483
        %1529 = vmatpush.msra.mxu0 %v482
        %1530 = vmatpush.msra.mxu0 %v481
        %1531 = vmatpush.msra.mxu0 %v480
        %1532 = vmatmul.f32.gmra.mxu0 %v371
        %v1533 = vpop.f32.mrf.mxu0
        %v1534 = vadd.f32 %v1514, %v1533
        %1535 = vdwg.mxu0
        %1536 = vmatpush.msra.mxu0 %v511
        %1537 = vmatpush.msra.mxu0 %v510
        %1538 = vmatpush.msra.mxu0 %v509
        %1539 = vmatpush.msra.mxu0 %v508
        %1540 = vmatpush.msra.mxu0 %v507
        %1541 = vmatpush.msra.mxu0 %v506
        %1542 = vmatpush.msra.mxu0 %v505
        %1543 = vmatpush.msra.mxu0 %v504
        %1544 = vmatpush.msra.mxu0 %v503
        %1545 = vmatpush.msra.mxu0 %v502
        %1546 = vmatpush.msra.mxu0 %v501
        %1547 = vmatpush.msra.mxu0 %v500
        %1548 = vmatpush.msra.mxu0 %v499
        %1549 = vmatpush.msra.mxu0 %v498
        %1550 = vmatpush.msra.mxu0 %v497
        %1551 = vmatpush.msra.mxu0 %v496
        %1552 = vmatmul.f32.gmra.mxu0 %v372
        %v1553 = vpop.f32.mrf.mxu0
        %v1554 = vadd.f32 %v1534, %v1553
        %1555 = vdwg.mxu0
        %1556 = vmatpush.msra.mxu0 %v527
        %1557 = vmatpush.msra.mxu0 %v526
        %1558 = vmatpush.msra.mxu0 %v525
        %1559 = vmatpush.msra.mxu0 %v524
        %1560 = vmatpush.msra.mxu0 %v523
        %1561 = vmatpush.msra.mxu0 %v522
        %1562 = vmatpush.msra.mxu0 %v521
        %1563 = vmatpush.msra.mxu0 %v520
        %1564 = vmatpush.msra.mxu0 %v519
        %1565 = vmatpush.msra.mxu0 %v518
        %1566 = vmatpush.msra.mxu0 %v517
        %1567 = vmatpush.msra.mxu0 %v516
        %1568 = vmatpush.msra.mxu0 %v515
        %1569 = vmatpush.msra.mxu0 %v514
        %1570 = vmatpush.msra.mxu0 %v513
        %1571 = vmatpush.msra.mxu0 %v512
        %1572 = vmatmul.f32.gmra.mxu0 %v373
        %v1573 = vpop.f32.mrf.mxu0
        %v1574 = vadd.f32 %v1554, %v1573
        %1575 = vdwg.mxu0
        %1576 = vmatpush.msra.mxu0 %v543
        %1577 = vmatpush.msra.mxu0 %v542
        %1578 = vmatpush.msra.mxu0 %v541
        %1579 = vmatpush.msra.mxu0 %v540
        %1580 = vmatpush.msra.mxu0 %v539
        %1581 = vmatpush.msra.mxu0 %v538
        %1582 = vmatpush.msra.mxu0 %v537
        %1583 = vmatpush.msra.mxu0 %v536
        %1584 = vmatpush.msra.mxu0 %v535
        %1585 = vmatpush.msra.mxu0 %v534
        %1586 = vmatpush.msra.mxu0 %v533
        %1587 = vmatpush.msra.mxu0 %v532
        %1588 = vmatpush.msra.mxu0 %v531
        %1589 = vmatpush.msra.mxu0 %v530
        %1590 = vmatpush.msra.mxu0 %v529
        %1591 = vmatpush.msra.mxu0 %v528
        %1592 = vmatmul.f32.gmra.mxu0 %v374
        %v1593 = vpop.f32.mrf.mxu0
        %v1594 = vadd.f32 %v1574, %v1593
        %1595 = vdwg.mxu0
        %1596 = vmatpush.msra.mxu0 %v559
        %1597 = vmatpush.msra.mxu0 %v558
        %1598 = vmatpush.msra.mxu0 %v557
        %1599 = vmatpush.msra.mxu0 %v556
        %1600 = vmatpush.msra.mxu0 %v555
        %1601 = vmatpush.msra.mxu0 %v554
        %1602 = vmatpush.msra.mxu0 %v553
        %1603 = vmatpush.msra.mxu0 %v552
        %1604 = vmatpush.msra.mxu0 %v551
        %1605 = vmatpush.msra.mxu0 %v550
        %1606 = vmatpush.msra.mxu0 %v549
        %1607 = vmatpush.msra.mxu0 %v548
        %1608 = vmatpush.msra.mxu0 %v547
        %1609 = vmatpush.msra.mxu0 %v546
        %1610 = vmatpush.msra.mxu0 %v545
        %1611 = vmatpush.msra.mxu0 %v544
        %1612 = vmatmul.f32.gmra.mxu0 %v375
        %v1613 = vpop.f32.mrf.mxu0
        %v1614 = vadd.f32 %v1594, %v1613
        %1615 = vdwg.mxu0
        %1616 = vmatpush.msra.mxu0 %v575
        %1617 = vmatpush.msra.mxu0 %v574
        %1618 = vmatpush.msra.mxu0 %v573
        %1619 = vmatpush.msra.mxu0 %v572
        %1620 = vmatpush.msra.mxu0 %v571
        %1621 = vmatpush.msra.mxu0 %v570
        %1622 = vmatpush.msra.mxu0 %v569
        %1623 = vmatpush.msra.mxu0 %v568
        %1624 = vmatpush.msra.mxu0 %v567
        %1625 = vmatpush.msra.mxu0 %v566
        %1626 = vmatpush.msra.mxu0 %v565
        %1627 = vmatpush.msra.mxu0 %v564
        %1628 = vmatpush.msra.mxu0 %v563
        %1629 = vmatpush.msra.mxu0 %v562
        %1630 = vmatpush.msra.mxu0 %v561
        %1631 = vmatpush.msra.mxu0 %v560
        %1632 = vmatmul.f32.gmra.mxu0 %v376
        %v1633 = vpop.f32.mrf.mxu0
        %v1634 = vadd.f32 %v1614, %v1633
        %1635 = vdwg.mxu0
        %1636 = vmatpush.msra.mxu0 %v591
        %1637 = vmatpush.msra.mxu0 %v590
        %1638 = vmatpush.msra.mxu0 %v589
        %1639 = vmatpush.msra.mxu0 %v588
        %1640 = vmatpush.msra.mxu0 %v587
        %1641 = vmatpush.msra.mxu0 %v586
        %1642 = vmatpush.msra.mxu0 %v585
        %1643 = vmatpush.msra.mxu0 %v584
        %1644 = vmatpush.msra.mxu0 %v583
        %1645 = vmatpush.msra.mxu0 %v582
        %1646 = vmatpush.msra.mxu0 %v581
        %1647 = vmatpush.msra.mxu0 %v580
        %1648 = vmatpush.msra.mxu0 %v579
        %1649 = vmatpush.msra.mxu0 %v578
        %1650 = vmatpush.msra.mxu0 %v577
        %1651 = vmatpush.msra.mxu0 %v576
        %1652 = vmatmul.f32.gmra.mxu0 %v377
        %v1653 = vpop.f32.mrf.mxu0
        %v1654 = vadd.f32 %v1634, %v1653
        %1655 = vdwg.mxu0
        %1656 = vmatpush.msra.mxu0 %v607
        %1657 = vmatpush.msra.mxu0 %v606
        %1658 = vmatpush.msra.mxu0 %v605
        %1659 = vmatpush.msra.mxu0 %v604
        %1660 = vmatpush.msra.mxu0 %v603
        %1661 = vmatpush.msra.mxu0 %v602
        %1662 = vmatpush.msra.mxu0 %v601
        %1663 = vmatpush.msra.mxu0 %v600
        %1664 = vmatpush.msra.mxu0 %v599
        %1665 = vmatpush.msra.mxu0 %v598
        %1666 = vmatpush.msra.mxu0 %v597
        %1667 = vmatpush.msra.mxu0 %v596
        %1668 = vmatpush.msra.mxu0 %v595
        %1669 = vmatpush.msra.mxu0 %v594
        %1670 = vmatpush.msra.mxu0 %v593
        %1671 = vmatpush.msra.mxu0 %v592
        %1672 = vmatmul.f32.gmra.mxu0 %v378
        %v1673 = vpop.f32.mrf.mxu0
        %v1674 = vadd.f32 %v1654, %v1673
        %1675 = vdwg.mxu0
        %1676 = vmatpush.msra.mxu0 %v623
        %1677 = vmatpush.msra.mxu0 %v622
        %1678 = vmatpush.msra.mxu0 %v621
        %1679 = vmatpush.msra.mxu0 %v620
        %1680 = vmatpush.msra.mxu0 %v619
        %1681 = vmatpush.msra.mxu0 %v618
        %1682 = vmatpush.msra.mxu0 %v617
        %1683 = vmatpush.msra.mxu0 %v616
        %1684 = vmatpush.msra.mxu0 %v615
        %1685 = vmatpush.msra.mxu0 %v614
        %1686 = vmatpush.msra.mxu0 %v613
        %1687 = vmatpush.msra.mxu0 %v612
        %1688 = vmatpush.msra.mxu0 %v611
        %1689 = vmatpush.msra.mxu0 %v610
        %1690 = vmatpush.msra.mxu0 %v609
        %1691 = vmatpush.msra.mxu0 %v608
        %1692 = vmatmul.f32.gmra.mxu0 %v379
        %v1693 = vpop.f32.mrf.mxu0
        %v1694 = vadd.f32 %v1674, %v1693
        %1695 = vdwg.mxu0
        %1696 = vmatpush.msra.mxu0 %v639
        %1697 = vmatpush.msra.mxu0 %v638
        %1698 = vmatpush.msra.mxu0 %v637
        %1699 = vmatpush.msra.mxu0 %v636
        %1700 = vmatpush.msra.mxu0 %v635
        %1701 = vmatpush.msra.mxu0 %v634
        %1702 = vmatpush.msra.mxu0 %v633
        %1703 = vmatpush.msra.mxu0 %v632
        %1704 = vmatpush.msra.mxu0 %v631
        %1705 = vmatpush.msra.mxu0 %v630
        %1706 = vmatpush.msra.mxu0 %v629
        %1707 = vmatpush.msra.mxu0 %v628
        %1708 = vmatpush.msra.mxu0 %v627
        %1709 = vmatpush.msra.mxu0 %v626
        %1710 = vmatpush.msra.mxu0 %v625
        %1711 = vmatpush.msra.mxu0 %v624
        %1712 = vmatmul.f32.gmra.mxu0 %v380
        %v1713 = vpop.f32.mrf.mxu0
        %v1714 = vadd.f32 %v1694, %v1713
        %1715 = vdwg.mxu0
        %1716 = vmatpush.msra.mxu0 %v655
        %1717 = vmatpush.msra.mxu0 %v654
        %1718 = vmatpush.msra.mxu0 %v653
        %1719 = vmatpush.msra.mxu0 %v652
        %1720 = vmatpush.msra.mxu0 %v651
        %1721 = vmatpush.msra.mxu0 %v650
        %1722 = vmatpush.msra.mxu0 %v649
        %1723 = vmatpush.msra.mxu0 %v648
        %1724 = vmatpush.msra.mxu0 %v647
        %1725 = vmatpush.msra.mxu0 %v646
        %1726 = vmatpush.msra.mxu0 %v645
        %1727 = vmatpush.msra.mxu0 %v644
        %1728 = vmatpush.msra.mxu0 %v643
        %1729 = vmatpush.msra.mxu0 %v642
        %1730 = vmatpush.msra.mxu0 %v641
        %1731 = vmatpush.msra.mxu0 %v640
        %1732 = vmatmul.f32.gmra.mxu0 %v381
        %v1733 = vpop.f32.mrf.mxu0
        %v1734 = vadd.f32 %v1714, %v1733
        %1735 = vdwg.mxu0
        %1736 = vmatpush.msra.mxu0 %v671
        %1737 = vmatpush.msra.mxu0 %v670
        %1738 = vmatpush.msra.mxu0 %v669
        %1739 = vmatpush.msra.mxu0 %v668
        %1740 = vmatpush.msra.mxu0 %v667
        %1741 = vmatpush.msra.mxu0 %v666
        %1742 = vmatpush.msra.mxu0 %v665
        %1743 = vmatpush.msra.mxu0 %v664
        %1744 = vmatpush.msra.mxu0 %v663
        %1745 = vmatpush.msra.mxu0 %v662
        %1746 = vmatpush.msra.mxu0 %v661
        %1747 = vmatpush.msra.mxu0 %v660
        %1748 = vmatpush.msra.mxu0 %v659
        %1749 = vmatpush.msra.mxu0 %v658
        %1750 = vmatpush.msra.mxu0 %v657
        %1751 = vmatpush.msra.mxu0 %v656
        %1752 = vmatmul.f32.gmra.mxu0 %v382
        %v1753 = vpop.f32.mrf.mxu0
        %v1754 = vadd.f32 %v1734, %v1753
        %1755 = vdwg.mxu0
        %1756 = vmatpush.msra.mxu0 %v687
        %1757 = vmatpush.msra.mxu0 %v686
        %1758 = vmatpush.msra.mxu0 %v685
        %1759 = vmatpush.msra.mxu0 %v684
        %1760 = vmatpush.msra.mxu0 %v683
        %1761 = vmatpush.msra.mxu0 %v682
        %1762 = vmatpush.msra.mxu0 %v681
        %1763 = vmatpush.msra.mxu0 %v680
        %1764 = vmatpush.msra.mxu0 %v679
        %1765 = vmatpush.msra.mxu0 %v678
        %1766 = vmatpush.msra.mxu0 %v677
        %1767 = vmatpush.msra.mxu0 %v676
        %1768 = vmatpush.msra.mxu0 %v675
        %1769 = vmatpush.msra.mxu0 %v674
        %1770 = vmatpush.msra.mxu0 %v673
        %1771 = vmatpush.msra.mxu0 %v672
        %1772 = vmatmul.f32.gmra.mxu0 %v383
        %v1773 = vpop.f32.mrf.mxu0
        %v1774 = vadd.f32 %v1754, %v1773
        %1775 = vdwg.mxu0
        %1776 = vmatpush.msra.mxu0 %v703
        %1777 = vmatpush.msra.mxu0 %v702
        %1778 = vmatpush.msra.mxu0 %v701
        %1779 = vmatpush.msra.mxu0 %v700
        %1780 = vmatpush.msra.mxu0 %v699
        %1781 = vmatpush.msra.mxu0 %v698
        %1782 = vmatpush.msra.mxu0 %v697
        %1783 = vmatpush.msra.mxu0 %v696
        %1784 = vmatpush.msra.mxu0 %v695
        %1785 = vmatpush.msra.mxu0 %v694
        %1786 = vmatpush.msra.mxu0 %v693
        %1787 = vmatpush.msra.mxu0 %v692
        %1788 = vmatpush.msra.mxu0 %v691
        %1789 = vmatpush.msra.mxu0 %v690
        %1790 = vmatpush.msra.mxu0 %v689
        %1791 = vmatpush.msra.mxu0 %v688
        %1792 = vmatmul.f32.gmra.mxu0 %v384
        %v1793 = vpop.f32.mrf.mxu0
        %v1794 = vadd.f32 %v1774, %v1793
        %1795 = vdwg.mxu0
        %1796 = vmatpush.msra.mxu0 %v719
        %1797 = vmatpush.msra.mxu0 %v718
        %1798 = vmatpush.msra.mxu0 %v717
        %1799 = vmatpush.msra.mxu0 %v716
        %1800 = vmatpush.msra.mxu0 %v715
        %1801 = vmatpush.msra.mxu0 %v714
        %1802 = vmatpush.msra.mxu0 %v713
        %1803 = vmatpush.msra.mxu0 %v712
        %1804 = vmatpush.msra.mxu0 %v711
        %1805 = vmatpush.msra.mxu0 %v710
        %1806 = vmatpush.msra.mxu0 %v709
        %1807 = vmatpush.msra.mxu0 %v708
        %1808 = vmatpush.msra.mxu0 %v707
        %1809 = vmatpush.msra.mxu0 %v706
        %1810 = vmatpush.msra.mxu0 %v705
        %1811 = vmatpush.msra.mxu0 %v704
        %1812 = vmatmul.f32.gmra.mxu0 %v385
        %v1813 = vpop.f32.mrf.mxu0
        %v1814 = vadd.f32 %v1794, %v1813
        %1815 = vdwg.mxu0
        %1816 = vmatpush.msra.mxu0 %v735
        %1817 = vmatpush.msra.mxu0 %v734
        %1818 = vmatpush.msra.mxu0 %v733
        %1819 = vmatpush.msra.mxu0 %v732
        %1820 = vmatpush.msra.mxu0 %v731
        %1821 = vmatpush.msra.mxu0 %v730
        %1822 = vmatpush.msra.mxu0 %v729
        %1823 = vmatpush.msra.mxu0 %v728
        %1824 = vmatpush.msra.mxu0 %v727
        %1825 = vmatpush.msra.mxu0 %v726
        %1826 = vmatpush.msra.mxu0 %v725
        %1827 = vmatpush.msra.mxu0 %v724
        %1828 = vmatpush.msra.mxu0 %v723
        %1829 = vmatpush.msra.mxu0 %v722
        %1830 = vmatpush.msra.mxu0 %v721
        %1831 = vmatpush.msra.mxu0 %v720
        %1832 = vmatmul.f32.gmra.mxu0 %v386
        %v1833 = vpop.f32.mrf.mxu0
        %v1834 = vadd.f32 %v1814, %v1833
        %1835 = vdwg.mxu0
        %1836 = vmatpush.msra.mxu0 %v751
        %1837 = vmatpush.msra.mxu0 %v750
        %1838 = vmatpush.msra.mxu0 %v749
        %1839 = vmatpush.msra.mxu0 %v748
        %1840 = vmatpush.msra.mxu0 %v747
        %1841 = vmatpush.msra.mxu0 %v746
        %1842 = vmatpush.msra.mxu0 %v745
        %1843 = vmatpush.msra.mxu0 %v744
        %1844 = vmatpush.msra.mxu0 %v743
        %1845 = vmatpush.msra.mxu0 %v742
        %1846 = vmatpush.msra.mxu0 %v741
        %1847 = vmatpush.msra.mxu0 %v740
        %1848 = vmatpush.msra.mxu0 %v739
        %1849 = vmatpush.msra.mxu0 %v738
        %1850 = vmatpush.msra.mxu0 %v737
        %1851 = vmatpush.msra.mxu0 %v736
        %1852 = vmatmul.f32.gmra.mxu0 %v387
        %v1853 = vpop.f32.mrf.mxu0
        %v1854 = vadd.f32 %v1834, %v1853
        %1855 = vdwg.mxu0
        %1856 = vmatpush.msra.mxu0 %v767
        %1857 = vmatpush.msra.mxu0 %v766
        %1858 = vmatpush.msra.mxu0 %v765
        %1859 = vmatpush.msra.mxu0 %v764
        %1860 = vmatpush.msra.mxu0 %v763
        %1861 = vmatpush.msra.mxu0 %v762
        %1862 = vmatpush.msra.mxu0 %v761
        %1863 = vmatpush.msra.mxu0 %v760
        %1864 = vmatpush.msra.mxu0 %v759
        %1865 = vmatpush.msra.mxu0 %v758
        %1866 = vmatpush.msra.mxu0 %v757
        %1867 = vmatpush.msra.mxu0 %v756
        %1868 = vmatpush.msra.mxu0 %v755
        %1869 = vmatpush.msra.mxu0 %v754
        %1870 = vmatpush.msra.mxu0 %v753
        %1871 = vmatpush.msra.mxu0 %v752
        %1872 = vmatmul.f32.gmra.mxu0 %v388
        %v1873 = vpop.f32.mrf.mxu0
        %v1874 = vadd.f32 %v1854, %v1873
        %1875 = vdwg.mxu0
        %1876 = vmatpush.msra.mxu0 %v783
        %1877 = vmatpush.msra.mxu0 %v782
        %1878 = vmatpush.msra.mxu0 %v781
        %1879 = vmatpush.msra.mxu0 %v780
        %1880 = vmatpush.msra.mxu0 %v779
        %1881 = vmatpush.msra.mxu0 %v778
        %1882 = vmatpush.msra.mxu0 %v777
        %1883 = vmatpush.msra.mxu0 %v776
        %1884 = vmatpush.msra.mxu0 %v775
        %1885 = vmatpush.msra.mxu0 %v774
        %1886 = vmatpush.msra.mxu0 %v773
        %1887 = vmatpush.msra.mxu0 %v772
        %1888 = vmatpush.msra.mxu0 %v771
        %1889 = vmatpush.msra.mxu0 %v770
        %1890 = vmatpush.msra.mxu0 %v769
        %1891 = vmatpush.msra.mxu0 %v768
        %1892 = vmatmul.f32.gmra.mxu0 %v389
        %v1893 = vpop.f32.mrf.mxu0
        %v1894 = vadd.f32 %v1874, %v1893
        %1895 = vdwg.mxu0
        %1896 = vmatpush.msra.mxu0 %v799
        %1897 = vmatpush.msra.mxu0 %v798
        %1898 = vmatpush.msra.mxu0 %v797
        %1899 = vmatpush.msra.mxu0 %v796
        %1900 = vmatpush.msra.mxu0 %v795
        %1901 = vmatpush.msra.mxu0 %v794
        %1902 = vmatpush.msra.mxu0 %v793
        %1903 = vmatpush.msra.mxu0 %v792
        %1904 = vmatpush.msra.mxu0 %v791
        %1905 = vmatpush.msra.mxu0 %v790
        %1906 = vmatpush.msra.mxu0 %v789
        %1907 = vmatpush.msra.mxu0 %v788
        %1908 = vmatpush.msra.mxu0 %v787
        %1909 = vmatpush.msra.mxu0 %v786
        %1910 = vmatpush.msra.mxu0 %v785
        %1911 = vmatpush.msra.mxu0 %v784
        %1912 = vmatmul.f32.gmra.mxu0 %v390
        %v1913 = vpop.f32.mrf.mxu0
        %v1914 = vadd.f32 %v1894, %v1913
        %1915 = vdwg.mxu0
        %1916 = vmatpush.msra.mxu0 %v815
        %1917 = vmatpush.msra.mxu0 %v814
        %1918 = vmatpush.msra.mxu0 %v813
        %1919 = vmatpush.msra.mxu0 %v812
        %1920 = vmatpush.msra.mxu0 %v811
        %1921 = vmatpush.msra.mxu0 %v810
        %1922 = vmatpush.msra.mxu0 %v809
        %1923 = vmatpush.msra.mxu0 %v808
        %1924 = vmatpush.msra.mxu0 %v807
        %1925 = vmatpush.msra.mxu0 %v806
        %1926 = vmatpush.msra.mxu0 %v805
        %1927 = vmatpush.msra.mxu0 %v804
        %1928 = vmatpush.msra.mxu0 %v803
        %1929 = vmatpush.msra.mxu0 %v802
        %1930 = vmatpush.msra.mxu0 %v801
        %1931 = vmatpush.msra.mxu0 %v800
        %1932 = vmatmul.f32.gmra.mxu0 %v391
        %v1933 = vpop.f32.mrf.mxu0
        %v1934 = vadd.f32 %v1914, %v1933
        %1935 = vdwg.mxu0
        %1936 = vmatpush.msra.mxu0 %v831
        %1937 = vmatpush.msra.mxu0 %v830
        %1938 = vmatpush.msra.mxu0 %v829
        %1939 = vmatpush.msra.mxu0 %v828
        %1940 = vmatpush.msra.mxu0 %v827
        %1941 = vmatpush.msra.mxu0 %v826
        %1942 = vmatpush.msra.mxu0 %v825
        %1943 = vmatpush.msra.mxu0 %v824
        %1944 = vmatpush.msra.mxu0 %v823
        %1945 = vmatpush.msra.mxu0 %v822
        %1946 = vmatpush.msra.mxu0 %v821
        %1947 = vmatpush.msra.mxu0 %v820
        %1948 = vmatpush.msra.mxu0 %v819
        %1949 = vmatpush.msra.mxu0 %v818
        %1950 = vmatpush.msra.mxu0 %v817
        %1951 = vmatpush.msra.mxu0 %v816
        %1952 = vmatmul.f32.gmra.mxu0 %v392
        %v1953 = vpop.f32.mrf.mxu0
        %v1954 = vadd.f32 %v1934, %v1953
        %1955 = vdwg.mxu0
        %1956 = vmatpush.msra.mxu0 %v847
        %1957 = vmatpush.msra.mxu0 %v846
        %1958 = vmatpush.msra.mxu0 %v845
        %1959 = vmatpush.msra.mxu0 %v844
        %1960 = vmatpush.msra.mxu0 %v843
        %1961 = vmatpush.msra.mxu0 %v842
        %1962 = vmatpush.msra.mxu0 %v841
        %1963 = vmatpush.msra.mxu0 %v840
        %1964 = vmatpush.msra.mxu0 %v839
        %1965 = vmatpush.msra.mxu0 %v838
        %1966 = vmatpush.msra.mxu0 %v837
        %1967 = vmatpush.msra.mxu0 %v836
        %1968 = vmatpush.msra.mxu0 %v835
        %1969 = vmatpush.msra.mxu0 %v834
        %1970 = vmatpush.msra.mxu0 %v833
        %1971 = vmatpush.msra.mxu0 %v832
        %1972 = vmatmul.f32.gmra.mxu0 %v393
        %v1973 = vpop.f32.mrf.mxu0
        %v1974 = vadd.f32 %v1954, %v1973
        %1975 = vdwg.mxu0
        %1976 = vmatpush.msra.mxu0 %v863
        %1977 = vmatpush.msra.mxu0 %v862
        %1978 = vmatpush.msra.mxu0 %v861
        %1979 = vmatpush.msra.mxu0 %v860
        %1980 = vmatpush.msra.mxu0 %v859
        %1981 = vmatpush.msra.mxu0 %v858
        %1982 = vmatpush.msra.mxu0 %v857
        %1983 = vmatpush.msra.mxu0 %v856
        %1984 = vmatpush.msra.mxu0 %v855
        %1985 = vmatpush.msra.mxu0 %v854
        %1986 = vmatpush.msra.mxu0 %v853
        %1987 = vmatpush.msra.mxu0 %v852
        %1988 = vmatpush.msra.mxu0 %v851
        %1989 = vmatpush.msra.mxu0 %v850
        %1990 = vmatpush.msra.mxu0 %v849
        %1991 = vmatpush.msra.mxu0 %v848
        %1992 = vmatmul.f32.gmra.mxu0 %v394
        %v1993 = vpop.f32.mrf.mxu0
        %v1994 = vadd.f32 %v1974, %v1993
        %1995 = vdwg.mxu0
        %1996 = vmatpush.msra.mxu0 %v879
        %1997 = vmatpush.msra.mxu0 %v878
        %1998 = vmatpush.msra.mxu0 %v877
        %1999 = vmatpush.msra.mxu0 %v876
        %2000 = vmatpush.msra.mxu0 %v875
        %2001 = vmatpush.msra.mxu0 %v874
        %2002 = vmatpush.msra.mxu0 %v873
        %2003 = vmatpush.msra.mxu0 %v872
        %2004 = vmatpush.msra.mxu0 %v871
        %2005 = vmatpush.msra.mxu0 %v870
        %2006 = vmatpush.msra.mxu0 %v869
        %2007 = vmatpush.msra.mxu0 %v868
        %2008 = vmatpush.msra.mxu0 %v867
        %2009 = vmatpush.msra.mxu0 %v866
        %2010 = vmatpush.msra.mxu0 %v865
        %2011 = vmatpush.msra.mxu0 %v864
        %2012 = vmatmul.f32.gmra.mxu0 %v395
        %v2013 = vpop.f32.mrf.mxu0
        %v2014 = vadd.f32 %v1994, %v2013
        %2015 = vdwg.mxu0
        %2016 = vmatpush.msra.mxu0 %v895
        %2017 = vmatpush.msra.mxu0 %v894
        %2018 = vmatpush.msra.mxu0 %v893
        %2019 = vmatpush.msra.mxu0 %v892
        %2020 = vmatpush.msra.mxu0 %v891
        %2021 = vmatpush.msra.mxu0 %v890
        %2022 = vmatpush.msra.mxu0 %v889
        %2023 = vmatpush.msra.mxu0 %v888
        %2024 = vmatpush.msra.mxu0 %v887
        %2025 = vmatpush.msra.mxu0 %v886
        %2026 = vmatpush.msra.mxu0 %v885
        %2027 = vmatpush.msra.mxu0 %v884
        %2028 = vmatpush.msra.mxu0 %v883
        %2029 = vmatpush.msra.mxu0 %v882
        %2030 = vmatpush.msra.mxu0 %v881
        %2031 = vmatpush.msra.mxu0 %v880
        %2032 = vmatmul.f32.gmra.mxu0 %v396
        %v2033 = vpop.f32.mrf.mxu0
        %v2034 = vadd.f32 %v2014, %v2033
        %2035 = vdwg.mxu0
        %2036 = vmatpush.msra.mxu0 %v911
        %2037 = vmatpush.msra.mxu0 %v910
        %2038 = vmatpush.msra.mxu0 %v909
        %2039 = vmatpush.msra.mxu0 %v908
        %2040 = vmatpush.msra.mxu0 %v907
        %2041 = vmatpush.msra.mxu0 %v906
        %2042 = vmatpush.msra.mxu0 %v905
        %2043 = vmatpush.msra.mxu0 %v904
        %2044 = vmatpush.msra.mxu0 %v903
        %2045 = vmatpush.msra.mxu0 %v902
        %2046 = vmatpush.msra.mxu0 %v901
        %2047 = vmatpush.msra.mxu0 %v900
        %2048 = vmatpush.msra.mxu0 %v899
        %2049 = vmatpush.msra.mxu0 %v898
        %2050 = vmatpush.msra.mxu0 %v897
        %2051 = vmatpush.msra.mxu0 %v896
        %2052 = vmatmul.f32.gmra.mxu0 %v397
        %v2053 = vpop.f32.mrf.mxu0
        %v2054 = vadd.f32 %v2034, %v2053
        %2055 = vdwg.mxu0
        %2056 = vmatpush.msra.mxu0 %v927
        %2057 = vmatpush.msra.mxu0 %v926
        %2058 = vmatpush.msra.mxu0 %v925
        %2059 = vmatpush.msra.mxu0 %v924
        %2060 = vmatpush.msra.mxu0 %v923
        %2061 = vmatpush.msra.mxu0 %v922
        %2062 = vmatpush.msra.mxu0 %v921
        %2063 = vmatpush.msra.mxu0 %v920
        %2064 = vmatpush.msra.mxu0 %v919
        %2065 = vmatpush.msra.mxu0 %v918
        %2066 = vmatpush.msra.mxu0 %v917
        %2067 = vmatpush.msra.mxu0 %v916
        %2068 = vmatpush.msra.mxu0 %v915
        %2069 = vmatpush.msra.mxu0 %v914
        %2070 = vmatpush.msra.mxu0 %v913
        %2071 = vmatpush.msra.mxu0 %v912
        %2072 = vmatmul.f32.gmra.mxu0 %v398
        %v2073 = vpop.f32.mrf.mxu0
        %v2074 = vadd.f32 %v2054, %v2073
        %2075 = vdwg.mxu0
        %2076 = vmatpush.msra.mxu0 %v943
        %2077 = vmatpush.msra.mxu0 %v942
        %2078 = vmatpush.msra.mxu0 %v941
        %2079 = vmatpush.msra.mxu0 %v940
        %2080 = vmatpush.msra.mxu0 %v939
        %2081 = vmatpush.msra.mxu0 %v938
        %2082 = vmatpush.msra.mxu0 %v937
        %2083 = vmatpush.msra.mxu0 %v936
        %2084 = vmatpush.msra.mxu0 %v935
        %2085 = vmatpush.msra.mxu0 %v934
        %2086 = vmatpush.msra.mxu0 %v933
        %2087 = vmatpush.msra.mxu0 %v932
        %2088 = vmatpush.msra.mxu0 %v931
        %2089 = vmatpush.msra.mxu0 %v930
        %2090 = vmatpush.msra.mxu0 %v929
        %2091 = vmatpush.msra.mxu0 %v928
        %2092 = vmatmul.f32.gmra.mxu0 %v399
        %v2093 = vpop.f32.mrf.mxu0
        %v2094 = vadd.f32 %v2074, %v2093
        %2095 = vdwg.mxu0
        %2096 = vmatpush.msra.mxu0 %v959
        %2097 = vmatpush.msra.mxu0 %v958
        %2098 = vmatpush.msra.mxu0 %v957
        %2099 = vmatpush.msra.mxu0 %v956
        %2100 = vmatpush.msra.mxu0 %v955
        %2101 = vmatpush.msra.mxu0 %v954
        %2102 = vmatpush.msra.mxu0 %v953
        %2103 = vmatpush.msra.mxu0 %v952
        %2104 = vmatpush.msra.mxu0 %v951
        %2105 = vmatpush.msra.mxu0 %v950
        %2106 = vmatpush.msra.mxu0 %v949
        %2107 = vmatpush.msra.mxu0 %v948
        %2108 = vmatpush.msra.mxu0 %v947
        %2109 = vmatpush.msra.mxu0 %v946
        %2110 = vmatpush.msra.mxu0 %v945
        %2111 = vmatpush.msra.mxu0 %v944
        %2112 = vmatmul.f32.gmra.mxu0 %v400
        %v2113 = vpop.f32.mrf.mxu0
        %v2114 = vadd.f32 %v2094, %v2113
        %2115 = vdwg.mxu0
        %2116 = vmatpush.msra.mxu0 %v975
        %2117 = vmatpush.msra.mxu0 %v974
        %2118 = vmatpush.msra.mxu0 %v973
        %2119 = vmatpush.msra.mxu0 %v972
        %2120 = vmatpush.msra.mxu0 %v971
        %2121 = vmatpush.msra.mxu0 %v970
        %2122 = vmatpush.msra.mxu0 %v969
        %2123 = vmatpush.msra.mxu0 %v968
        %2124 = vmatpush.msra.mxu0 %v967
        %2125 = vmatpush.msra.mxu0 %v966
        %2126 = vmatpush.msra.mxu0 %v965
        %2127 = vmatpush.msra.mxu0 %v964
        %2128 = vmatpush.msra.mxu0 %v963
        %2129 = vmatpush.msra.mxu0 %v962
        %2130 = vmatpush.msra.mxu0 %v961
        %2131 = vmatpush.msra.mxu0 %v960
        %2132 = vmatmul.f32.gmra.mxu0 %v401
        %v2133 = vpop.f32.mrf.mxu0
        %v2134 = vadd.f32 %v2114, %v2133
        %2135 = vdwg.mxu0
        %2136 = vmatpush.msra.mxu0 %v991
        %2137 = vmatpush.msra.mxu0 %v990
        %2138 = vmatpush.msra.mxu0 %v989
        %2139 = vmatpush.msra.mxu0 %v988
        %2140 = vmatpush.msra.mxu0 %v987
        %2141 = vmatpush.msra.mxu0 %v986
        %2142 = vmatpush.msra.mxu0 %v985
        %2143 = vmatpush.msra.mxu0 %v984
        %2144 = vmatpush.msra.mxu0 %v983
        %2145 = vmatpush.msra.mxu0 %v982
        %2146 = vmatpush.msra.mxu0 %v981
        %2147 = vmatpush.msra.mxu0 %v980
        %2148 = vmatpush.msra.mxu0 %v979
        %2149 = vmatpush.msra.mxu0 %v978
        %2150 = vmatpush.msra.mxu0 %v977
        %2151 = vmatpush.msra.mxu0 %v976
        %2152 = vmatmul.f32.gmra.mxu0 %v402
        %v2153 = vpop.f32.mrf.mxu0
        %v2154 = vadd.f32 %v2134, %v2153
        %2155 = vdwg.mxu0
        %2156 = vmatpush.msra.mxu0 %v1007
        %2157 = vmatpush.msra.mxu0 %v1006
        %2158 = vmatpush.msra.mxu0 %v1005
        %2159 = vmatpush.msra.mxu0 %v1004
        %2160 = vmatpush.msra.mxu0 %v1003
        %2161 = vmatpush.msra.mxu0 %v1002
        %2162 = vmatpush.msra.mxu0 %v1001
        %2163 = vmatpush.msra.mxu0 %v1000
        %2164 = vmatpush.msra.mxu0 %v999
        %2165 = vmatpush.msra.mxu0 %v998
        %2166 = vmatpush.msra.mxu0 %v997
        %2167 = vmatpush.msra.mxu0 %v996
        %2168 = vmatpush.msra.mxu0 %v995
        %2169 = vmatpush.msra.mxu0 %v994
        %2170 = vmatpush.msra.mxu0 %v993
        %2171 = vmatpush.msra.mxu0 %v992
        %2172 = vmatmul.f32.gmra.mxu0 %v403
        %v2173 = vpop.f32.mrf.mxu0
        %v2174 = vadd.f32 %v2154, %v2173
        %2175 = vdwg.mxu0
        %2176 = vmatpush.msra.mxu0 %v1023
        %2177 = vmatpush.msra.mxu0 %v1022
        %2178 = vmatpush.msra.mxu0 %v1021
        %2179 = vmatpush.msra.mxu0 %v1020
        %2180 = vmatpush.msra.mxu0 %v1019
        %2181 = vmatpush.msra.mxu0 %v1018
        %2182 = vmatpush.msra.mxu0 %v1017
        %2183 = vmatpush.msra.mxu0 %v1016
        %2184 = vmatpush.msra.mxu0 %v1015
        %2185 = vmatpush.msra.mxu0 %v1014
        %2186 = vmatpush.msra.mxu0 %v1013
        %2187 = vmatpush.msra.mxu0 %v1012
        %2188 = vmatpush.msra.mxu0 %v1011
        %2189 = vmatpush.msra.mxu0 %v1010
        %2190 = vmatpush.msra.mxu0 %v1009
        %2191 = vmatpush.msra.mxu0 %v1008
        %2192 = vmatmul.f32.gmra.mxu0 %v404
        %v2193 = vpop.f32.mrf.mxu0
        %v2194 = vadd.f32 %v2174, %v2193
        %2195 = vdwg.mxu0
        %2196 = vmatpush.msra.mxu0 %v1039
        %2197 = vmatpush.msra.mxu0 %v1038
        %2198 = vmatpush.msra.mxu0 %v1037
        %2199 = vmatpush.msra.mxu0 %v1036
        %2200 = vmatpush.msra.mxu0 %v1035
        %2201 = vmatpush.msra.mxu0 %v1034
        %2202 = vmatpush.msra.mxu0 %v1033
        %2203 = vmatpush.msra.mxu0 %v1032
        %2204 = vmatpush.msra.mxu0 %v1031
        %2205 = vmatpush.msra.mxu0 %v1030
        %2206 = vmatpush.msra.mxu0 %v1029
        %2207 = vmatpush.msra.mxu0 %v1028
        %2208 = vmatpush.msra.mxu0 %v1027
        %2209 = vmatpush.msra.mxu0 %v1026
        %2210 = vmatpush.msra.mxu0 %v1025
        %2211 = vmatpush.msra.mxu0 %v1024
        %2212 = vmatmul.f32.gmra.mxu0 %v405
        %v2213 = vpop.f32.mrf.mxu0
        %v2214 = vadd.f32 %v2194, %v2213
        %2215 = vdwg.mxu0
        %2216 = vmatpush.msra.mxu0 %v1055
        %2217 = vmatpush.msra.mxu0 %v1054
        %2218 = vmatpush.msra.mxu0 %v1053
        %2219 = vmatpush.msra.mxu0 %v1052
        %2220 = vmatpush.msra.mxu0 %v1051
        %2221 = vmatpush.msra.mxu0 %v1050
        %2222 = vmatpush.msra.mxu0 %v1049
        %2223 = vmatpush.msra.mxu0 %v1048
        %2224 = vmatpush.msra.mxu0 %v1047
        %2225 = vmatpush.msra.mxu0 %v1046
        %2226 = vmatpush.msra.mxu0 %v1045
        %2227 = vmatpush.msra.mxu0 %v1044
        %2228 = vmatpush.msra.mxu0 %v1043
        %2229 = vmatpush.msra.mxu0 %v1042
        %2230 = vmatpush.msra.mxu0 %v1041
        %2231 = vmatpush.msra.mxu0 %v1040
        %2232 = vmatmul.f32.gmra.mxu0 %v406
        %v2233 = vpop.f32.mrf.mxu0
        %v2234 = vadd.f32 %v2214, %v2233
        %2235 = vdwg.mxu0
        %2236 = vmatpush.msra.mxu0 %v1071
        %2237 = vmatpush.msra.mxu0 %v1070
        %2238 = vmatpush.msra.mxu0 %v1069
        %2239 = vmatpush.msra.mxu0 %v1068
        %2240 = vmatpush.msra.mxu0 %v1067
        %2241 = vmatpush.msra.mxu0 %v1066
        %2242 = vmatpush.msra.mxu0 %v1065
        %2243 = vmatpush.msra.mxu0 %v1064
        %2244 = vmatpush.msra.mxu0 %v1063
        %2245 = vmatpush.msra.mxu0 %v1062
        %2246 = vmatpush.msra.mxu0 %v1061
        %2247 = vmatpush.msra.mxu0 %v1060
        %2248 = vmatpush.msra.mxu0 %v1059
        %2249 = vmatpush.msra.mxu0 %v1058
        %2250 = vmatpush.msra.mxu0 %v1057
        %2251 = vmatpush.msra.mxu0 %v1056
        %2252 = vmatmul.f32.gmra.mxu0 %v407
        %v2253 = vpop.f32.mrf.mxu0
        %v2254 = vadd.f32 %v2234, %v2253
        %2255 = vdwg.mxu0
        %2256 = vmatpush.msra.mxu0 %v1087
        %2257 = vmatpush.msra.mxu0 %v1086
        %2258 = vmatpush.msra.mxu0 %v1085
        %2259 = vmatpush.msra.mxu0 %v1084
        %2260 = vmatpush.msra.mxu0 %v1083
        %2261 = vmatpush.msra.mxu0 %v1082
        %2262 = vmatpush.msra.mxu0 %v1081
        %2263 = vmatpush.msra.mxu0 %v1080
        %2264 = vmatpush.msra.mxu0 %v1079
        %2265 = vmatpush.msra.mxu0 %v1078
        %2266 = vmatpush.msra.mxu0 %v1077
        %2267 = vmatpush.msra.mxu0 %v1076
        %2268 = vmatpush.msra.mxu0 %v1075
        %2269 = vmatpush.msra.mxu0 %v1074
        %2270 = vmatpush.msra.mxu0 %v1073
        %2271 = vmatpush.msra.mxu0 %v1072
        %2272 = vmatmul.f32.gmra.mxu0 %v408
        %v2273 = vpop.f32.mrf.mxu0
        %v2274 = vadd.f32 %v2254, %v2273
        %2275 = vdwg.mxu0
        %2276 = vmatpush.msra.mxu0 %v1103
        %2277 = vmatpush.msra.mxu0 %v1102
        %2278 = vmatpush.msra.mxu0 %v1101
        %2279 = vmatpush.msra.mxu0 %v1100
        %2280 = vmatpush.msra.mxu0 %v1099
        %2281 = vmatpush.msra.mxu0 %v1098
        %2282 = vmatpush.msra.mxu0 %v1097
        %2283 = vmatpush.msra.mxu0 %v1096
        %2284 = vmatpush.msra.mxu0 %v1095
        %2285 = vmatpush.msra.mxu0 %v1094
        %2286 = vmatpush.msra.mxu0 %v1093
        %2287 = vmatpush.msra.mxu0 %v1092
        %2288 = vmatpush.msra.mxu0 %v1091
        %2289 = vmatpush.msra.mxu0 %v1090
        %2290 = vmatpush.msra.mxu0 %v1089
        %2291 = vmatpush.msra.mxu0 %v1088
        %2292 = vmatmul.f32.gmra.mxu0 %v409
        %v2293 = vpop.f32.mrf.mxu0
        %v2294 = vadd.f32 %v2274, %v2293
        %2295 = vdwg.mxu0
        %2296 = vmatpush.msra.mxu0 %v1119
        %2297 = vmatpush.msra.mxu0 %v1118
        %2298 = vmatpush.msra.mxu0 %v1117
        %2299 = vmatpush.msra.mxu0 %v1116
        %2300 = vmatpush.msra.mxu0 %v1115
        %2301 = vmatpush.msra.mxu0 %v1114
        %2302 = vmatpush.msra.mxu0 %v1113
        %2303 = vmatpush.msra.mxu0 %v1112
        %2304 = vmatpush.msra.mxu0 %v1111
        %2305 = vmatpush.msra.mxu0 %v1110
        %2306 = vmatpush.msra.mxu0 %v1109
        %2307 = vmatpush.msra.mxu0 %v1108
        %2308 = vmatpush.msra.mxu0 %v1107
        %2309 = vmatpush.msra.mxu0 %v1106
        %2310 = vmatpush.msra.mxu0 %v1105
        %2311 = vmatpush.msra.mxu0 %v1104
        %2312 = vmatmul.f32.gmra.mxu0 %v410
        %v2313 = vpop.f32.mrf.mxu0
        %v2314 = vadd.f32 %v2294, %v2313
        %2315 = vdwg.mxu0
        %2316 = vmatpush.msra.mxu0 %v1135
        %2317 = vmatpush.msra.mxu0 %v1134
        %2318 = vmatpush.msra.mxu0 %v1133
        %2319 = vmatpush.msra.mxu0 %v1132
        %2320 = vmatpush.msra.mxu0 %v1131
        %2321 = vmatpush.msra.mxu0 %v1130
        %2322 = vmatpush.msra.mxu0 %v1129
        %2323 = vmatpush.msra.mxu0 %v1128
        %2324 = vmatpush.msra.mxu0 %v1127
        %2325 = vmatpush.msra.mxu0 %v1126
        %2326 = vmatpush.msra.mxu0 %v1125
        %2327 = vmatpush.msra.mxu0 %v1124
        %2328 = vmatpush.msra.mxu0 %v1123
        %2329 = vmatpush.msra.mxu0 %v1122
        %2330 = vmatpush.msra.mxu0 %v1121
        %2331 = vmatpush.msra.mxu0 %v1120
        %2332 = vmatmul.f32.gmra.mxu0 %v411
        %v2333 = vpop.f32.mrf.mxu0
        %v2334 = vadd.f32 %v2314, %v2333
        %2335 = vdwg.mxu0
        %2336 = vmatpush.msra.mxu0 %v1151
        %2337 = vmatpush.msra.mxu0 %v1150
        %2338 = vmatpush.msra.mxu0 %v1149
        %2339 = vmatpush.msra.mxu0 %v1148
        %2340 = vmatpush.msra.mxu0 %v1147
        %2341 = vmatpush.msra.mxu0 %v1146
        %2342 = vmatpush.msra.mxu0 %v1145
        %2343 = vmatpush.msra.mxu0 %v1144
        %2344 = vmatpush.msra.mxu0 %v1143
        %2345 = vmatpush.msra.mxu0 %v1142
        %2346 = vmatpush.msra.mxu0 %v1141
        %2347 = vmatpush.msra.mxu0 %v1140
        %2348 = vmatpush.msra.mxu0 %v1139
        %2349 = vmatpush.msra.mxu0 %v1138
        %2350 = vmatpush.msra.mxu0 %v1137
        %2351 = vmatpush.msra.mxu0 %v1136
        %2352 = vmatmul.f32.gmra.mxu0 %v412
        %v2353 = vpop.f32.mrf.mxu0
        %v2354 = vadd.f32 %v2334, %v2353
        %2355 = vdwg.mxu0
        %2356 = vmatpush.msra.mxu0 %v1167
        %2357 = vmatpush.msra.mxu0 %v1166
        %2358 = vmatpush.msra.mxu0 %v1165
        %2359 = vmatpush.msra.mxu0 %v1164
        %2360 = vmatpush.msra.mxu0 %v1163
        %2361 = vmatpush.msra.mxu0 %v1162
        %2362 = vmatpush.msra.mxu0 %v1161
        %2363 = vmatpush.msra.mxu0 %v1160
        %2364 = vmatpush.msra.mxu0 %v1159
        %2365 = vmatpush.msra.mxu0 %v1158
        %2366 = vmatpush.msra.mxu0 %v1157
        %2367 = vmatpush.msra.mxu0 %v1156
        %2368 = vmatpush.msra.mxu0 %v1155
        %2369 = vmatpush.msra.mxu0 %v1154
        %2370 = vmatpush.msra.mxu0 %v1153
        %2371 = vmatpush.msra.mxu0 %v1152
        %2372 = vmatmul.f32.gmra.mxu0 %v413
        %v2373 = vpop.f32.mrf.mxu0
        %v2374 = vadd.f32 %v2354, %v2373
        %2375 = vdwg.mxu0
        %2376 = vmatpush.msra.mxu0 %v1183
        %2377 = vmatpush.msra.mxu0 %v1182
        %2378 = vmatpush.msra.mxu0 %v1181
        %2379 = vmatpush.msra.mxu0 %v1180
        %2380 = vmatpush.msra.mxu0 %v1179
        %2381 = vmatpush.msra.mxu0 %v1178
        %2382 = vmatpush.msra.mxu0 %v1177
        %2383 = vmatpush.msra.mxu0 %v1176
        %2384 = vmatpush.msra.mxu0 %v1175
        %2385 = vmatpush.msra.mxu0 %v1174
        %2386 = vmatpush.msra.mxu0 %v1173
        %2387 = vmatpush.msra.mxu0 %v1172
        %2388 = vmatpush.msra.mxu0 %v1171
        %2389 = vmatpush.msra.mxu0 %v1170
        %2390 = vmatpush.msra.mxu0 %v1169
        %2391 = vmatpush.msra.mxu0 %v1168
        %2392 = vmatmul.f32.gmra.mxu0 %v414
        %v2393 = vpop.f32.mrf.mxu0
        %v2394 = vadd.f32 %v2374, %v2393
        %2395 = vdwg.mxu0
        %2396 = vmatpush.msra.mxu0 %v1199
        %2397 = vmatpush.msra.mxu0 %v1198
        %2398 = vmatpush.msra.mxu0 %v1197
        %2399 = vmatpush.msra.mxu0 %v1196
        %2400 = vmatpush.msra.mxu0 %v1195
        %2401 = vmatpush.msra.mxu0 %v1194
        %2402 = vmatpush.msra.mxu0 %v1193
        %2403 = vmatpush.msra.mxu0 %v1192
        %2404 = vmatpush.msra.mxu0 %v1191
        %2405 = vmatpush.msra.mxu0 %v1190
        %2406 = vmatpush.msra.mxu0 %v1189
        %2407 = vmatpush.msra.mxu0 %v1188
        %2408 = vmatpush.msra.mxu0 %v1187
        %2409 = vmatpush.msra.mxu0 %v1186
        %2410 = vmatpush.msra.mxu0 %v1185
        %2411 = vmatpush.msra.mxu0 %v1184
        %2412 = vmatmul.f32.gmra.mxu0 %v415
        %v2413 = vpop.f32.mrf.mxu0
        %v2414 = vadd.f32 %v2394, %v2413
        %2415 = vdwg.mxu0
        %2416 = vmatpush.msra.mxu0 %v1215
        %2417 = vmatpush.msra.mxu0 %v1214
        %2418 = vmatpush.msra.mxu0 %v1213
        %2419 = vmatpush.msra.mxu0 %v1212
        %2420 = vmatpush.msra.mxu0 %v1211
        %2421 = vmatpush.msra.mxu0 %v1210
        %2422 = vmatpush.msra.mxu0 %v1209
        %2423 = vmatpush.msra.mxu0 %v1208
        %2424 = vmatpush.msra.mxu0 %v1207
        %2425 = vmatpush.msra.mxu0 %v1206
        %2426 = vmatpush.msra.mxu0 %v1205
        %2427 = vmatpush.msra.mxu0 %v1204
        %2428 = vmatpush.msra.mxu0 %v1203
        %2429 = vmatpush.msra.mxu0 %v1202
        %2430 = vmatpush.msra.mxu0 %v1201
        %2431 = vmatpush.msra.mxu0 %v1200
        %2432 = vmatmul.f32.gmra.mxu0 %v416
        %v2433 = vpop.f32.mrf.mxu0
        %v2434 = vadd.f32 %v2414, %v2433
        %2435 = vdwg.mxu0
        %2436 = vmatpush.msra.mxu0 %v1231
        %2437 = vmatpush.msra.mxu0 %v1230
        %2438 = vmatpush.msra.mxu0 %v1229
        %2439 = vmatpush.msra.mxu0 %v1228
        %2440 = vmatpush.msra.mxu0 %v1227
        %2441 = vmatpush.msra.mxu0 %v1226
        %2442 = vmatpush.msra.mxu0 %v1225
        %2443 = vmatpush.msra.mxu0 %v1224
        %2444 = vmatpush.msra.mxu0 %v1223
        %2445 = vmatpush.msra.mxu0 %v1222
        %2446 = vmatpush.msra.mxu0 %v1221
        %2447 = vmatpush.msra.mxu0 %v1220
        %2448 = vmatpush.msra.mxu0 %v1219
        %2449 = vmatpush.msra.mxu0 %v1218
        %2450 = vmatpush.msra.mxu0 %v1217
        %2451 = vmatpush.msra.mxu0 %v1216
        %2452 = vmatmul.f32.gmra.mxu0 %v417
        %v2453 = vpop.f32.mrf.mxu0
        %v2454 = vadd.f32 %v2434, %v2453
        %2455 = vdwg.mxu0
        %2456 = vmatpush.msra.mxu0 %v1247
        %2457 = vmatpush.msra.mxu0 %v1246
        %2458 = vmatpush.msra.mxu0 %v1245
        %2459 = vmatpush.msra.mxu0 %v1244
        %2460 = vmatpush.msra.mxu0 %v1243
        %2461 = vmatpush.msra.mxu0 %v1242
        %2462 = vmatpush.msra.mxu0 %v1241
        %2463 = vmatpush.msra.mxu0 %v1240
        %2464 = vmatpush.msra.mxu0 %v1239
        %2465 = vmatpush.msra.mxu0 %v1238
        %2466 = vmatpush.msra.mxu0 %v1237
        %2467 = vmatpush.msra.mxu0 %v1236
        %2468 = vmatpush.msra.mxu0 %v1235
        %2469 = vmatpush.msra.mxu0 %v1234
        %2470 = vmatpush.msra.mxu0 %v1233
        %2471 = vmatpush.msra.mxu0 %v1232
        %2472 = vmatmul.f32.gmra.mxu0 %v418
        %v2473 = vpop.f32.mrf.mxu0
        %v2474 = vadd.f32 %v2454, %v2473
        %2475 = vdwg.mxu0
        %2476 = vmatpush.msra.mxu0 %v1263
        %2477 = vmatpush.msra.mxu0 %v1262
        %2478 = vmatpush.msra.mxu0 %v1261
        %2479 = vmatpush.msra.mxu0 %v1260
        %2480 = vmatpush.msra.mxu0 %v1259
        %2481 = vmatpush.msra.mxu0 %v1258
        %2482 = vmatpush.msra.mxu0 %v1257
        %2483 = vmatpush.msra.mxu0 %v1256
        %2484 = vmatpush.msra.mxu0 %v1255
        %2485 = vmatpush.msra.mxu0 %v1254
        %2486 = vmatpush.msra.mxu0 %v1253
        %2487 = vmatpush.msra.mxu0 %v1252
        %2488 = vmatpush.msra.mxu0 %v1251
        %2489 = vmatpush.msra.mxu0 %v1250
        %2490 = vmatpush.msra.mxu0 %v1249
        %2491 = vmatpush.msra.mxu0 %v1248
        %2492 = vmatmul.f32.gmra.mxu0 %v419
        %v2493 = vpop.f32.mrf.mxu0
        %v2494 = vadd.f32 %v2474, %v2493
        %2495 = vdwg.mxu0
        %2496 = vmatpush.msra.mxu0 %v1279
        %2497 = vmatpush.msra.mxu0 %v1278
        %2498 = vmatpush.msra.mxu0 %v1277
        %2499 = vmatpush.msra.mxu0 %v1276
        %2500 = vmatpush.msra.mxu0 %v1275
        %2501 = vmatpush.msra.mxu0 %v1274
        %2502 = vmatpush.msra.mxu0 %v1273
        %2503 = vmatpush.msra.mxu0 %v1272
        %2504 = vmatpush.msra.mxu0 %v1271
        %2505 = vmatpush.msra.mxu0 %v1270
        %2506 = vmatpush.msra.mxu0 %v1269
        %2507 = vmatpush.msra.mxu0 %v1268
        %2508 = vmatpush.msra.mxu0 %v1267
        %2509 = vmatpush.msra.mxu0 %v1266
        %2510 = vmatpush.msra.mxu0 %v1265
        %2511 = vmatpush.msra.mxu0 %v1264
        %2512 = vmatmul.f32.gmra.mxu0 %v420
        %v2513 = vpop.f32.mrf.mxu0
        %v2514 = vadd.f32 %v2494, %v2513
        %2515 = vdwg.mxu0
        %2516 = vmatpush.msra.mxu0 %v1295
        %2517 = vmatpush.msra.mxu0 %v1294
        %2518 = vmatpush.msra.mxu0 %v1293
        %2519 = vmatpush.msra.mxu0 %v1292
        %2520 = vmatpush.msra.mxu0 %v1291
        %2521 = vmatpush.msra.mxu0 %v1290
        %2522 = vmatpush.msra.mxu0 %v1289
        %2523 = vmatpush.msra.mxu0 %v1288
        %2524 = vmatpush.msra.mxu0 %v1287
        %2525 = vmatpush.msra.mxu0 %v1286
        %2526 = vmatpush.msra.mxu0 %v1285
        %2527 = vmatpush.msra.mxu0 %v1284
        %2528 = vmatpush.msra.mxu0 %v1283
        %2529 = vmatpush.msra.mxu0 %v1282
        %2530 = vmatpush.msra.mxu0 %v1281
        %2531 = vmatpush.msra.mxu0 %v1280
        %2532 = vmatmul.f32.gmra.mxu0 %v421
        %v2533 = vpop.f32.mrf.mxu0
        %v2534 = vadd.f32 %v2514, %v2533
        %2535 = vdwg.mxu0
        %2536 = vmatpush.msra.mxu0 %v1311
        %2537 = vmatpush.msra.mxu0 %v1310
        %2538 = vmatpush.msra.mxu0 %v1309
        %2539 = vmatpush.msra.mxu0 %v1308
        %2540 = vmatpush.msra.mxu0 %v1307
        %2541 = vmatpush.msra.mxu0 %v1306
        %2542 = vmatpush.msra.mxu0 %v1305
        %2543 = vmatpush.msra.mxu0 %v1304
        %2544 = vmatpush.msra.mxu0 %v1303
        %2545 = vmatpush.msra.mxu0 %v1302
        %2546 = vmatpush.msra.mxu0 %v1301
        %2547 = vmatpush.msra.mxu0 %v1300
        %2548 = vmatpush.msra.mxu0 %v1299
        %2549 = vmatpush.msra.mxu0 %v1298
        %2550 = vmatpush.msra.mxu0 %v1297
        %2551 = vmatpush.msra.mxu0 %v1296
        %2552 = vmatmul.f32.gmra.mxu0 %v422
        %v2553 = vpop.f32.mrf.mxu0
        %v2554 = vadd.f32 %v2534, %v2553
        %2555 = vdwg.mxu0
        %2556 = vmatpush.msra.mxu0 %v1327
        %2557 = vmatpush.msra.mxu0 %v1326
        %2558 = vmatpush.msra.mxu0 %v1325
        %2559 = vmatpush.msra.mxu0 %v1324
        %2560 = vmatpush.msra.mxu0 %v1323
        %2561 = vmatpush.msra.mxu0 %v1322
        %2562 = vmatpush.msra.mxu0 %v1321
        %2563 = vmatpush.msra.mxu0 %v1320
        %2564 = vmatpush.msra.mxu0 %v1319
        %2565 = vmatpush.msra.mxu0 %v1318
        %2566 = vmatpush.msra.mxu0 %v1317
        %2567 = vmatpush.msra.mxu0 %v1316
        %2568 = vmatpush.msra.mxu0 %v1315
        %2569 = vmatpush.msra.mxu0 %v1314
        %2570 = vmatpush.msra.mxu0 %v1313
        %2571 = vmatpush.msra.mxu0 %v1312
        %2572 = vmatmul.f32.gmra.mxu0 %v423
        %v2573 = vpop.f32.mrf.mxu0
        %v2574 = vadd.f32 %v2554, %v2573
        %2575 = vdwg.mxu0
        %2576 = vmatpush.msra.mxu0 %v1343
        %2577 = vmatpush.msra.mxu0 %v1342
        %2578 = vmatpush.msra.mxu0 %v1341
        %2579 = vmatpush.msra.mxu0 %v1340
        %2580 = vmatpush.msra.mxu0 %v1339
        %2581 = vmatpush.msra.mxu0 %v1338
        %2582 = vmatpush.msra.mxu0 %v1337
        %2583 = vmatpush.msra.mxu0 %v1336
        %2584 = vmatpush.msra.mxu0 %v1335
        %2585 = vmatpush.msra.mxu0 %v1334
        %2586 = vmatpush.msra.mxu0 %v1333
        %2587 = vmatpush.msra.mxu0 %v1332
        %2588 = vmatpush.msra.mxu0 %v1331
        %2589 = vmatpush.msra.mxu0 %v1330
        %2590 = vmatpush.msra.mxu0 %v1329
        %2591 = vmatpush.msra.mxu0 %v1328
        %2592 = vmatmul.f32.gmra.mxu0 %v424
        %v2593 = vpop.f32.mrf.mxu0
        %v2594 = vadd.f32 %v2574, %v2593
        %2595 = vdwg.mxu0
        %2596 = vmatpush.msra.mxu0 %v1359
        %2597 = vmatpush.msra.mxu0 %v1358
        %2598 = vmatpush.msra.mxu0 %v1357
        %2599 = vmatpush.msra.mxu0 %v1356
        %2600 = vmatpush.msra.mxu0 %v1355
        %2601 = vmatpush.msra.mxu0 %v1354
        %2602 = vmatpush.msra.mxu0 %v1353
        %2603 = vmatpush.msra.mxu0 %v1352
        %2604 = vmatpush.msra.mxu0 %v1351
        %2605 = vmatpush.msra.mxu0 %v1350
        %2606 = vmatpush.msra.mxu0 %v1349
        %2607 = vmatpush.msra.mxu0 %v1348
        %2608 = vmatpush.msra.mxu0 %v1347
        %2609 = vmatpush.msra.mxu0 %v1346
        %2610 = vmatpush.msra.mxu0 %v1345
        %2611 = vmatpush.msra.mxu0 %v1344
        %2612 = vmatmul.f32.gmra.mxu0 %v425
        %v2613 = vpop.f32.mrf.mxu0
        %v2614 = vadd.f32 %v2594, %v2613
        %2615 = vdwg.mxu0
        %2616 = vmatpush.msra.mxu0 %v1375
        %2617 = vmatpush.msra.mxu0 %v1374
        %2618 = vmatpush.msra.mxu0 %v1373
        %2619 = vmatpush.msra.mxu0 %v1372
        %2620 = vmatpush.msra.mxu0 %v1371
        %2621 = vmatpush.msra.mxu0 %v1370
        %2622 = vmatpush.msra.mxu0 %v1369
        %2623 = vmatpush.msra.mxu0 %v1368
        %2624 = vmatpush.msra.mxu0 %v1367
        %2625 = vmatpush.msra.mxu0 %v1366
        %2626 = vmatpush.msra.mxu0 %v1365
        %2627 = vmatpush.msra.mxu0 %v1364
        %2628 = vmatpush.msra.mxu0 %v1363
        %2629 = vmatpush.msra.mxu0 %v1362
        %2630 = vmatpush.msra.mxu0 %v1361
        %2631 = vmatpush.msra.mxu0 %v1360
        %2632 = vmatmul.f32.gmra.mxu0 %v426
        %v2633 = vpop.f32.mrf.mxu0
        %v2634 = vadd.f32 %v2614, %v2633
        %2635 = vdwg.mxu0
        %2636 = vmatpush.msra.mxu0 %v1391
        %2637 = vmatpush.msra.mxu0 %v1390
        %2638 = vmatpush.msra.mxu0 %v1389
        %2639 = vmatpush.msra.mxu0 %v1388
        %2640 = vmatpush.msra.mxu0 %v1387
        %2641 = vmatpush.msra.mxu0 %v1386
        %2642 = vmatpush.msra.mxu0 %v1385
        %2643 = vmatpush.msra.mxu0 %v1384
        %2644 = vmatpush.msra.mxu0 %v1383
        %2645 = vmatpush.msra.mxu0 %v1382
        %2646 = vmatpush.msra.mxu0 %v1381
        %2647 = vmatpush.msra.mxu0 %v1380
        %2648 = vmatpush.msra.mxu0 %v1379
        %2649 = vmatpush.msra.mxu0 %v1378
        %2650 = vmatpush.msra.mxu0 %v1377
        %2651 = vmatpush.msra.mxu0 %v1376
        %2652 = vmatmul.f32.gmra.mxu0 %v427
        %v2653 = vpop.f32.mrf.mxu0
        %v2654 = vadd.f32 %v2634, %v2653
        %2655 = vdwg.mxu0
        %2656 = vmatpush.msra.mxu0 %v1407
        %2657 = vmatpush.msra.mxu0 %v1406
        %2658 = vmatpush.msra.mxu0 %v1405
        %2659 = vmatpush.msra.mxu0 %v1404
        %2660 = vmatpush.msra.mxu0 %v1403
        %2661 = vmatpush.msra.mxu0 %v1402
        %2662 = vmatpush.msra.mxu0 %v1401
        %2663 = vmatpush.msra.mxu0 %v1400
        %2664 = vmatpush.msra.mxu0 %v1399
        %2665 = vmatpush.msra.mxu0 %v1398
        %2666 = vmatpush.msra.mxu0 %v1397
        %2667 = vmatpush.msra.mxu0 %v1396
        %2668 = vmatpush.msra.mxu0 %v1395
        %2669 = vmatpush.msra.mxu0 %v1394
        %2670 = vmatpush.msra.mxu0 %v1393
        %2671 = vmatpush.msra.mxu0 %v1392
        %2672 = vmatmul.f32.gmra.mxu0 %v428
        %v2673 = vpop.f32.mrf.mxu0
        %v2674 = vadd.f32 %v2654, %v2673
        %2675 = vdwg.mxu0
        %2676 = vmatpush.msra.mxu0 %v1423
        %2677 = vmatpush.msra.mxu0 %v1422
        %2678 = vmatpush.msra.mxu0 %v1421
        %2679 = vmatpush.msra.mxu0 %v1420
        %2680 = vmatpush.msra.mxu0 %v1419
        %2681 = vmatpush.msra.mxu0 %v1418
        %2682 = vmatpush.msra.mxu0 %v1417
        %2683 = vmatpush.msra.mxu0 %v1416
        %2684 = vmatpush.msra.mxu0 %v1415
        %2685 = vmatpush.msra.mxu0 %v1414
        %2686 = vmatpush.msra.mxu0 %v1413
        %2687 = vmatpush.msra.mxu0 %v1412
        %2688 = vmatpush.msra.mxu0 %v1411
        %2689 = vmatpush.msra.mxu0 %v1410
        %2690 = vmatpush.msra.mxu0 %v1409
        %2691 = vmatpush.msra.mxu0 %v1408
        %2692 = vmatmul.f32.gmra.mxu0 %v429
        %v2693 = vpop.f32.mrf.mxu0
        %v2694 = vadd.f32 %v2674, %v2693
        %2695 = vdwg.mxu0
        %2696 = vmatpush.msra.mxu0 %v1439
        %2697 = vmatpush.msra.mxu0 %v1438
        %2698 = vmatpush.msra.mxu0 %v1437
        %2699 = vmatpush.msra.mxu0 %v1436
        %2700 = vmatpush.msra.mxu0 %v1435
        %2701 = vmatpush.msra.mxu0 %v1434
        %2702 = vmatpush.msra.mxu0 %v1433
        %2703 = vmatpush.msra.mxu0 %v1432
        %2704 = vmatpush.msra.mxu0 %v1431
        %2705 = vmatpush.msra.mxu0 %v1430
        %2706 = vmatpush.msra.mxu0 %v1429
        %2707 = vmatpush.msra.mxu0 %v1428
        %2708 = vmatpush.msra.mxu0 %v1427
        %2709 = vmatpush.msra.mxu0 %v1426
        %2710 = vmatpush.msra.mxu0 %v1425
        %2711 = vmatpush.msra.mxu0 %v1424
        %2712 = vmatmul.f32.gmra.mxu0 %v430
        %v2713 = vpop.f32.mrf.mxu0
        %v2714 = vadd.f32 %v2694, %v2713
        %2715 = vdwg.mxu0
        %2716 = vmatpush.msra.mxu0 %v1455
        %2717 = vmatpush.msra.mxu0 %v1454
        %2718 = vmatpush.msra.mxu0 %v1453
        %2719 = vmatpush.msra.mxu0 %v1452
        %2720 = vmatpush.msra.mxu0 %v1451
        %2721 = vmatpush.msra.mxu0 %v1450
        %2722 = vmatpush.msra.mxu0 %v1449
        %2723 = vmatpush.msra.mxu0 %v1448
        %2724 = vmatpush.msra.mxu0 %v1447
        %2725 = vmatpush.msra.mxu0 %v1446
        %2726 = vmatpush.msra.mxu0 %v1445
        %2727 = vmatpush.msra.mxu0 %v1444
        %2728 = vmatpush.msra.mxu0 %v1443
        %2729 = vmatpush.msra.mxu0 %v1442
        %2730 = vmatpush.msra.mxu0 %v1441
        %2731 = vmatpush.msra.mxu0 %v1440
        %2732 = vmatmul.f32.gmra.mxu0 %v431
        %v2733 = vpop.f32.mrf.mxu0
        %v2734 = vadd.f32 %v2714, %v2733
        %2735 = vdwg.mxu0
        %v2736 = vadd.f32 %v367, %v2734
        %2737 = vst [vmem:[#allocation2] sm:$0xff] %v2736
        %v2738 = vld [vmem:[#allocation3] sm:$0xff]
        %v2739 = vld [vmem:[%s310] sm:$0xff]
        %v2740 = vld [vmem:[%s310 + $0x8] sm:$0xff]
        %v2741 = vld [vmem:[%s310 + $0x10] sm:$0xff]
        %v2742 = vld [vmem:[%s310 + $0x18] sm:$0xff]
        %v2743 = vld [vmem:[%s310 + $0x20] sm:$0xff]
        %v2744 = vld [vmem:[%s310 + $0x28] sm:$0xff]
        %v2745 = vld [vmem:[%s310 + $0x30] sm:$0xff]
        %v2746 = vld [vmem:[%s310 + $0x38] sm:$0xff]
        %v2747 = vld [vmem:[%s310 + $0x40] sm:$0xff]
        %v2748 = vld [vmem:[%s310 + $0x48] sm:$0xff]
        %v2749 = vld [vmem:[%s310 + $0x50] sm:$0xff]
        %v2750 = vld [vmem:[%s310 + $0x58] sm:$0xff]
        %v2751 = vld [vmem:[%s310 + $0x60] sm:$0xff]
        %v2752 = vld [vmem:[%s310 + $0x68] sm:$0xff]
        %v2753 = vld [vmem:[%s310 + $0x70] sm:$0xff]
        %v2754 = vld [vmem:[%s310 + $0x78] sm:$0xff]
        %v2755 = vld [vmem:[%s310 + $0x80] sm:$0xff]
        %v2756 = vld [vmem:[%s310 + $0x88] sm:$0xff]
        %v2757 = vld [vmem:[%s310 + $0x90] sm:$0xff]
        %v2758 = vld [vmem:[%s310 + $0x98] sm:$0xff]
        %v2759 = vld [vmem:[%s310 + $0xa0] sm:$0xff]
        %v2760 = vld [vmem:[%s310 + $0xa8] sm:$0xff]
        %v2761 = vld [vmem:[%s310 + $0xb0] sm:$0xff]
        %v2762 = vld [vmem:[%s310 + $0xb8] sm:$0xff]
        %v2763 = vld [vmem:[%s310 + $0xc0] sm:$0xff]
        %v2764 = vld [vmem:[%s310 + $0xc8] sm:$0xff]
        %v2765 = vld [vmem:[%s310 + $0xd0] sm:$0xff]
        %v2766 = vld [vmem:[%s310 + $0xd8] sm:$0xff]
        %v2767 = vld [vmem:[%s310 + $0xe0] sm:$0xff]
        %v2768 = vld [vmem:[%s310 + $0xe8] sm:$0xff]
        %v2769 = vld [vmem:[%s310 + $0xf0] sm:$0xff]
        %v2770 = vld [vmem:[%s310 + $0xf8] sm:$0xff]
        %v2771 = vld [vmem:[%s310 + $0x100] sm:$0xff]
        %v2772 = vld [vmem:[%s310 + $0x108] sm:$0xff]
        %v2773 = vld [vmem:[%s310 + $0x110] sm:$0xff]
        %v2774 = vld [vmem:[%s310 + $0x118] sm:$0xff]
        %v2775 = vld [vmem:[%s310 + $0x120] sm:$0xff]
        %v2776 = vld [vmem:[%s310 + $0x128] sm:$0xff]
        %v2777 = vld [vmem:[%s310 + $0x130] sm:$0xff]
        %v2778 = vld [vmem:[%s310 + $0x138] sm:$0xff]
        %v2779 = vld [vmem:[%s310 + $0x140] sm:$0xff]
        %v2780 = vld [vmem:[%s310 + $0x148] sm:$0xff]
        %v2781 = vld [vmem:[%s310 + $0x150] sm:$0xff]
        %v2782 = vld [vmem:[%s310 + $0x158] sm:$0xff]
        %v2783 = vld [vmem:[%s310 + $0x160] sm:$0xff]
        %v2784 = vld [vmem:[%s310 + $0x168] sm:$0xff]
        %v2785 = vld [vmem:[%s310 + $0x170] sm:$0xff]
        %v2786 = vld [vmem:[%s310 + $0x178] sm:$0xff]
        %v2787 = vld [vmem:[%s310 + $0x180] sm:$0xff]
        %v2788 = vld [vmem:[%s310 + $0x188] sm:$0xff]
        %v2789 = vld [vmem:[%s310 + $0x190] sm:$0xff]
        %v2790 = vld [vmem:[%s310 + $0x198] sm:$0xff]
        %v2791 = vld [vmem:[%s310 + $0x1a0] sm:$0xff]
        %v2792 = vld [vmem:[%s310 + $0x1a8] sm:$0xff]
        %v2793 = vld [vmem:[%s310 + $0x1b0] sm:$0xff]
        %v2794 = vld [vmem:[%s310 + $0x1b8] sm:$0xff]
        %v2795 = vld [vmem:[%s310 + $0x1c0] sm:$0xff]
        %v2796 = vld [vmem:[%s310 + $0x1c8] sm:$0xff]
        %v2797 = vld [vmem:[%s310 + $0x1d0] sm:$0xff]
        %v2798 = vld [vmem:[%s310 + $0x1d8] sm:$0xff]
        %v2799 = vld [vmem:[%s310 + $0x1e0] sm:$0xff]
        %v2800 = vld [vmem:[%s310 + $0x1e8] sm:$0xff]
        %v2801 = vld [vmem:[%s310 + $0x1f0] sm:$0xff]
        %v2802 = vld [vmem:[%s310 + $0x1f8] sm:$0xff]
        %v2803 = vld [vmem:[#allocation9] sm:$0xff]
        %v2804 = vld [vmem:[#allocation9 + $0x8] sm:$0xff]
        %v2805 = vld [vmem:[#allocation9 + $0x10] sm:$0xff]
        %v2806 = vld [vmem:[#allocation9 + $0x18] sm:$0xff]
        %v2807 = vld [vmem:[#allocation9 + $0x20] sm:$0xff]
        %v2808 = vld [vmem:[#allocation9 + $0x28] sm:$0xff]
        %v2809 = vld [vmem:[#allocation9 + $0x30] sm:$0xff]
        %v2810 = vld [vmem:[#allocation9 + $0x38] sm:$0xff]
        %v2811 = vld [vmem:[#allocation9 + $0x40] sm:$0xff]
        %v2812 = vld [vmem:[#allocation9 + $0x48] sm:$0xff]
        %v2813 = vld [vmem:[#allocation9 + $0x50] sm:$0xff]
        %v2814 = vld [vmem:[#allocation9 + $0x58] sm:$0xff]
        %v2815 = vld [vmem:[#allocation9 + $0x60] sm:$0xff]
        %v2816 = vld [vmem:[#allocation9 + $0x68] sm:$0xff]
        %v2817 = vld [vmem:[#allocation9 + $0x70] sm:$0xff]
        %v2818 = vld [vmem:[#allocation9 + $0x78] sm:$0xff]
        %v2819 = vld [vmem:[#allocation9 + $0x80] sm:$0xff]
        %v2820 = vld [vmem:[#allocation9 + $0x88] sm:$0xff]
        %v2821 = vld [vmem:[#allocation9 + $0x90] sm:$0xff]
        %v2822 = vld [vmem:[#allocation9 + $0x98] sm:$0xff]
        %v2823 = vld [vmem:[#allocation9 + $0xa0] sm:$0xff]
        %v2824 = vld [vmem:[#allocation9 + $0xa8] sm:$0xff]
        %v2825 = vld [vmem:[#allocation9 + $0xb0] sm:$0xff]
        %v2826 = vld [vmem:[#allocation9 + $0xb8] sm:$0xff]
        %v2827 = vld [vmem:[#allocation9 + $0xc0] sm:$0xff]
        %v2828 = vld [vmem:[#allocation9 + $0xc8] sm:$0xff]
        %v2829 = vld [vmem:[#allocation9 + $0xd0] sm:$0xff]
        %v2830 = vld [vmem:[#allocation9 + $0xd8] sm:$0xff]
        %v2831 = vld [vmem:[#allocation9 + $0xe0] sm:$0xff]
        %v2832 = vld [vmem:[#allocation9 + $0xe8] sm:$0xff]
        %v2833 = vld [vmem:[#allocation9 + $0xf0] sm:$0xff]
        %v2834 = vld [vmem:[#allocation9 + $0xf8] sm:$0xff]
        %v2835 = vld [vmem:[#allocation9 + $0x100] sm:$0xff]
        %v2836 = vld [vmem:[#allocation9 + $0x108] sm:$0xff]
        %v2837 = vld [vmem:[#allocation9 + $0x110] sm:$0xff]
        %v2838 = vld [vmem:[#allocation9 + $0x118] sm:$0xff]
        %v2839 = vld [vmem:[#allocation9 + $0x120] sm:$0xff]
        %v2840 = vld [vmem:[#allocation9 + $0x128] sm:$0xff]
        %v2841 = vld [vmem:[#allocation9 + $0x130] sm:$0xff]
        %v2842 = vld [vmem:[#allocation9 + $0x138] sm:$0xff]
        %v2843 = vld [vmem:[#allocation9 + $0x140] sm:$0xff]
        %v2844 = vld [vmem:[#allocation9 + $0x148] sm:$0xff]
        %v2845 = vld [vmem:[#allocation9 + $0x150] sm:$0xff]
        %v2846 = vld [vmem:[#allocation9 + $0x158] sm:$0xff]
        %v2847 = vld [vmem:[#allocation9 + $0x160] sm:$0xff]
        %v2848 = vld [vmem:[#allocation9 + $0x168] sm:$0xff]
        %v2849 = vld [vmem:[#allocation9 + $0x170] sm:$0xff]
        %v2850 = vld [vmem:[#allocation9 + $0x178] sm:$0xff]
        %v2851 = vld [vmem:[#allocation9 + $0x180] sm:$0xff]
        %v2852 = vld [vmem:[#allocation9 + $0x188] sm:$0xff]
        %v2853 = vld [vmem:[#allocation9 + $0x190] sm:$0xff]
        %v2854 = vld [vmem:[#allocation9 + $0x198] sm:$0xff]
        %v2855 = vld [vmem:[#allocation9 + $0x1a0] sm:$0xff]
        %v2856 = vld [vmem:[#allocation9 + $0x1a8] sm:$0xff]
        %v2857 = vld [vmem:[#allocation9 + $0x1b0] sm:$0xff]
        %v2858 = vld [vmem:[#allocation9 + $0x1b8] sm:$0xff]
        %v2859 = vld [vmem:[#allocation9 + $0x1c0] sm:$0xff]
        %v2860 = vld [vmem:[#allocation9 + $0x1c8] sm:$0xff]
        %v2861 = vld [vmem:[#allocation9 + $0x1d0] sm:$0xff]
        %v2862 = vld [vmem:[#allocation9 + $0x1d8] sm:$0xff]
        %v2863 = vld [vmem:[#allocation9 + $0x1e0] sm:$0xff]
        %v2864 = vld [vmem:[#allocation9 + $0x1e8] sm:$0xff]
        %v2865 = vld [vmem:[#allocation9 + $0x1f0] sm:$0xff]
        %v2866 = vld [vmem:[#allocation9 + $0x1f8] sm:$0xff]
        %v2867 = vld [vmem:[#allocation9 + $0x200] sm:$0xff]
        %v2868 = vld [vmem:[#allocation9 + $0x208] sm:$0xff]
        %v2869 = vld [vmem:[#allocation9 + $0x210] sm:$0xff]
        %v2870 = vld [vmem:[#allocation9 + $0x218] sm:$0xff]
        %v2871 = vld [vmem:[#allocation9 + $0x220] sm:$0xff]
        %v2872 = vld [vmem:[#allocation9 + $0x228] sm:$0xff]
        %v2873 = vld [vmem:[#allocation9 + $0x230] sm:$0xff]
        %v2874 = vld [vmem:[#allocation9 + $0x238] sm:$0xff]
        %v2875 = vld [vmem:[#allocation9 + $0x240] sm:$0xff]
        %v2876 = vld [vmem:[#allocation9 + $0x248] sm:$0xff]
        %v2877 = vld [vmem:[#allocation9 + $0x250] sm:$0xff]
        %v2878 = vld [vmem:[#allocation9 + $0x258] sm:$0xff]
        %v2879 = vld [vmem:[#allocation9 + $0x260] sm:$0xff]
        %v2880 = vld [vmem:[#allocation9 + $0x268] sm:$0xff]
        %v2881 = vld [vmem:[#allocation9 + $0x270] sm:$0xff]
        %v2882 = vld [vmem:[#allocation9 + $0x278] sm:$0xff]
        %v2883 = vld [vmem:[#allocation9 + $0x280] sm:$0xff]
        %v2884 = vld [vmem:[#allocation9 + $0x288] sm:$0xff]
        %v2885 = vld [vmem:[#allocation9 + $0x290] sm:$0xff]
        %v2886 = vld [vmem:[#allocation9 + $0x298] sm:$0xff]
        %v2887 = vld [vmem:[#allocation9 + $0x2a0] sm:$0xff]
        %v2888 = vld [vmem:[#allocation9 + $0x2a8] sm:$0xff]
        %v2889 = vld [vmem:[#allocation9 + $0x2b0] sm:$0xff]
        %v2890 = vld [vmem:[#allocation9 + $0x2b8] sm:$0xff]
        %v2891 = vld [vmem:[#allocation9 + $0x2c0] sm:$0xff]
        %v2892 = vld [vmem:[#allocation9 + $0x2c8] sm:$0xff]
        %v2893 = vld [vmem:[#allocation9 + $0x2d0] sm:$0xff]
        %v2894 = vld [vmem:[#allocation9 + $0x2d8] sm:$0xff]
        %v2895 = vld [vmem:[#allocation9 + $0x2e0] sm:$0xff]
        %v2896 = vld [vmem:[#allocation9 + $0x2e8] sm:$0xff]
        %v2897 = vld [vmem:[#allocation9 + $0x2f0] sm:$0xff]
        %v2898 = vld [vmem:[#allocation9 + $0x2f8] sm:$0xff]
        %v2899 = vld [vmem:[#allocation9 + $0x300] sm:$0xff]
        %v2900 = vld [vmem:[#allocation9 + $0x308] sm:$0xff]
        %v2901 = vld [vmem:[#allocation9 + $0x310] sm:$0xff]
        %v2902 = vld [vmem:[#allocation9 + $0x318] sm:$0xff]
        %v2903 = vld [vmem:[#allocation9 + $0x320] sm:$0xff]
        %v2904 = vld [vmem:[#allocation9 + $0x328] sm:$0xff]
        %v2905 = vld [vmem:[#allocation9 + $0x330] sm:$0xff]
        %v2906 = vld [vmem:[#allocation9 + $0x338] sm:$0xff]
        %v2907 = vld [vmem:[#allocation9 + $0x340] sm:$0xff]
        %v2908 = vld [vmem:[#allocation9 + $0x348] sm:$0xff]
        %v2909 = vld [vmem:[#allocation9 + $0x350] sm:$0xff]
        %v2910 = vld [vmem:[#allocation9 + $0x358] sm:$0xff]
        %v2911 = vld [vmem:[#allocation9 + $0x360] sm:$0xff]
        %v2912 = vld [vmem:[#allocation9 + $0x368] sm:$0xff]
        %v2913 = vld [vmem:[#allocation9 + $0x370] sm:$0xff]
        %v2914 = vld [vmem:[#allocation9 + $0x378] sm:$0xff]
        %v2915 = vld [vmem:[#allocation9 + $0x380] sm:$0xff]
        %v2916 = vld [vmem:[#allocation9 + $0x388] sm:$0xff]
        %v2917 = vld [vmem:[#allocation9 + $0x390] sm:$0xff]
        %v2918 = vld [vmem:[#allocation9 + $0x398] sm:$0xff]
        %v2919 = vld [vmem:[#allocation9 + $0x3a0] sm:$0xff]
        %v2920 = vld [vmem:[#allocation9 + $0x3a8] sm:$0xff]
        %v2921 = vld [vmem:[#allocation9 + $0x3b0] sm:$0xff]
        %v2922 = vld [vmem:[#allocation9 + $0x3b8] sm:$0xff]
        %v2923 = vld [vmem:[#allocation9 + $0x3c0] sm:$0xff]
        %v2924 = vld [vmem:[#allocation9 + $0x3c8] sm:$0xff]
        %v2925 = vld [vmem:[#allocation9 + $0x3d0] sm:$0xff]
        %v2926 = vld [vmem:[#allocation9 + $0x3d8] sm:$0xff]
        %v2927 = vld [vmem:[#allocation9 + $0x3e0] sm:$0xff]
        %v2928 = vld [vmem:[#allocation9 + $0x3e8] sm:$0xff]
        %v2929 = vld [vmem:[#allocation9 + $0x3f0] sm:$0xff]
        %v2930 = vld [vmem:[#allocation9 + $0x3f8] sm:$0xff]
        %v2931 = vld [vmem:[#allocation9 + $0x400] sm:$0xff]
        %v2932 = vld [vmem:[#allocation9 + $0x408] sm:$0xff]
        %v2933 = vld [vmem:[#allocation9 + $0x410] sm:$0xff]
        %v2934 = vld [vmem:[#allocation9 + $0x418] sm:$0xff]
        %v2935 = vld [vmem:[#allocation9 + $0x420] sm:$0xff]
        %v2936 = vld [vmem:[#allocation9 + $0x428] sm:$0xff]
        %v2937 = vld [vmem:[#allocation9 + $0x430] sm:$0xff]
        %v2938 = vld [vmem:[#allocation9 + $0x438] sm:$0xff]
        %v2939 = vld [vmem:[#allocation9 + $0x440] sm:$0xff]
        %v2940 = vld [vmem:[#allocation9 + $0x448] sm:$0xff]
        %v2941 = vld [vmem:[#allocation9 + $0x450] sm:$0xff]
        %v2942 = vld [vmem:[#allocation9 + $0x458] sm:$0xff]
        %v2943 = vld [vmem:[#allocation9 + $0x460] sm:$0xff]
        %v2944 = vld [vmem:[#allocation9 + $0x468] sm:$0xff]
        %v2945 = vld [vmem:[#allocation9 + $0x470] sm:$0xff]
        %v2946 = vld [vmem:[#allocation9 + $0x478] sm:$0xff]
        %v2947 = vld [vmem:[#allocation9 + $0x480] sm:$0xff]
        %v2948 = vld [vmem:[#allocation9 + $0x488] sm:$0xff]
        %v2949 = vld [vmem:[#allocation9 + $0x490] sm:$0xff]
        %v2950 = vld [vmem:[#allocation9 + $0x498] sm:$0xff]
        %v2951 = vld [vmem:[#allocation9 + $0x4a0] sm:$0xff]
        %v2952 = vld [vmem:[#allocation9 + $0x4a8] sm:$0xff]
        %v2953 = vld [vmem:[#allocation9 + $0x4b0] sm:$0xff]
        %v2954 = vld [vmem:[#allocation9 + $0x4b8] sm:$0xff]
        %v2955 = vld [vmem:[#allocation9 + $0x4c0] sm:$0xff]
        %v2956 = vld [vmem:[#allocation9 + $0x4c8] sm:$0xff]
        %v2957 = vld [vmem:[#allocation9 + $0x4d0] sm:$0xff]
        %v2958 = vld [vmem:[#allocation9 + $0x4d8] sm:$0xff]
        %v2959 = vld [vmem:[#allocation9 + $0x4e0] sm:$0xff]
        %v2960 = vld [vmem:[#allocation9 + $0x4e8] sm:$0xff]
        %v2961 = vld [vmem:[#allocation9 + $0x4f0] sm:$0xff]
        %v2962 = vld [vmem:[#allocation9 + $0x4f8] sm:$0xff]
        %v2963 = vld [vmem:[#allocation9 + $0x500] sm:$0xff]
        %v2964 = vld [vmem:[#allocation9 + $0x508] sm:$0xff]
        %v2965 = vld [vmem:[#allocation9 + $0x510] sm:$0xff]
        %v2966 = vld [vmem:[#allocation9 + $0x518] sm:$0xff]
        %v2967 = vld [vmem:[#allocation9 + $0x520] sm:$0xff]
        %v2968 = vld [vmem:[#allocation9 + $0x528] sm:$0xff]
        %v2969 = vld [vmem:[#allocation9 + $0x530] sm:$0xff]
        %v2970 = vld [vmem:[#allocation9 + $0x538] sm:$0xff]
        %v2971 = vld [vmem:[#allocation9 + $0x540] sm:$0xff]
        %v2972 = vld [vmem:[#allocation9 + $0x548] sm:$0xff]
        %v2973 = vld [vmem:[#allocation9 + $0x550] sm:$0xff]
        %v2974 = vld [vmem:[#allocation9 + $0x558] sm:$0xff]
        %v2975 = vld [vmem:[#allocation9 + $0x560] sm:$0xff]
        %v2976 = vld [vmem:[#allocation9 + $0x568] sm:$0xff]
        %v2977 = vld [vmem:[#allocation9 + $0x570] sm:$0xff]
        %v2978 = vld [vmem:[#allocation9 + $0x578] sm:$0xff]
        %v2979 = vld [vmem:[#allocation9 + $0x580] sm:$0xff]
        %v2980 = vld [vmem:[#allocation9 + $0x588] sm:$0xff]
        %v2981 = vld [vmem:[#allocation9 + $0x590] sm:$0xff]
        %v2982 = vld [vmem:[#allocation9 + $0x598] sm:$0xff]
        %v2983 = vld [vmem:[#allocation9 + $0x5a0] sm:$0xff]
        %v2984 = vld [vmem:[#allocation9 + $0x5a8] sm:$0xff]
        %v2985 = vld [vmem:[#allocation9 + $0x5b0] sm:$0xff]
        %v2986 = vld [vmem:[#allocation9 + $0x5b8] sm:$0xff]
        %v2987 = vld [vmem:[#allocation9 + $0x5c0] sm:$0xff]
        %v2988 = vld [vmem:[#allocation9 + $0x5c8] sm:$0xff]
        %v2989 = vld [vmem:[#allocation9 + $0x5d0] sm:$0xff]
        %v2990 = vld [vmem:[#allocation9 + $0x5d8] sm:$0xff]
        %v2991 = vld [vmem:[#allocation9 + $0x5e0] sm:$0xff]
        %v2992 = vld [vmem:[#allocation9 + $0x5e8] sm:$0xff]
        %v2993 = vld [vmem:[#allocation9 + $0x5f0] sm:$0xff]
        %v2994 = vld [vmem:[#allocation9 + $0x5f8] sm:$0xff]
        %v2995 = vld [vmem:[#allocation9 + $0x600] sm:$0xff]
        %v2996 = vld [vmem:[#allocation9 + $0x608] sm:$0xff]
        %v2997 = vld [vmem:[#allocation9 + $0x610] sm:$0xff]
        %v2998 = vld [vmem:[#allocation9 + $0x618] sm:$0xff]
        %v2999 = vld [vmem:[#allocation9 + $0x620] sm:$0xff]
        %v3000 = vld [vmem:[#allocation9 + $0x628] sm:$0xff]
        %v3001 = vld [vmem:[#allocation9 + $0x630] sm:$0xff]
        %v3002 = vld [vmem:[#allocation9 + $0x638] sm:$0xff]
        %v3003 = vld [vmem:[#allocation9 + $0x640] sm:$0xff]
        %v3004 = vld [vmem:[#allocation9 + $0x648] sm:$0xff]
        %v3005 = vld [vmem:[#allocation9 + $0x650] sm:$0xff]
        %v3006 = vld [vmem:[#allocation9 + $0x658] sm:$0xff]
        %v3007 = vld [vmem:[#allocation9 + $0x660] sm:$0xff]
        %v3008 = vld [vmem:[#allocation9 + $0x668] sm:$0xff]
        %v3009 = vld [vmem:[#allocation9 + $0x670] sm:$0xff]
        %v3010 = vld [vmem:[#allocation9 + $0x678] sm:$0xff]
        %v3011 = vld [vmem:[#allocation9 + $0x680] sm:$0xff]
        %v3012 = vld [vmem:[#allocation9 + $0x688] sm:$0xff]
        %v3013 = vld [vmem:[#allocation9 + $0x690] sm:$0xff]
        %v3014 = vld [vmem:[#allocation9 + $0x698] sm:$0xff]
        %v3015 = vld [vmem:[#allocation9 + $0x6a0] sm:$0xff]
        %v3016 = vld [vmem:[#allocation9 + $0x6a8] sm:$0xff]
        %v3017 = vld [vmem:[#allocation9 + $0x6b0] sm:$0xff]
        %v3018 = vld [vmem:[#allocation9 + $0x6b8] sm:$0xff]
        %v3019 = vld [vmem:[#allocation9 + $0x6c0] sm:$0xff]
        %v3020 = vld [vmem:[#allocation9 + $0x6c8] sm:$0xff]
        %v3021 = vld [vmem:[#allocation9 + $0x6d0] sm:$0xff]
        %v3022 = vld [vmem:[#allocation9 + $0x6d8] sm:$0xff]
        %v3023 = vld [vmem:[#allocation9 + $0x6e0] sm:$0xff]
        %v3024 = vld [vmem:[#allocation9 + $0x6e8] sm:$0xff]
        %v3025 = vld [vmem:[#allocation9 + $0x6f0] sm:$0xff]
        %v3026 = vld [vmem:[#allocation9 + $0x6f8] sm:$0xff]
        %v3027 = vld [vmem:[#allocation9 + $0x700] sm:$0xff]
        %v3028 = vld [vmem:[#allocation9 + $0x708] sm:$0xff]
        %v3029 = vld [vmem:[#allocation9 + $0x710] sm:$0xff]
        %v3030 = vld [vmem:[#allocation9 + $0x718] sm:$0xff]
        %v3031 = vld [vmem:[#allocation9 + $0x720] sm:$0xff]
        %v3032 = vld [vmem:[#allocation9 + $0x728] sm:$0xff]
        %v3033 = vld [vmem:[#allocation9 + $0x730] sm:$0xff]
        %v3034 = vld [vmem:[#allocation9 + $0x738] sm:$0xff]
        %v3035 = vld [vmem:[#allocation9 + $0x740] sm:$0xff]
        %v3036 = vld [vmem:[#allocation9 + $0x748] sm:$0xff]
        %v3037 = vld [vmem:[#allocation9 + $0x750] sm:$0xff]
        %v3038 = vld [vmem:[#allocation9 + $0x758] sm:$0xff]
        %v3039 = vld [vmem:[#allocation9 + $0x760] sm:$0xff]
        %v3040 = vld [vmem:[#allocation9 + $0x768] sm:$0xff]
        %v3041 = vld [vmem:[#allocation9 + $0x770] sm:$0xff]
        %v3042 = vld [vmem:[#allocation9 + $0x778] sm:$0xff]
        %v3043 = vld [vmem:[#allocation9 + $0x780] sm:$0xff]
        %v3044 = vld [vmem:[#allocation9 + $0x788] sm:$0xff]
        %v3045 = vld [vmem:[#allocation9 + $0x790] sm:$0xff]
        %v3046 = vld [vmem:[#allocation9 + $0x798] sm:$0xff]
        %v3047 = vld [vmem:[#allocation9 + $0x7a0] sm:$0xff]
        %v3048 = vld [vmem:[#allocation9 + $0x7a8] sm:$0xff]
        %v3049 = vld [vmem:[#allocation9 + $0x7b0] sm:$0xff]
        %v3050 = vld [vmem:[#allocation9 + $0x7b8] sm:$0xff]
        %v3051 = vld [vmem:[#allocation9 + $0x7c0] sm:$0xff]
        %v3052 = vld [vmem:[#allocation9 + $0x7c8] sm:$0xff]
        %v3053 = vld [vmem:[#allocation9 + $0x7d0] sm:$0xff]
        %v3054 = vld [vmem:[#allocation9 + $0x7d8] sm:$0xff]
        %v3055 = vld [vmem:[#allocation9 + $0x7e0] sm:$0xff]
        %v3056 = vld [vmem:[#allocation9 + $0x7e8] sm:$0xff]
        %v3057 = vld [vmem:[#allocation9 + $0x7f0] sm:$0xff]
        %v3058 = vld [vmem:[#allocation9 + $0x7f8] sm:$0xff]
        %v3059 = vld [vmem:[#allocation9 + $0x800] sm:$0xff]
        %v3060 = vld [vmem:[#allocation9 + $0x808] sm:$0xff]
        %v3061 = vld [vmem:[#allocation9 + $0x810] sm:$0xff]
        %v3062 = vld [vmem:[#allocation9 + $0x818] sm:$0xff]
        %v3063 = vld [vmem:[#allocation9 + $0x820] sm:$0xff]
        %v3064 = vld [vmem:[#allocation9 + $0x828] sm:$0xff]
        %v3065 = vld [vmem:[#allocation9 + $0x830] sm:$0xff]
        %v3066 = vld [vmem:[#allocation9 + $0x838] sm:$0xff]
        %v3067 = vld [vmem:[#allocation9 + $0x840] sm:$0xff]
        %v3068 = vld [vmem:[#allocation9 + $0x848] sm:$0xff]
        %v3069 = vld [vmem:[#allocation9 + $0x850] sm:$0xff]
        %v3070 = vld [vmem:[#allocation9 + $0x858] sm:$0xff]
        %v3071 = vld [vmem:[#allocation9 + $0x860] sm:$0xff]
        %v3072 = vld [vmem:[#allocation9 + $0x868] sm:$0xff]
        %v3073 = vld [vmem:[#allocation9 + $0x870] sm:$0xff]
        %v3074 = vld [vmem:[#allocation9 + $0x878] sm:$0xff]
        %v3075 = vld [vmem:[#allocation9 + $0x880] sm:$0xff]
        %v3076 = vld [vmem:[#allocation9 + $0x888] sm:$0xff]
        %v3077 = vld [vmem:[#allocation9 + $0x890] sm:$0xff]
        %v3078 = vld [vmem:[#allocation9 + $0x898] sm:$0xff]
        %v3079 = vld [vmem:[#allocation9 + $0x8a0] sm:$0xff]
        %v3080 = vld [vmem:[#allocation9 + $0x8a8] sm:$0xff]
        %v3081 = vld [vmem:[#allocation9 + $0x8b0] sm:$0xff]
        %v3082 = vld [vmem:[#allocation9 + $0x8b8] sm:$0xff]
        %v3083 = vld [vmem:[#allocation9 + $0x8c0] sm:$0xff]
        %v3084 = vld [vmem:[#allocation9 + $0x8c8] sm:$0xff]
        %v3085 = vld [vmem:[#allocation9 + $0x8d0] sm:$0xff]
        %v3086 = vld [vmem:[#allocation9 + $0x8d8] sm:$0xff]
        %v3087 = vld [vmem:[#allocation9 + $0x8e0] sm:$0xff]
        %v3088 = vld [vmem:[#allocation9 + $0x8e8] sm:$0xff]
        %v3089 = vld [vmem:[#allocation9 + $0x8f0] sm:$0xff]
        %v3090 = vld [vmem:[#allocation9 + $0x8f8] sm:$0xff]
        %v3091 = vld [vmem:[#allocation9 + $0x900] sm:$0xff]
        %v3092 = vld [vmem:[#allocation9 + $0x908] sm:$0xff]
        %v3093 = vld [vmem:[#allocation9 + $0x910] sm:$0xff]
        %v3094 = vld [vmem:[#allocation9 + $0x918] sm:$0xff]
        %v3095 = vld [vmem:[#allocation9 + $0x920] sm:$0xff]
        %v3096 = vld [vmem:[#allocation9 + $0x928] sm:$0xff]
        %v3097 = vld [vmem:[#allocation9 + $0x930] sm:$0xff]
        %v3098 = vld [vmem:[#allocation9 + $0x938] sm:$0xff]
        %v3099 = vld [vmem:[#allocation9 + $0x940] sm:$0xff]
        %v3100 = vld [vmem:[#allocation9 + $0x948] sm:$0xff]
        %v3101 = vld [vmem:[#allocation9 + $0x950] sm:$0xff]
        %v3102 = vld [vmem:[#allocation9 + $0x958] sm:$0xff]
        %v3103 = vld [vmem:[#allocation9 + $0x960] sm:$0xff]
        %v3104 = vld [vmem:[#allocation9 + $0x968] sm:$0xff]
        %v3105 = vld [vmem:[#allocation9 + $0x970] sm:$0xff]
        %v3106 = vld [vmem:[#allocation9 + $0x978] sm:$0xff]
        %v3107 = vld [vmem:[#allocation9 + $0x980] sm:$0xff]
        %v3108 = vld [vmem:[#allocation9 + $0x988] sm:$0xff]
        %v3109 = vld [vmem:[#allocation9 + $0x990] sm:$0xff]
        %v3110 = vld [vmem:[#allocation9 + $0x998] sm:$0xff]
        %v3111 = vld [vmem:[#allocation9 + $0x9a0] sm:$0xff]
        %v3112 = vld [vmem:[#allocation9 + $0x9a8] sm:$0xff]
        %v3113 = vld [vmem:[#allocation9 + $0x9b0] sm:$0xff]
        %v3114 = vld [vmem:[#allocation9 + $0x9b8] sm:$0xff]
        %v3115 = vld [vmem:[#allocation9 + $0x9c0] sm:$0xff]
        %v3116 = vld [vmem:[#allocation9 + $0x9c8] sm:$0xff]
        %v3117 = vld [vmem:[#allocation9 + $0x9d0] sm:$0xff]
        %v3118 = vld [vmem:[#allocation9 + $0x9d8] sm:$0xff]
        %v3119 = vld [vmem:[#allocation9 + $0x9e0] sm:$0xff]
        %v3120 = vld [vmem:[#allocation9 + $0x9e8] sm:$0xff]
        %v3121 = vld [vmem:[#allocation9 + $0x9f0] sm:$0xff]
        %v3122 = vld [vmem:[#allocation9 + $0x9f8] sm:$0xff]
        %v3123 = vld [vmem:[#allocation9 + $0xa00] sm:$0xff]
        %v3124 = vld [vmem:[#allocation9 + $0xa08] sm:$0xff]
        %v3125 = vld [vmem:[#allocation9 + $0xa10] sm:$0xff]
        %v3126 = vld [vmem:[#allocation9 + $0xa18] sm:$0xff]
        %v3127 = vld [vmem:[#allocation9 + $0xa20] sm:$0xff]
        %v3128 = vld [vmem:[#allocation9 + $0xa28] sm:$0xff]
        %v3129 = vld [vmem:[#allocation9 + $0xa30] sm:$0xff]
        %v3130 = vld [vmem:[#allocation9 + $0xa38] sm:$0xff]
        %v3131 = vld [vmem:[#allocation9 + $0xa40] sm:$0xff]
        %v3132 = vld [vmem:[#allocation9 + $0xa48] sm:$0xff]
        %v3133 = vld [vmem:[#allocation9 + $0xa50] sm:$0xff]
        %v3134 = vld [vmem:[#allocation9 + $0xa58] sm:$0xff]
        %v3135 = vld [vmem:[#allocation9 + $0xa60] sm:$0xff]
        %v3136 = vld [vmem:[#allocation9 + $0xa68] sm:$0xff]
        %v3137 = vld [vmem:[#allocation9 + $0xa70] sm:$0xff]
        %v3138 = vld [vmem:[#allocation9 + $0xa78] sm:$0xff]
        %v3139 = vld [vmem:[#allocation9 + $0xa80] sm:$0xff]
        %v3140 = vld [vmem:[#allocation9 + $0xa88] sm:$0xff]
        %v3141 = vld [vmem:[#allocation9 + $0xa90] sm:$0xff]
        %v3142 = vld [vmem:[#allocation9 + $0xa98] sm:$0xff]
        %v3143 = vld [vmem:[#allocation9 + $0xaa0] sm:$0xff]
        %v3144 = vld [vmem:[#allocation9 + $0xaa8] sm:$0xff]
        %v3145 = vld [vmem:[#allocation9 + $0xab0] sm:$0xff]
        %v3146 = vld [vmem:[#allocation9 + $0xab8] sm:$0xff]
        %v3147 = vld [vmem:[#allocation9 + $0xac0] sm:$0xff]
        %v3148 = vld [vmem:[#allocation9 + $0xac8] sm:$0xff]
        %v3149 = vld [vmem:[#allocation9 + $0xad0] sm:$0xff]
        %v3150 = vld [vmem:[#allocation9 + $0xad8] sm:$0xff]
        %v3151 = vld [vmem:[#allocation9 + $0xae0] sm:$0xff]
        %v3152 = vld [vmem:[#allocation9 + $0xae8] sm:$0xff]
        %v3153 = vld [vmem:[#allocation9 + $0xaf0] sm:$0xff]
        %v3154 = vld [vmem:[#allocation9 + $0xaf8] sm:$0xff]
        %v3155 = vld [vmem:[#allocation9 + $0xb00] sm:$0xff]
        %v3156 = vld [vmem:[#allocation9 + $0xb08] sm:$0xff]
        %v3157 = vld [vmem:[#allocation9 + $0xb10] sm:$0xff]
        %v3158 = vld [vmem:[#allocation9 + $0xb18] sm:$0xff]
        %v3159 = vld [vmem:[#allocation9 + $0xb20] sm:$0xff]
        %v3160 = vld [vmem:[#allocation9 + $0xb28] sm:$0xff]
        %v3161 = vld [vmem:[#allocation9 + $0xb30] sm:$0xff]
        %v3162 = vld [vmem:[#allocation9 + $0xb38] sm:$0xff]
        %v3163 = vld [vmem:[#allocation9 + $0xb40] sm:$0xff]
        %v3164 = vld [vmem:[#allocation9 + $0xb48] sm:$0xff]
        %v3165 = vld [vmem:[#allocation9 + $0xb50] sm:$0xff]
        %v3166 = vld [vmem:[#allocation9 + $0xb58] sm:$0xff]
        %v3167 = vld [vmem:[#allocation9 + $0xb60] sm:$0xff]
        %v3168 = vld [vmem:[#allocation9 + $0xb68] sm:$0xff]
        %v3169 = vld [vmem:[#allocation9 + $0xb70] sm:$0xff]
        %v3170 = vld [vmem:[#allocation9 + $0xb78] sm:$0xff]
        %v3171 = vld [vmem:[#allocation9 + $0xb80] sm:$0xff]
        %v3172 = vld [vmem:[#allocation9 + $0xb88] sm:$0xff]
        %v3173 = vld [vmem:[#allocation9 + $0xb90] sm:$0xff]
        %v3174 = vld [vmem:[#allocation9 + $0xb98] sm:$0xff]
        %v3175 = vld [vmem:[#allocation9 + $0xba0] sm:$0xff]
        %v3176 = vld [vmem:[#allocation9 + $0xba8] sm:$0xff]
        %v3177 = vld [vmem:[#allocation9 + $0xbb0] sm:$0xff]
        %v3178 = vld [vmem:[#allocation9 + $0xbb8] sm:$0xff]
        %v3179 = vld [vmem:[#allocation9 + $0xbc0] sm:$0xff]
        %v3180 = vld [vmem:[#allocation9 + $0xbc8] sm:$0xff]
        %v3181 = vld [vmem:[#allocation9 + $0xbd0] sm:$0xff]
        %v3182 = vld [vmem:[#allocation9 + $0xbd8] sm:$0xff]
        %v3183 = vld [vmem:[#allocation9 + $0xbe0] sm:$0xff]
        %v3184 = vld [vmem:[#allocation9 + $0xbe8] sm:$0xff]
        %v3185 = vld [vmem:[#allocation9 + $0xbf0] sm:$0xff]
        %v3186 = vld [vmem:[#allocation9 + $0xbf8] sm:$0xff]
        %v3187 = vld [vmem:[#allocation9 + $0xc00] sm:$0xff]
        %v3188 = vld [vmem:[#allocation9 + $0xc08] sm:$0xff]
        %v3189 = vld [vmem:[#allocation9 + $0xc10] sm:$0xff]
        %v3190 = vld [vmem:[#allocation9 + $0xc18] sm:$0xff]
        %v3191 = vld [vmem:[#allocation9 + $0xc20] sm:$0xff]
        %v3192 = vld [vmem:[#allocation9 + $0xc28] sm:$0xff]
        %v3193 = vld [vmem:[#allocation9 + $0xc30] sm:$0xff]
        %v3194 = vld [vmem:[#allocation9 + $0xc38] sm:$0xff]
        %v3195 = vld [vmem:[#allocation9 + $0xc40] sm:$0xff]
        %v3196 = vld [vmem:[#allocation9 + $0xc48] sm:$0xff]
        %v3197 = vld [vmem:[#allocation9 + $0xc50] sm:$0xff]
        %v3198 = vld [vmem:[#allocation9 + $0xc58] sm:$0xff]
        %v3199 = vld [vmem:[#allocation9 + $0xc60] sm:$0xff]
        %v3200 = vld [vmem:[#allocation9 + $0xc68] sm:$0xff]
        %v3201 = vld [vmem:[#allocation9 + $0xc70] sm:$0xff]
        %v3202 = vld [vmem:[#allocation9 + $0xc78] sm:$0xff]
        %v3203 = vld [vmem:[#allocation9 + $0xc80] sm:$0xff]
        %v3204 = vld [vmem:[#allocation9 + $0xc88] sm:$0xff]
        %v3205 = vld [vmem:[#allocation9 + $0xc90] sm:$0xff]
        %v3206 = vld [vmem:[#allocation9 + $0xc98] sm:$0xff]
        %v3207 = vld [vmem:[#allocation9 + $0xca0] sm:$0xff]
        %v3208 = vld [vmem:[#allocation9 + $0xca8] sm:$0xff]
        %v3209 = vld [vmem:[#allocation9 + $0xcb0] sm:$0xff]
        %v3210 = vld [vmem:[#allocation9 + $0xcb8] sm:$0xff]
        %v3211 = vld [vmem:[#allocation9 + $0xcc0] sm:$0xff]
        %v3212 = vld [vmem:[#allocation9 + $0xcc8] sm:$0xff]
        %v3213 = vld [vmem:[#allocation9 + $0xcd0] sm:$0xff]
        %v3214 = vld [vmem:[#allocation9 + $0xcd8] sm:$0xff]
        %v3215 = vld [vmem:[#allocation9 + $0xce0] sm:$0xff]
        %v3216 = vld [vmem:[#allocation9 + $0xce8] sm:$0xff]
        %v3217 = vld [vmem:[#allocation9 + $0xcf0] sm:$0xff]
        %v3218 = vld [vmem:[#allocation9 + $0xcf8] sm:$0xff]
        %v3219 = vld [vmem:[#allocation9 + $0xd00] sm:$0xff]
        %v3220 = vld [vmem:[#allocation9 + $0xd08] sm:$0xff]
        %v3221 = vld [vmem:[#allocation9 + $0xd10] sm:$0xff]
        %v3222 = vld [vmem:[#allocation9 + $0xd18] sm:$0xff]
        %v3223 = vld [vmem:[#allocation9 + $0xd20] sm:$0xff]
        %v3224 = vld [vmem:[#allocation9 + $0xd28] sm:$0xff]
        %v3225 = vld [vmem:[#allocation9 + $0xd30] sm:$0xff]
        %v3226 = vld [vmem:[#allocation9 + $0xd38] sm:$0xff]
        %v3227 = vld [vmem:[#allocation9 + $0xd40] sm:$0xff]
        %v3228 = vld [vmem:[#allocation9 + $0xd48] sm:$0xff]
        %v3229 = vld [vmem:[#allocation9 + $0xd50] sm:$0xff]
        %v3230 = vld [vmem:[#allocation9 + $0xd58] sm:$0xff]
        %v3231 = vld [vmem:[#allocation9 + $0xd60] sm:$0xff]
        %v3232 = vld [vmem:[#allocation9 + $0xd68] sm:$0xff]
        %v3233 = vld [vmem:[#allocation9 + $0xd70] sm:$0xff]
        %v3234 = vld [vmem:[#allocation9 + $0xd78] sm:$0xff]
        %v3235 = vld [vmem:[#allocation9 + $0xd80] sm:$0xff]
        %v3236 = vld [vmem:[#allocation9 + $0xd88] sm:$0xff]
        %v3237 = vld [vmem:[#allocation9 + $0xd90] sm:$0xff]
        %v3238 = vld [vmem:[#allocation9 + $0xd98] sm:$0xff]
        %v3239 = vld [vmem:[#allocation9 + $0xda0] sm:$0xff]
        %v3240 = vld [vmem:[#allocation9 + $0xda8] sm:$0xff]
        %v3241 = vld [vmem:[#allocation9 + $0xdb0] sm:$0xff]
        %v3242 = vld [vmem:[#allocation9 + $0xdb8] sm:$0xff]
        %v3243 = vld [vmem:[#allocation9 + $0xdc0] sm:$0xff]
        %v3244 = vld [vmem:[#allocation9 + $0xdc8] sm:$0xff]
        %v3245 = vld [vmem:[#allocation9 + $0xdd0] sm:$0xff]
        %v3246 = vld [vmem:[#allocation9 + $0xdd8] sm:$0xff]
        %v3247 = vld [vmem:[#allocation9 + $0xde0] sm:$0xff]
        %v3248 = vld [vmem:[#allocation9 + $0xde8] sm:$0xff]
        %v3249 = vld [vmem:[#allocation9 + $0xdf0] sm:$0xff]
        %v3250 = vld [vmem:[#allocation9 + $0xdf8] sm:$0xff]
        %v3251 = vld [vmem:[#allocation9 + $0xe00] sm:$0xff]
        %v3252 = vld [vmem:[#allocation9 + $0xe08] sm:$0xff]
        %v3253 = vld [vmem:[#allocation9 + $0xe10] sm:$0xff]
        %v3254 = vld [vmem:[#allocation9 + $0xe18] sm:$0xff]
        %v3255 = vld [vmem:[#allocation9 + $0xe20] sm:$0xff]
        %v3256 = vld [vmem:[#allocation9 + $0xe28] sm:$0xff]
        %v3257 = vld [vmem:[#allocation9 + $0xe30] sm:$0xff]
        %v3258 = vld [vmem:[#allocation9 + $0xe38] sm:$0xff]
        %v3259 = vld [vmem:[#allocation9 + $0xe40] sm:$0xff]
        %v3260 = vld [vmem:[#allocation9 + $0xe48] sm:$0xff]
        %v3261 = vld [vmem:[#allocation9 + $0xe50] sm:$0xff]
        %v3262 = vld [vmem:[#allocation9 + $0xe58] sm:$0xff]
        %v3263 = vld [vmem:[#allocation9 + $0xe60] sm:$0xff]
        %v3264 = vld [vmem:[#allocation9 + $0xe68] sm:$0xff]
        %v3265 = vld [vmem:[#allocation9 + $0xe70] sm:$0xff]
        %v3266 = vld [vmem:[#allocation9 + $0xe78] sm:$0xff]
        %v3267 = vld [vmem:[#allocation9 + $0xe80] sm:$0xff]
        %v3268 = vld [vmem:[#allocation9 + $0xe88] sm:$0xff]
        %v3269 = vld [vmem:[#allocation9 + $0xe90] sm:$0xff]
        %v3270 = vld [vmem:[#allocation9 + $0xe98] sm:$0xff]
        %v3271 = vld [vmem:[#allocation9 + $0xea0] sm:$0xff]
        %v3272 = vld [vmem:[#allocation9 + $0xea8] sm:$0xff]
        %v3273 = vld [vmem:[#allocation9 + $0xeb0] sm:$0xff]
        %v3274 = vld [vmem:[#allocation9 + $0xeb8] sm:$0xff]
        %v3275 = vld [vmem:[#allocation9 + $0xec0] sm:$0xff]
        %v3276 = vld [vmem:[#allocation9 + $0xec8] sm:$0xff]
        %v3277 = vld [vmem:[#allocation9 + $0xed0] sm:$0xff]
        %v3278 = vld [vmem:[#allocation9 + $0xed8] sm:$0xff]
        %v3279 = vld [vmem:[#allocation9 + $0xee0] sm:$0xff]
        %v3280 = vld [vmem:[#allocation9 + $0xee8] sm:$0xff]
        %v3281 = vld [vmem:[#allocation9 + $0xef0] sm:$0xff]
        %v3282 = vld [vmem:[#allocation9 + $0xef8] sm:$0xff]
        %v3283 = vld [vmem:[#allocation9 + $0xf00] sm:$0xff]
        %v3284 = vld [vmem:[#allocation9 + $0xf08] sm:$0xff]
        %v3285 = vld [vmem:[#allocation9 + $0xf10] sm:$0xff]
        %v3286 = vld [vmem:[#allocation9 + $0xf18] sm:$0xff]
        %v3287 = vld [vmem:[#allocation9 + $0xf20] sm:$0xff]
        %v3288 = vld [vmem:[#allocation9 + $0xf28] sm:$0xff]
        %v3289 = vld [vmem:[#allocation9 + $0xf30] sm:$0xff]
        %v3290 = vld [vmem:[#allocation9 + $0xf38] sm:$0xff]
        %v3291 = vld [vmem:[#allocation9 + $0xf40] sm:$0xff]
        %v3292 = vld [vmem:[#allocation9 + $0xf48] sm:$0xff]
        %v3293 = vld [vmem:[#allocation9 + $0xf50] sm:$0xff]
        %v3294 = vld [vmem:[#allocation9 + $0xf58] sm:$0xff]
        %v3295 = vld [vmem:[#allocation9 + $0xf60] sm:$0xff]
        %v3296 = vld [vmem:[#allocation9 + $0xf68] sm:$0xff]
        %v3297 = vld [vmem:[#allocation9 + $0xf70] sm:$0xff]
        %v3298 = vld [vmem:[#allocation9 + $0xf78] sm:$0xff]
        %v3299 = vld [vmem:[#allocation9 + $0xf80] sm:$0xff]
        %v3300 = vld [vmem:[#allocation9 + $0xf88] sm:$0xff]
        %v3301 = vld [vmem:[#allocation9 + $0xf90] sm:$0xff]
        %v3302 = vld [vmem:[#allocation9 + $0xf98] sm:$0xff]
        %v3303 = vld [vmem:[#allocation9 + $0xfa0] sm:$0xff]
        %v3304 = vld [vmem:[#allocation9 + $0xfa8] sm:$0xff]
        %v3305 = vld [vmem:[#allocation9 + $0xfb0] sm:$0xff]
        %v3306 = vld [vmem:[#allocation9 + $0xfb8] sm:$0xff]
        %v3307 = vld [vmem:[#allocation9 + $0xfc0] sm:$0xff]
        %v3308 = vld [vmem:[#allocation9 + $0xfc8] sm:$0xff]
        %v3309 = vld [vmem:[#allocation9 + $0xfd0] sm:$0xff]
        %v3310 = vld [vmem:[#allocation9 + $0xfd8] sm:$0xff]
        %v3311 = vld [vmem:[#allocation9 + $0xfe0] sm:$0xff]
        %v3312 = vld [vmem:[#allocation9 + $0xfe8] sm:$0xff]
        %v3313 = vld [vmem:[#allocation9 + $0xff0] sm:$0xff]
        %v3314 = vld [vmem:[#allocation9 + $0xff8] sm:$0xff]
        %v3315 = vld [vmem:[#allocation9 + $0x1000] sm:$0xff]
        %v3316 = vld [vmem:[#allocation9 + $0x1008] sm:$0xff]
        %v3317 = vld [vmem:[#allocation9 + $0x1010] sm:$0xff]
        %v3318 = vld [vmem:[#allocation9 + $0x1018] sm:$0xff]
        %v3319 = vld [vmem:[#allocation9 + $0x1020] sm:$0xff]
        %v3320 = vld [vmem:[#allocation9 + $0x1028] sm:$0xff]
        %v3321 = vld [vmem:[#allocation9 + $0x1030] sm:$0xff]
        %v3322 = vld [vmem:[#allocation9 + $0x1038] sm:$0xff]
        %v3323 = vld [vmem:[#allocation9 + $0x1040] sm:$0xff]
        %v3324 = vld [vmem:[#allocation9 + $0x1048] sm:$0xff]
        %v3325 = vld [vmem:[#allocation9 + $0x1050] sm:$0xff]
        %v3326 = vld [vmem:[#allocation9 + $0x1058] sm:$0xff]
        %v3327 = vld [vmem:[#allocation9 + $0x1060] sm:$0xff]
        %v3328 = vld [vmem:[#allocation9 + $0x1068] sm:$0xff]
        %v3329 = vld [vmem:[#allocation9 + $0x1070] sm:$0xff]
        %v3330 = vld [vmem:[#allocation9 + $0x1078] sm:$0xff]
        %v3331 = vld [vmem:[#allocation9 + $0x1080] sm:$0xff]
        %v3332 = vld [vmem:[#allocation9 + $0x1088] sm:$0xff]
        %v3333 = vld [vmem:[#allocation9 + $0x1090] sm:$0xff]
        %v3334 = vld [vmem:[#allocation9 + $0x1098] sm:$0xff]
        %v3335 = vld [vmem:[#allocation9 + $0x10a0] sm:$0xff]
        %v3336 = vld [vmem:[#allocation9 + $0x10a8] sm:$0xff]
        %v3337 = vld [vmem:[#allocation9 + $0x10b0] sm:$0xff]
        %v3338 = vld [vmem:[#allocation9 + $0x10b8] sm:$0xff]
        %v3339 = vld [vmem:[#allocation9 + $0x10c0] sm:$0xff]
        %v3340 = vld [vmem:[#allocation9 + $0x10c8] sm:$0xff]
        %v3341 = vld [vmem:[#allocation9 + $0x10d0] sm:$0xff]
        %v3342 = vld [vmem:[#allocation9 + $0x10d8] sm:$0xff]
        %v3343 = vld [vmem:[#allocation9 + $0x10e0] sm:$0xff]
        %v3344 = vld [vmem:[#allocation9 + $0x10e8] sm:$0xff]
        %v3345 = vld [vmem:[#allocation9 + $0x10f0] sm:$0xff]
        %v3346 = vld [vmem:[#allocation9 + $0x10f8] sm:$0xff]
        %v3347 = vld [vmem:[#allocation9 + $0x1100] sm:$0xff]
        %v3348 = vld [vmem:[#allocation9 + $0x1108] sm:$0xff]
        %v3349 = vld [vmem:[#allocation9 + $0x1110] sm:$0xff]
        %v3350 = vld [vmem:[#allocation9 + $0x1118] sm:$0xff]
        %v3351 = vld [vmem:[#allocation9 + $0x1120] sm:$0xff]
        %v3352 = vld [vmem:[#allocation9 + $0x1128] sm:$0xff]
        %v3353 = vld [vmem:[#allocation9 + $0x1130] sm:$0xff]
        %v3354 = vld [vmem:[#allocation9 + $0x1138] sm:$0xff]
        %v3355 = vld [vmem:[#allocation9 + $0x1140] sm:$0xff]
        %v3356 = vld [vmem:[#allocation9 + $0x1148] sm:$0xff]
        %v3357 = vld [vmem:[#allocation9 + $0x1150] sm:$0xff]
        %v3358 = vld [vmem:[#allocation9 + $0x1158] sm:$0xff]
        %v3359 = vld [vmem:[#allocation9 + $0x1160] sm:$0xff]
        %v3360 = vld [vmem:[#allocation9 + $0x1168] sm:$0xff]
        %v3361 = vld [vmem:[#allocation9 + $0x1170] sm:$0xff]
        %v3362 = vld [vmem:[#allocation9 + $0x1178] sm:$0xff]
        %v3363 = vld [vmem:[#allocation9 + $0x1180] sm:$0xff]
        %v3364 = vld [vmem:[#allocation9 + $0x1188] sm:$0xff]
        %v3365 = vld [vmem:[#allocation9 + $0x1190] sm:$0xff]
        %v3366 = vld [vmem:[#allocation9 + $0x1198] sm:$0xff]
        %v3367 = vld [vmem:[#allocation9 + $0x11a0] sm:$0xff]
        %v3368 = vld [vmem:[#allocation9 + $0x11a8] sm:$0xff]
        %v3369 = vld [vmem:[#allocation9 + $0x11b0] sm:$0xff]
        %v3370 = vld [vmem:[#allocation9 + $0x11b8] sm:$0xff]
        %v3371 = vld [vmem:[#allocation9 + $0x11c0] sm:$0xff]
        %v3372 = vld [vmem:[#allocation9 + $0x11c8] sm:$0xff]
        %v3373 = vld [vmem:[#allocation9 + $0x11d0] sm:$0xff]
        %v3374 = vld [vmem:[#allocation9 + $0x11d8] sm:$0xff]
        %v3375 = vld [vmem:[#allocation9 + $0x11e0] sm:$0xff]
        %v3376 = vld [vmem:[#allocation9 + $0x11e8] sm:$0xff]
        %v3377 = vld [vmem:[#allocation9 + $0x11f0] sm:$0xff]
        %v3378 = vld [vmem:[#allocation9 + $0x11f8] sm:$0xff]
        %v3379 = vld [vmem:[#allocation9 + $0x1200] sm:$0xff]
        %v3380 = vld [vmem:[#allocation9 + $0x1208] sm:$0xff]
        %v3381 = vld [vmem:[#allocation9 + $0x1210] sm:$0xff]
        %v3382 = vld [vmem:[#allocation9 + $0x1218] sm:$0xff]
        %v3383 = vld [vmem:[#allocation9 + $0x1220] sm:$0xff]
        %v3384 = vld [vmem:[#allocation9 + $0x1228] sm:$0xff]
        %v3385 = vld [vmem:[#allocation9 + $0x1230] sm:$0xff]
        %v3386 = vld [vmem:[#allocation9 + $0x1238] sm:$0xff]
        %v3387 = vld [vmem:[#allocation9 + $0x1240] sm:$0xff]
        %v3388 = vld [vmem:[#allocation9 + $0x1248] sm:$0xff]
        %v3389 = vld [vmem:[#allocation9 + $0x1250] sm:$0xff]
        %v3390 = vld [vmem:[#allocation9 + $0x1258] sm:$0xff]
        %v3391 = vld [vmem:[#allocation9 + $0x1260] sm:$0xff]
        %v3392 = vld [vmem:[#allocation9 + $0x1268] sm:$0xff]
        %v3393 = vld [vmem:[#allocation9 + $0x1270] sm:$0xff]
        %v3394 = vld [vmem:[#allocation9 + $0x1278] sm:$0xff]
        %v3395 = vld [vmem:[#allocation9 + $0x1280] sm:$0xff]
        %v3396 = vld [vmem:[#allocation9 + $0x1288] sm:$0xff]
        %v3397 = vld [vmem:[#allocation9 + $0x1290] sm:$0xff]
        %v3398 = vld [vmem:[#allocation9 + $0x1298] sm:$0xff]
        %v3399 = vld [vmem:[#allocation9 + $0x12a0] sm:$0xff]
        %v3400 = vld [vmem:[#allocation9 + $0x12a8] sm:$0xff]
        %v3401 = vld [vmem:[#allocation9 + $0x12b0] sm:$0xff]
        %v3402 = vld [vmem:[#allocation9 + $0x12b8] sm:$0xff]
        %v3403 = vld [vmem:[#allocation9 + $0x12c0] sm:$0xff]
        %v3404 = vld [vmem:[#allocation9 + $0x12c8] sm:$0xff]
        %v3405 = vld [vmem:[#allocation9 + $0x12d0] sm:$0xff]
        %v3406 = vld [vmem:[#allocation9 + $0x12d8] sm:$0xff]
        %v3407 = vld [vmem:[#allocation9 + $0x12e0] sm:$0xff]
        %v3408 = vld [vmem:[#allocation9 + $0x12e8] sm:$0xff]
        %v3409 = vld [vmem:[#allocation9 + $0x12f0] sm:$0xff]
        %v3410 = vld [vmem:[#allocation9 + $0x12f8] sm:$0xff]
        %v3411 = vld [vmem:[#allocation9 + $0x1300] sm:$0xff]
        %v3412 = vld [vmem:[#allocation9 + $0x1308] sm:$0xff]
        %v3413 = vld [vmem:[#allocation9 + $0x1310] sm:$0xff]
        %v3414 = vld [vmem:[#allocation9 + $0x1318] sm:$0xff]
        %v3415 = vld [vmem:[#allocation9 + $0x1320] sm:$0xff]
        %v3416 = vld [vmem:[#allocation9 + $0x1328] sm:$0xff]
        %v3417 = vld [vmem:[#allocation9 + $0x1330] sm:$0xff]
        %v3418 = vld [vmem:[#allocation9 + $0x1338] sm:$0xff]
        %v3419 = vld [vmem:[#allocation9 + $0x1340] sm:$0xff]
        %v3420 = vld [vmem:[#allocation9 + $0x1348] sm:$0xff]
        %v3421 = vld [vmem:[#allocation9 + $0x1350] sm:$0xff]
        %v3422 = vld [vmem:[#allocation9 + $0x1358] sm:$0xff]
        %v3423 = vld [vmem:[#allocation9 + $0x1360] sm:$0xff]
        %v3424 = vld [vmem:[#allocation9 + $0x1368] sm:$0xff]
        %v3425 = vld [vmem:[#allocation9 + $0x1370] sm:$0xff]
        %v3426 = vld [vmem:[#allocation9 + $0x1378] sm:$0xff]
        %v3427 = vld [vmem:[#allocation9 + $0x1380] sm:$0xff]
        %v3428 = vld [vmem:[#allocation9 + $0x1388] sm:$0xff]
        %v3429 = vld [vmem:[#allocation9 + $0x1390] sm:$0xff]
        %v3430 = vld [vmem:[#allocation9 + $0x1398] sm:$0xff]
        %v3431 = vld [vmem:[#allocation9 + $0x13a0] sm:$0xff]
        %v3432 = vld [vmem:[#allocation9 + $0x13a8] sm:$0xff]
        %v3433 = vld [vmem:[#allocation9 + $0x13b0] sm:$0xff]
        %v3434 = vld [vmem:[#allocation9 + $0x13b8] sm:$0xff]
        %v3435 = vld [vmem:[#allocation9 + $0x13c0] sm:$0xff]
        %v3436 = vld [vmem:[#allocation9 + $0x13c8] sm:$0xff]
        %v3437 = vld [vmem:[#allocation9 + $0x13d0] sm:$0xff]
        %v3438 = vld [vmem:[#allocation9 + $0x13d8] sm:$0xff]
        %v3439 = vld [vmem:[#allocation9 + $0x13e0] sm:$0xff]
        %v3440 = vld [vmem:[#allocation9 + $0x13e8] sm:$0xff]
        %v3441 = vld [vmem:[#allocation9 + $0x13f0] sm:$0xff]
        %v3442 = vld [vmem:[#allocation9 + $0x13f8] sm:$0xff]
        %v3443 = vld [vmem:[#allocation9 + $0x1400] sm:$0xff]
        %v3444 = vld [vmem:[#allocation9 + $0x1408] sm:$0xff]
        %v3445 = vld [vmem:[#allocation9 + $0x1410] sm:$0xff]
        %v3446 = vld [vmem:[#allocation9 + $0x1418] sm:$0xff]
        %v3447 = vld [vmem:[#allocation9 + $0x1420] sm:$0xff]
        %v3448 = vld [vmem:[#allocation9 + $0x1428] sm:$0xff]
        %v3449 = vld [vmem:[#allocation9 + $0x1430] sm:$0xff]
        %v3450 = vld [vmem:[#allocation9 + $0x1438] sm:$0xff]
        %v3451 = vld [vmem:[#allocation9 + $0x1440] sm:$0xff]
        %v3452 = vld [vmem:[#allocation9 + $0x1448] sm:$0xff]
        %v3453 = vld [vmem:[#allocation9 + $0x1450] sm:$0xff]
        %v3454 = vld [vmem:[#allocation9 + $0x1458] sm:$0xff]
        %v3455 = vld [vmem:[#allocation9 + $0x1460] sm:$0xff]
        %v3456 = vld [vmem:[#allocation9 + $0x1468] sm:$0xff]
        %v3457 = vld [vmem:[#allocation9 + $0x1470] sm:$0xff]
        %v3458 = vld [vmem:[#allocation9 + $0x1478] sm:$0xff]
        %v3459 = vld [vmem:[#allocation9 + $0x1480] sm:$0xff]
        %v3460 = vld [vmem:[#allocation9 + $0x1488] sm:$0xff]
        %v3461 = vld [vmem:[#allocation9 + $0x1490] sm:$0xff]
        %v3462 = vld [vmem:[#allocation9 + $0x1498] sm:$0xff]
        %v3463 = vld [vmem:[#allocation9 + $0x14a0] sm:$0xff]
        %v3464 = vld [vmem:[#allocation9 + $0x14a8] sm:$0xff]
        %v3465 = vld [vmem:[#allocation9 + $0x14b0] sm:$0xff]
        %v3466 = vld [vmem:[#allocation9 + $0x14b8] sm:$0xff]
        %v3467 = vld [vmem:[#allocation9 + $0x14c0] sm:$0xff]
        %v3468 = vld [vmem:[#allocation9 + $0x14c8] sm:$0xff]
        %v3469 = vld [vmem:[#allocation9 + $0x14d0] sm:$0xff]
        %v3470 = vld [vmem:[#allocation9 + $0x14d8] sm:$0xff]
        %v3471 = vld [vmem:[#allocation9 + $0x14e0] sm:$0xff]
        %v3472 = vld [vmem:[#allocation9 + $0x14e8] sm:$0xff]
        %v3473 = vld [vmem:[#allocation9 + $0x14f0] sm:$0xff]
        %v3474 = vld [vmem:[#allocation9 + $0x14f8] sm:$0xff]
        %v3475 = vld [vmem:[#allocation9 + $0x1500] sm:$0xff]
        %v3476 = vld [vmem:[#allocation9 + $0x1508] sm:$0xff]
        %v3477 = vld [vmem:[#allocation9 + $0x1510] sm:$0xff]
        %v3478 = vld [vmem:[#allocation9 + $0x1518] sm:$0xff]
        %v3479 = vld [vmem:[#allocation9 + $0x1520] sm:$0xff]
        %v3480 = vld [vmem:[#allocation9 + $0x1528] sm:$0xff]
        %v3481 = vld [vmem:[#allocation9 + $0x1530] sm:$0xff]
        %v3482 = vld [vmem:[#allocation9 + $0x1538] sm:$0xff]
        %v3483 = vld [vmem:[#allocation9 + $0x1540] sm:$0xff]
        %v3484 = vld [vmem:[#allocation9 + $0x1548] sm:$0xff]
        %v3485 = vld [vmem:[#allocation9 + $0x1550] sm:$0xff]
        %v3486 = vld [vmem:[#allocation9 + $0x1558] sm:$0xff]
        %v3487 = vld [vmem:[#allocation9 + $0x1560] sm:$0xff]
        %v3488 = vld [vmem:[#allocation9 + $0x1568] sm:$0xff]
        %v3489 = vld [vmem:[#allocation9 + $0x1570] sm:$0xff]
        %v3490 = vld [vmem:[#allocation9 + $0x1578] sm:$0xff]
        %v3491 = vld [vmem:[#allocation9 + $0x1580] sm:$0xff]
        %v3492 = vld [vmem:[#allocation9 + $0x1588] sm:$0xff]
        %v3493 = vld [vmem:[#allocation9 + $0x1590] sm:$0xff]
        %v3494 = vld [vmem:[#allocation9 + $0x1598] sm:$0xff]
        %v3495 = vld [vmem:[#allocation9 + $0x15a0] sm:$0xff]
        %v3496 = vld [vmem:[#allocation9 + $0x15a8] sm:$0xff]
        %v3497 = vld [vmem:[#allocation9 + $0x15b0] sm:$0xff]
        %v3498 = vld [vmem:[#allocation9 + $0x15b8] sm:$0xff]
        %v3499 = vld [vmem:[#allocation9 + $0x15c0] sm:$0xff]
        %v3500 = vld [vmem:[#allocation9 + $0x15c8] sm:$0xff]
        %v3501 = vld [vmem:[#allocation9 + $0x15d0] sm:$0xff]
        %v3502 = vld [vmem:[#allocation9 + $0x15d8] sm:$0xff]
        %v3503 = vld [vmem:[#allocation9 + $0x15e0] sm:$0xff]
        %v3504 = vld [vmem:[#allocation9 + $0x15e8] sm:$0xff]
        %v3505 = vld [vmem:[#allocation9 + $0x15f0] sm:$0xff]
        %v3506 = vld [vmem:[#allocation9 + $0x15f8] sm:$0xff]
        %v3507 = vld [vmem:[#allocation9 + $0x1600] sm:$0xff]
        %v3508 = vld [vmem:[#allocation9 + $0x1608] sm:$0xff]
        %v3509 = vld [vmem:[#allocation9 + $0x1610] sm:$0xff]
        %v3510 = vld [vmem:[#allocation9 + $0x1618] sm:$0xff]
        %v3511 = vld [vmem:[#allocation9 + $0x1620] sm:$0xff]
        %v3512 = vld [vmem:[#allocation9 + $0x1628] sm:$0xff]
        %v3513 = vld [vmem:[#allocation9 + $0x1630] sm:$0xff]
        %v3514 = vld [vmem:[#allocation9 + $0x1638] sm:$0xff]
        %v3515 = vld [vmem:[#allocation9 + $0x1640] sm:$0xff]
        %v3516 = vld [vmem:[#allocation9 + $0x1648] sm:$0xff]
        %v3517 = vld [vmem:[#allocation9 + $0x1650] sm:$0xff]
        %v3518 = vld [vmem:[#allocation9 + $0x1658] sm:$0xff]
        %v3519 = vld [vmem:[#allocation9 + $0x1660] sm:$0xff]
        %v3520 = vld [vmem:[#allocation9 + $0x1668] sm:$0xff]
        %v3521 = vld [vmem:[#allocation9 + $0x1670] sm:$0xff]
        %v3522 = vld [vmem:[#allocation9 + $0x1678] sm:$0xff]
        %v3523 = vld [vmem:[#allocation9 + $0x1680] sm:$0xff]
        %v3524 = vld [vmem:[#allocation9 + $0x1688] sm:$0xff]
        %v3525 = vld [vmem:[#allocation9 + $0x1690] sm:$0xff]
        %v3526 = vld [vmem:[#allocation9 + $0x1698] sm:$0xff]
        %v3527 = vld [vmem:[#allocation9 + $0x16a0] sm:$0xff]
        %v3528 = vld [vmem:[#allocation9 + $0x16a8] sm:$0xff]
        %v3529 = vld [vmem:[#allocation9 + $0x16b0] sm:$0xff]
        %v3530 = vld [vmem:[#allocation9 + $0x16b8] sm:$0xff]
        %v3531 = vld [vmem:[#allocation9 + $0x16c0] sm:$0xff]
        %v3532 = vld [vmem:[#allocation9 + $0x16c8] sm:$0xff]
        %v3533 = vld [vmem:[#allocation9 + $0x16d0] sm:$0xff]
        %v3534 = vld [vmem:[#allocation9 + $0x16d8] sm:$0xff]
        %v3535 = vld [vmem:[#allocation9 + $0x16e0] sm:$0xff]
        %v3536 = vld [vmem:[#allocation9 + $0x16e8] sm:$0xff]
        %v3537 = vld [vmem:[#allocation9 + $0x16f0] sm:$0xff]
        %v3538 = vld [vmem:[#allocation9 + $0x16f8] sm:$0xff]
        %v3539 = vld [vmem:[#allocation9 + $0x1700] sm:$0xff]
        %v3540 = vld [vmem:[#allocation9 + $0x1708] sm:$0xff]
        %v3541 = vld [vmem:[#allocation9 + $0x1710] sm:$0xff]
        %v3542 = vld [vmem:[#allocation9 + $0x1718] sm:$0xff]
        %v3543 = vld [vmem:[#allocation9 + $0x1720] sm:$0xff]
        %v3544 = vld [vmem:[#allocation9 + $0x1728] sm:$0xff]
        %v3545 = vld [vmem:[#allocation9 + $0x1730] sm:$0xff]
        %v3546 = vld [vmem:[#allocation9 + $0x1738] sm:$0xff]
        %v3547 = vld [vmem:[#allocation9 + $0x1740] sm:$0xff]
        %v3548 = vld [vmem:[#allocation9 + $0x1748] sm:$0xff]
        %v3549 = vld [vmem:[#allocation9 + $0x1750] sm:$0xff]
        %v3550 = vld [vmem:[#allocation9 + $0x1758] sm:$0xff]
        %v3551 = vld [vmem:[#allocation9 + $0x1760] sm:$0xff]
        %v3552 = vld [vmem:[#allocation9 + $0x1768] sm:$0xff]
        %v3553 = vld [vmem:[#allocation9 + $0x1770] sm:$0xff]
        %v3554 = vld [vmem:[#allocation9 + $0x1778] sm:$0xff]
        %v3555 = vld [vmem:[#allocation9 + $0x1780] sm:$0xff]
        %v3556 = vld [vmem:[#allocation9 + $0x1788] sm:$0xff]
        %v3557 = vld [vmem:[#allocation9 + $0x1790] sm:$0xff]
        %v3558 = vld [vmem:[#allocation9 + $0x1798] sm:$0xff]
        %v3559 = vld [vmem:[#allocation9 + $0x17a0] sm:$0xff]
        %v3560 = vld [vmem:[#allocation9 + $0x17a8] sm:$0xff]
        %v3561 = vld [vmem:[#allocation9 + $0x17b0] sm:$0xff]
        %v3562 = vld [vmem:[#allocation9 + $0x17b8] sm:$0xff]
        %v3563 = vld [vmem:[#allocation9 + $0x17c0] sm:$0xff]
        %v3564 = vld [vmem:[#allocation9 + $0x17c8] sm:$0xff]
        %v3565 = vld [vmem:[#allocation9 + $0x17d0] sm:$0xff]
        %v3566 = vld [vmem:[#allocation9 + $0x17d8] sm:$0xff]
        %v3567 = vld [vmem:[#allocation9 + $0x17e0] sm:$0xff]
        %v3568 = vld [vmem:[#allocation9 + $0x17e8] sm:$0xff]
        %v3569 = vld [vmem:[#allocation9 + $0x17f0] sm:$0xff]
        %v3570 = vld [vmem:[#allocation9 + $0x17f8] sm:$0xff]
        %v3571 = vld [vmem:[#allocation9 + $0x1800] sm:$0xff]
        %v3572 = vld [vmem:[#allocation9 + $0x1808] sm:$0xff]
        %v3573 = vld [vmem:[#allocation9 + $0x1810] sm:$0xff]
        %v3574 = vld [vmem:[#allocation9 + $0x1818] sm:$0xff]
        %v3575 = vld [vmem:[#allocation9 + $0x1820] sm:$0xff]
        %v3576 = vld [vmem:[#allocation9 + $0x1828] sm:$0xff]
        %v3577 = vld [vmem:[#allocation9 + $0x1830] sm:$0xff]
        %v3578 = vld [vmem:[#allocation9 + $0x1838] sm:$0xff]
        %v3579 = vld [vmem:[#allocation9 + $0x1840] sm:$0xff]
        %v3580 = vld [vmem:[#allocation9 + $0x1848] sm:$0xff]
        %v3581 = vld [vmem:[#allocation9 + $0x1850] sm:$0xff]
        %v3582 = vld [vmem:[#allocation9 + $0x1858] sm:$0xff]
        %v3583 = vld [vmem:[#allocation9 + $0x1860] sm:$0xff]
        %v3584 = vld [vmem:[#allocation9 + $0x1868] sm:$0xff]
        %v3585 = vld [vmem:[#allocation9 + $0x1870] sm:$0xff]
        %v3586 = vld [vmem:[#allocation9 + $0x1878] sm:$0xff]
        %v3587 = vld [vmem:[#allocation9 + $0x1880] sm:$0xff]
        %v3588 = vld [vmem:[#allocation9 + $0x1888] sm:$0xff]
        %v3589 = vld [vmem:[#allocation9 + $0x1890] sm:$0xff]
        %v3590 = vld [vmem:[#allocation9 + $0x1898] sm:$0xff]
        %v3591 = vld [vmem:[#allocation9 + $0x18a0] sm:$0xff]
        %v3592 = vld [vmem:[#allocation9 + $0x18a8] sm:$0xff]
        %v3593 = vld [vmem:[#allocation9 + $0x18b0] sm:$0xff]
        %v3594 = vld [vmem:[#allocation9 + $0x18b8] sm:$0xff]
        %v3595 = vld [vmem:[#allocation9 + $0x18c0] sm:$0xff]
        %v3596 = vld [vmem:[#allocation9 + $0x18c8] sm:$0xff]
        %v3597 = vld [vmem:[#allocation9 + $0x18d0] sm:$0xff]
        %v3598 = vld [vmem:[#allocation9 + $0x18d8] sm:$0xff]
        %v3599 = vld [vmem:[#allocation9 + $0x18e0] sm:$0xff]
        %v3600 = vld [vmem:[#allocation9 + $0x18e8] sm:$0xff]
        %v3601 = vld [vmem:[#allocation9 + $0x18f0] sm:$0xff]
        %v3602 = vld [vmem:[#allocation9 + $0x18f8] sm:$0xff]
        %v3603 = vld [vmem:[#allocation9 + $0x1900] sm:$0xff]
        %v3604 = vld [vmem:[#allocation9 + $0x1908] sm:$0xff]
        %v3605 = vld [vmem:[#allocation9 + $0x1910] sm:$0xff]
        %v3606 = vld [vmem:[#allocation9 + $0x1918] sm:$0xff]
        %v3607 = vld [vmem:[#allocation9 + $0x1920] sm:$0xff]
        %v3608 = vld [vmem:[#allocation9 + $0x1928] sm:$0xff]
        %v3609 = vld [vmem:[#allocation9 + $0x1930] sm:$0xff]
        %v3610 = vld [vmem:[#allocation9 + $0x1938] sm:$0xff]
        %v3611 = vld [vmem:[#allocation9 + $0x1940] sm:$0xff]
        %v3612 = vld [vmem:[#allocation9 + $0x1948] sm:$0xff]
        %v3613 = vld [vmem:[#allocation9 + $0x1950] sm:$0xff]
        %v3614 = vld [vmem:[#allocation9 + $0x1958] sm:$0xff]
        %v3615 = vld [vmem:[#allocation9 + $0x1960] sm:$0xff]
        %v3616 = vld [vmem:[#allocation9 + $0x1968] sm:$0xff]
        %v3617 = vld [vmem:[#allocation9 + $0x1970] sm:$0xff]
        %v3618 = vld [vmem:[#allocation9 + $0x1978] sm:$0xff]
        %v3619 = vld [vmem:[#allocation9 + $0x1980] sm:$0xff]
        %v3620 = vld [vmem:[#allocation9 + $0x1988] sm:$0xff]
        %v3621 = vld [vmem:[#allocation9 + $0x1990] sm:$0xff]
        %v3622 = vld [vmem:[#allocation9 + $0x1998] sm:$0xff]
        %v3623 = vld [vmem:[#allocation9 + $0x19a0] sm:$0xff]
        %v3624 = vld [vmem:[#allocation9 + $0x19a8] sm:$0xff]
        %v3625 = vld [vmem:[#allocation9 + $0x19b0] sm:$0xff]
        %v3626 = vld [vmem:[#allocation9 + $0x19b8] sm:$0xff]
        %v3627 = vld [vmem:[#allocation9 + $0x19c0] sm:$0xff]
        %v3628 = vld [vmem:[#allocation9 + $0x19c8] sm:$0xff]
        %v3629 = vld [vmem:[#allocation9 + $0x19d0] sm:$0xff]
        %v3630 = vld [vmem:[#allocation9 + $0x19d8] sm:$0xff]
        %v3631 = vld [vmem:[#allocation9 + $0x19e0] sm:$0xff]
        %v3632 = vld [vmem:[#allocation9 + $0x19e8] sm:$0xff]
        %v3633 = vld [vmem:[#allocation9 + $0x19f0] sm:$0xff]
        %v3634 = vld [vmem:[#allocation9 + $0x19f8] sm:$0xff]
        %v3635 = vld [vmem:[#allocation9 + $0x1a00] sm:$0xff]
        %v3636 = vld [vmem:[#allocation9 + $0x1a08] sm:$0xff]
        %v3637 = vld [vmem:[#allocation9 + $0x1a10] sm:$0xff]
        %v3638 = vld [vmem:[#allocation9 + $0x1a18] sm:$0xff]
        %v3639 = vld [vmem:[#allocation9 + $0x1a20] sm:$0xff]
        %v3640 = vld [vmem:[#allocation9 + $0x1a28] sm:$0xff]
        %v3641 = vld [vmem:[#allocation9 + $0x1a30] sm:$0xff]
        %v3642 = vld [vmem:[#allocation9 + $0x1a38] sm:$0xff]
        %v3643 = vld [vmem:[#allocation9 + $0x1a40] sm:$0xff]
        %v3644 = vld [vmem:[#allocation9 + $0x1a48] sm:$0xff]
        %v3645 = vld [vmem:[#allocation9 + $0x1a50] sm:$0xff]
        %v3646 = vld [vmem:[#allocation9 + $0x1a58] sm:$0xff]
        %v3647 = vld [vmem:[#allocation9 + $0x1a60] sm:$0xff]
        %v3648 = vld [vmem:[#allocation9 + $0x1a68] sm:$0xff]
        %v3649 = vld [vmem:[#allocation9 + $0x1a70] sm:$0xff]
        %v3650 = vld [vmem:[#allocation9 + $0x1a78] sm:$0xff]
        %v3651 = vld [vmem:[#allocation9 + $0x1a80] sm:$0xff]
        %v3652 = vld [vmem:[#allocation9 + $0x1a88] sm:$0xff]
        %v3653 = vld [vmem:[#allocation9 + $0x1a90] sm:$0xff]
        %v3654 = vld [vmem:[#allocation9 + $0x1a98] sm:$0xff]
        %v3655 = vld [vmem:[#allocation9 + $0x1aa0] sm:$0xff]
        %v3656 = vld [vmem:[#allocation9 + $0x1aa8] sm:$0xff]
        %v3657 = vld [vmem:[#allocation9 + $0x1ab0] sm:$0xff]
        %v3658 = vld [vmem:[#allocation9 + $0x1ab8] sm:$0xff]
        %v3659 = vld [vmem:[#allocation9 + $0x1ac0] sm:$0xff]
        %v3660 = vld [vmem:[#allocation9 + $0x1ac8] sm:$0xff]
        %v3661 = vld [vmem:[#allocation9 + $0x1ad0] sm:$0xff]
        %v3662 = vld [vmem:[#allocation9 + $0x1ad8] sm:$0xff]
        %v3663 = vld [vmem:[#allocation9 + $0x1ae0] sm:$0xff]
        %v3664 = vld [vmem:[#allocation9 + $0x1ae8] sm:$0xff]
        %v3665 = vld [vmem:[#allocation9 + $0x1af0] sm:$0xff]
        %v3666 = vld [vmem:[#allocation9 + $0x1af8] sm:$0xff]
        %v3667 = vld [vmem:[#allocation9 + $0x1b00] sm:$0xff]
        %v3668 = vld [vmem:[#allocation9 + $0x1b08] sm:$0xff]
        %v3669 = vld [vmem:[#allocation9 + $0x1b10] sm:$0xff]
        %v3670 = vld [vmem:[#allocation9 + $0x1b18] sm:$0xff]
        %v3671 = vld [vmem:[#allocation9 + $0x1b20] sm:$0xff]
        %v3672 = vld [vmem:[#allocation9 + $0x1b28] sm:$0xff]
        %v3673 = vld [vmem:[#allocation9 + $0x1b30] sm:$0xff]
        %v3674 = vld [vmem:[#allocation9 + $0x1b38] sm:$0xff]
        %v3675 = vld [vmem:[#allocation9 + $0x1b40] sm:$0xff]
        %v3676 = vld [vmem:[#allocation9 + $0x1b48] sm:$0xff]
        %v3677 = vld [vmem:[#allocation9 + $0x1b50] sm:$0xff]
        %v3678 = vld [vmem:[#allocation9 + $0x1b58] sm:$0xff]
        %v3679 = vld [vmem:[#allocation9 + $0x1b60] sm:$0xff]
        %v3680 = vld [vmem:[#allocation9 + $0x1b68] sm:$0xff]
        %v3681 = vld [vmem:[#allocation9 + $0x1b70] sm:$0xff]
        %v3682 = vld [vmem:[#allocation9 + $0x1b78] sm:$0xff]
        %v3683 = vld [vmem:[#allocation9 + $0x1b80] sm:$0xff]
        %v3684 = vld [vmem:[#allocation9 + $0x1b88] sm:$0xff]
        %v3685 = vld [vmem:[#allocation9 + $0x1b90] sm:$0xff]
        %v3686 = vld [vmem:[#allocation9 + $0x1b98] sm:$0xff]
        %v3687 = vld [vmem:[#allocation9 + $0x1ba0] sm:$0xff]
        %v3688 = vld [vmem:[#allocation9 + $0x1ba8] sm:$0xff]
        %v3689 = vld [vmem:[#allocation9 + $0x1bb0] sm:$0xff]
        %v3690 = vld [vmem:[#allocation9 + $0x1bb8] sm:$0xff]
        %v3691 = vld [vmem:[#allocation9 + $0x1bc0] sm:$0xff]
        %v3692 = vld [vmem:[#allocation9 + $0x1bc8] sm:$0xff]
        %v3693 = vld [vmem:[#allocation9 + $0x1bd0] sm:$0xff]
        %v3694 = vld [vmem:[#allocation9 + $0x1bd8] sm:$0xff]
        %v3695 = vld [vmem:[#allocation9 + $0x1be0] sm:$0xff]
        %v3696 = vld [vmem:[#allocation9 + $0x1be8] sm:$0xff]
        %v3697 = vld [vmem:[#allocation9 + $0x1bf0] sm:$0xff]
        %v3698 = vld [vmem:[#allocation9 + $0x1bf8] sm:$0xff]
        %v3699 = vld [vmem:[#allocation9 + $0x1c00] sm:$0xff]
        %v3700 = vld [vmem:[#allocation9 + $0x1c08] sm:$0xff]
        %v3701 = vld [vmem:[#allocation9 + $0x1c10] sm:$0xff]
        %v3702 = vld [vmem:[#allocation9 + $0x1c18] sm:$0xff]
        %v3703 = vld [vmem:[#allocation9 + $0x1c20] sm:$0xff]
        %v3704 = vld [vmem:[#allocation9 + $0x1c28] sm:$0xff]
        %v3705 = vld [vmem:[#allocation9 + $0x1c30] sm:$0xff]
        %v3706 = vld [vmem:[#allocation9 + $0x1c38] sm:$0xff]
        %v3707 = vld [vmem:[#allocation9 + $0x1c40] sm:$0xff]
        %v3708 = vld [vmem:[#allocation9 + $0x1c48] sm:$0xff]
        %v3709 = vld [vmem:[#allocation9 + $0x1c50] sm:$0xff]
        %v3710 = vld [vmem:[#allocation9 + $0x1c58] sm:$0xff]
        %v3711 = vld [vmem:[#allocation9 + $0x1c60] sm:$0xff]
        %v3712 = vld [vmem:[#allocation9 + $0x1c68] sm:$0xff]
        %v3713 = vld [vmem:[#allocation9 + $0x1c70] sm:$0xff]
        %v3714 = vld [vmem:[#allocation9 + $0x1c78] sm:$0xff]
        %v3715 = vld [vmem:[#allocation9 + $0x1c80] sm:$0xff]
        %v3716 = vld [vmem:[#allocation9 + $0x1c88] sm:$0xff]
        %v3717 = vld [vmem:[#allocation9 + $0x1c90] sm:$0xff]
        %v3718 = vld [vmem:[#allocation9 + $0x1c98] sm:$0xff]
        %v3719 = vld [vmem:[#allocation9 + $0x1ca0] sm:$0xff]
        %v3720 = vld [vmem:[#allocation9 + $0x1ca8] sm:$0xff]
        %v3721 = vld [vmem:[#allocation9 + $0x1cb0] sm:$0xff]
        %v3722 = vld [vmem:[#allocation9 + $0x1cb8] sm:$0xff]
        %v3723 = vld [vmem:[#allocation9 + $0x1cc0] sm:$0xff]
        %v3724 = vld [vmem:[#allocation9 + $0x1cc8] sm:$0xff]
        %v3725 = vld [vmem:[#allocation9 + $0x1cd0] sm:$0xff]
        %v3726 = vld [vmem:[#allocation9 + $0x1cd8] sm:$0xff]
        %v3727 = vld [vmem:[#allocation9 + $0x1ce0] sm:$0xff]
        %v3728 = vld [vmem:[#allocation9 + $0x1ce8] sm:$0xff]
        %v3729 = vld [vmem:[#allocation9 + $0x1cf0] sm:$0xff]
        %v3730 = vld [vmem:[#allocation9 + $0x1cf8] sm:$0xff]
        %v3731 = vld [vmem:[#allocation9 + $0x1d00] sm:$0xff]
        %v3732 = vld [vmem:[#allocation9 + $0x1d08] sm:$0xff]
        %v3733 = vld [vmem:[#allocation9 + $0x1d10] sm:$0xff]
        %v3734 = vld [vmem:[#allocation9 + $0x1d18] sm:$0xff]
        %v3735 = vld [vmem:[#allocation9 + $0x1d20] sm:$0xff]
        %v3736 = vld [vmem:[#allocation9 + $0x1d28] sm:$0xff]
        %v3737 = vld [vmem:[#allocation9 + $0x1d30] sm:$0xff]
        %v3738 = vld [vmem:[#allocation9 + $0x1d38] sm:$0xff]
        %v3739 = vld [vmem:[#allocation9 + $0x1d40] sm:$0xff]
        %v3740 = vld [vmem:[#allocation9 + $0x1d48] sm:$0xff]
        %v3741 = vld [vmem:[#allocation9 + $0x1d50] sm:$0xff]
        %v3742 = vld [vmem:[#allocation9 + $0x1d58] sm:$0xff]
        %v3743 = vld [vmem:[#allocation9 + $0x1d60] sm:$0xff]
        %v3744 = vld [vmem:[#allocation9 + $0x1d68] sm:$0xff]
        %v3745 = vld [vmem:[#allocation9 + $0x1d70] sm:$0xff]
        %v3746 = vld [vmem:[#allocation9 + $0x1d78] sm:$0xff]
        %v3747 = vld [vmem:[#allocation9 + $0x1d80] sm:$0xff]
        %v3748 = vld [vmem:[#allocation9 + $0x1d88] sm:$0xff]
        %v3749 = vld [vmem:[#allocation9 + $0x1d90] sm:$0xff]
        %v3750 = vld [vmem:[#allocation9 + $0x1d98] sm:$0xff]
        %v3751 = vld [vmem:[#allocation9 + $0x1da0] sm:$0xff]
        %v3752 = vld [vmem:[#allocation9 + $0x1da8] sm:$0xff]
        %v3753 = vld [vmem:[#allocation9 + $0x1db0] sm:$0xff]
        %v3754 = vld [vmem:[#allocation9 + $0x1db8] sm:$0xff]
        %v3755 = vld [vmem:[#allocation9 + $0x1dc0] sm:$0xff]
        %v3756 = vld [vmem:[#allocation9 + $0x1dc8] sm:$0xff]
        %v3757 = vld [vmem:[#allocation9 + $0x1dd0] sm:$0xff]
        %v3758 = vld [vmem:[#allocation9 + $0x1dd8] sm:$0xff]
        %v3759 = vld [vmem:[#allocation9 + $0x1de0] sm:$0xff]
        %v3760 = vld [vmem:[#allocation9 + $0x1de8] sm:$0xff]
        %v3761 = vld [vmem:[#allocation9 + $0x1df0] sm:$0xff]
        %v3762 = vld [vmem:[#allocation9 + $0x1df8] sm:$0xff]
        %v3763 = vld [vmem:[#allocation9 + $0x1e00] sm:$0xff]
        %v3764 = vld [vmem:[#allocation9 + $0x1e08] sm:$0xff]
        %v3765 = vld [vmem:[#allocation9 + $0x1e10] sm:$0xff]
        %v3766 = vld [vmem:[#allocation9 + $0x1e18] sm:$0xff]
        %v3767 = vld [vmem:[#allocation9 + $0x1e20] sm:$0xff]
        %v3768 = vld [vmem:[#allocation9 + $0x1e28] sm:$0xff]
        %v3769 = vld [vmem:[#allocation9 + $0x1e30] sm:$0xff]
        %v3770 = vld [vmem:[#allocation9 + $0x1e38] sm:$0xff]
        %v3771 = vld [vmem:[#allocation9 + $0x1e40] sm:$0xff]
        %v3772 = vld [vmem:[#allocation9 + $0x1e48] sm:$0xff]
        %v3773 = vld [vmem:[#allocation9 + $0x1e50] sm:$0xff]
        %v3774 = vld [vmem:[#allocation9 + $0x1e58] sm:$0xff]
        %v3775 = vld [vmem:[#allocation9 + $0x1e60] sm:$0xff]
        %v3776 = vld [vmem:[#allocation9 + $0x1e68] sm:$0xff]
        %v3777 = vld [vmem:[#allocation9 + $0x1e70] sm:$0xff]
        %v3778 = vld [vmem:[#allocation9 + $0x1e78] sm:$0xff]
        %v3779 = vld [vmem:[#allocation9 + $0x1e80] sm:$0xff]
        %v3780 = vld [vmem:[#allocation9 + $0x1e88] sm:$0xff]
        %v3781 = vld [vmem:[#allocation9 + $0x1e90] sm:$0xff]
        %v3782 = vld [vmem:[#allocation9 + $0x1e98] sm:$0xff]
        %v3783 = vld [vmem:[#allocation9 + $0x1ea0] sm:$0xff]
        %v3784 = vld [vmem:[#allocation9 + $0x1ea8] sm:$0xff]
        %v3785 = vld [vmem:[#allocation9 + $0x1eb0] sm:$0xff]
        %v3786 = vld [vmem:[#allocation9 + $0x1eb8] sm:$0xff]
        %v3787 = vld [vmem:[#allocation9 + $0x1ec0] sm:$0xff]
        %v3788 = vld [vmem:[#allocation9 + $0x1ec8] sm:$0xff]
        %v3789 = vld [vmem:[#allocation9 + $0x1ed0] sm:$0xff]
        %v3790 = vld [vmem:[#allocation9 + $0x1ed8] sm:$0xff]
        %v3791 = vld [vmem:[#allocation9 + $0x1ee0] sm:$0xff]
        %v3792 = vld [vmem:[#allocation9 + $0x1ee8] sm:$0xff]
        %v3793 = vld [vmem:[#allocation9 + $0x1ef0] sm:$0xff]
        %v3794 = vld [vmem:[#allocation9 + $0x1ef8] sm:$0xff]
        %v3795 = vld [vmem:[#allocation9 + $0x1f00] sm:$0xff]
        %v3796 = vld [vmem:[#allocation9 + $0x1f08] sm:$0xff]
        %v3797 = vld [vmem:[#allocation9 + $0x1f10] sm:$0xff]
        %v3798 = vld [vmem:[#allocation9 + $0x1f18] sm:$0xff]
        %v3799 = vld [vmem:[#allocation9 + $0x1f20] sm:$0xff]
        %v3800 = vld [vmem:[#allocation9 + $0x1f28] sm:$0xff]
        %v3801 = vld [vmem:[#allocation9 + $0x1f30] sm:$0xff]
        %v3802 = vld [vmem:[#allocation9 + $0x1f38] sm:$0xff]
        %v3803 = vld [vmem:[#allocation9 + $0x1f40] sm:$0xff]
        %v3804 = vld [vmem:[#allocation9 + $0x1f48] sm:$0xff]
        %v3805 = vld [vmem:[#allocation9 + $0x1f50] sm:$0xff]
        %v3806 = vld [vmem:[#allocation9 + $0x1f58] sm:$0xff]
        %v3807 = vld [vmem:[#allocation9 + $0x1f60] sm:$0xff]
        %v3808 = vld [vmem:[#allocation9 + $0x1f68] sm:$0xff]
        %v3809 = vld [vmem:[#allocation9 + $0x1f70] sm:$0xff]
        %v3810 = vld [vmem:[#allocation9 + $0x1f78] sm:$0xff]
        %v3811 = vld [vmem:[#allocation9 + $0x1f80] sm:$0xff]
        %v3812 = vld [vmem:[#allocation9 + $0x1f88] sm:$0xff]
        %v3813 = vld [vmem:[#allocation9 + $0x1f90] sm:$0xff]
        %v3814 = vld [vmem:[#allocation9 + $0x1f98] sm:$0xff]
        %v3815 = vld [vmem:[#allocation9 + $0x1fa0] sm:$0xff]
        %v3816 = vld [vmem:[#allocation9 + $0x1fa8] sm:$0xff]
        %v3817 = vld [vmem:[#allocation9 + $0x1fb0] sm:$0xff]
        %v3818 = vld [vmem:[#allocation9 + $0x1fb8] sm:$0xff]
        %v3819 = vld [vmem:[#allocation9 + $0x1fc0] sm:$0xff]
        %v3820 = vld [vmem:[#allocation9 + $0x1fc8] sm:$0xff]
        %v3821 = vld [vmem:[#allocation9 + $0x1fd0] sm:$0xff]
        %v3822 = vld [vmem:[#allocation9 + $0x1fd8] sm:$0xff]
        %v3823 = vld [vmem:[#allocation9 + $0x1fe0] sm:$0xff]
        %v3824 = vld [vmem:[#allocation9 + $0x1fe8] sm:$0xff]
        %v3825 = vld [vmem:[#allocation9 + $0x1ff0] sm:$0xff]
        %v3826 = vld [vmem:[#allocation9 + $0x1ff8] sm:$0xff]
        %3827 = vmatpush.msra.mxu0 %v2818
        %3828 = vmatpush.msra.mxu0 %v2817
        %3829 = vmatpush.msra.mxu0 %v2816
        %3830 = vmatpush.msra.mxu0 %v2815
        %3831 = vmatpush.msra.mxu0 %v2814
        %3832 = vmatpush.msra.mxu0 %v2813
        %3833 = vmatpush.msra.mxu0 %v2812
        %3834 = vmatpush.msra.mxu0 %v2811
        %3835 = vmatpush.msra.mxu0 %v2810
        %3836 = vmatpush.msra.mxu0 %v2809
        %3837 = vmatpush.msra.mxu0 %v2808
        %3838 = vmatpush.msra.mxu0 %v2807
        %3839 = vmatpush.msra.mxu0 %v2806
        %3840 = vmatpush.msra.mxu0 %v2805
        %3841 = vmatpush.msra.mxu0 %v2804
        %3842 = vmatpush.msra.mxu0 %v2803
        %3843 = vmatmul.f32.gmra.mxu0 %v2739
        %v3844 = vpop.f32.mrf.mxu0
        %v3845 = vadd.f32 0.0, %v3844
        %3846 = vdwg.mxu0
        %3847 = vmatpush.msra.mxu0 %v2834
        %3848 = vmatpush.msra.mxu0 %v2833
        %3849 = vmatpush.msra.mxu0 %v2832
        %3850 = vmatpush.msra.mxu0 %v2831
        %3851 = vmatpush.msra.mxu0 %v2830
        %3852 = vmatpush.msra.mxu0 %v2829
        %3853 = vmatpush.msra.mxu0 %v2828
        %3854 = vmatpush.msra.mxu0 %v2827
        %3855 = vmatpush.msra.mxu0 %v2826
        %3856 = vmatpush.msra.mxu0 %v2825
        %3857 = vmatpush.msra.mxu0 %v2824
        %3858 = vmatpush.msra.mxu0 %v2823
        %3859 = vmatpush.msra.mxu0 %v2822
        %3860 = vmatpush.msra.mxu0 %v2821
        %3861 = vmatpush.msra.mxu0 %v2820
        %3862 = vmatpush.msra.mxu0 %v2819
        %3863 = vmatmul.f32.gmra.mxu0 %v2740
        %v3864 = vpop.f32.mrf.mxu0
        %v3865 = vadd.f32 %v3845, %v3864
        %3866 = vdwg.mxu0
        %3867 = vmatpush.msra.mxu0 %v2850
        %3868 = vmatpush.msra.mxu0 %v2849
        %3869 = vmatpush.msra.mxu0 %v2848
        %3870 = vmatpush.msra.mxu0 %v2847
        %3871 = vmatpush.msra.mxu0 %v2846
        %3872 = vmatpush.msra.mxu0 %v2845
        %3873 = vmatpush.msra.mxu0 %v2844
        %3874 = vmatpush.msra.mxu0 %v2843
        %3875 = vmatpush.msra.mxu0 %v2842
        %3876 = vmatpush.msra.mxu0 %v2841
        %3877 = vmatpush.msra.mxu0 %v2840
        %3878 = vmatpush.msra.mxu0 %v2839
        %3879 = vmatpush.msra.mxu0 %v2838
        %3880 = vmatpush.msra.mxu0 %v2837
        %3881 = vmatpush.msra.mxu0 %v2836
        %3882 = vmatpush.msra.mxu0 %v2835
        %3883 = vmatmul.f32.gmra.mxu0 %v2741
        %v3884 = vpop.f32.mrf.mxu0
        %v3885 = vadd.f32 %v3865, %v3884
        %3886 = vdwg.mxu0
        %3887 = vmatpush.msra.mxu0 %v2866
        %3888 = vmatpush.msra.mxu0 %v2865
        %3889 = vmatpush.msra.mxu0 %v2864
        %3890 = vmatpush.msra.mxu0 %v2863
        %3891 = vmatpush.msra.mxu0 %v2862
        %3892 = vmatpush.msra.mxu0 %v2861
        %3893 = vmatpush.msra.mxu0 %v2860
        %3894 = vmatpush.msra.mxu0 %v2859
        %3895 = vmatpush.msra.mxu0 %v2858
        %3896 = vmatpush.msra.mxu0 %v2857
        %3897 = vmatpush.msra.mxu0 %v2856
        %3898 = vmatpush.msra.mxu0 %v2855
        %3899 = vmatpush.msra.mxu0 %v2854
        %3900 = vmatpush.msra.mxu0 %v2853
        %3901 = vmatpush.msra.mxu0 %v2852
        %3902 = vmatpush.msra.mxu0 %v2851
        %3903 = vmatmul.f32.gmra.mxu0 %v2742
        %v3904 = vpop.f32.mrf.mxu0
        %v3905 = vadd.f32 %v3885, %v3904
        %3906 = vdwg.mxu0
        %3907 = vmatpush.msra.mxu0 %v2882
        %3908 = vmatpush.msra.mxu0 %v2881
        %3909 = vmatpush.msra.mxu0 %v2880
        %3910 = vmatpush.msra.mxu0 %v2879
        %3911 = vmatpush.msra.mxu0 %v2878
        %3912 = vmatpush.msra.mxu0 %v2877
        %3913 = vmatpush.msra.mxu0 %v2876
        %3914 = vmatpush.msra.mxu0 %v2875
        %3915 = vmatpush.msra.mxu0 %v2874
        %3916 = vmatpush.msra.mxu0 %v2873
        %3917 = vmatpush.msra.mxu0 %v2872
        %3918 = vmatpush.msra.mxu0 %v2871
        %3919 = vmatpush.msra.mxu0 %v2870
        %3920 = vmatpush.msra.mxu0 %v2869
        %3921 = vmatpush.msra.mxu0 %v2868
        %3922 = vmatpush.msra.mxu0 %v2867
        %3923 = vmatmul.f32.gmra.mxu0 %v2743
        %v3924 = vpop.f32.mrf.mxu0
        %v3925 = vadd.f32 %v3905, %v3924
        %3926 = vdwg.mxu0
        %3927 = vmatpush.msra.mxu0 %v2898
        %3928 = vmatpush.msra.mxu0 %v2897
        %3929 = vmatpush.msra.mxu0 %v2896
        %3930 = vmatpush.msra.mxu0 %v2895
        %3931 = vmatpush.msra.mxu0 %v2894
        %3932 = vmatpush.msra.mxu0 %v2893
        %3933 = vmatpush.msra.mxu0 %v2892
        %3934 = vmatpush.msra.mxu0 %v2891
        %3935 = vmatpush.msra.mxu0 %v2890
        %3936 = vmatpush.msra.mxu0 %v2889
        %3937 = vmatpush.msra.mxu0 %v2888
        %3938 = vmatpush.msra.mxu0 %v2887
        %3939 = vmatpush.msra.mxu0 %v2886
        %3940 = vmatpush.msra.mxu0 %v2885
        %3941 = vmatpush.msra.mxu0 %v2884
        %3942 = vmatpush.msra.mxu0 %v2883
        %3943 = vmatmul.f32.gmra.mxu0 %v2744
        %v3944 = vpop.f32.mrf.mxu0
        %v3945 = vadd.f32 %v3925, %v3944
        %3946 = vdwg.mxu0
        %3947 = vmatpush.msra.mxu0 %v2914
        %3948 = vmatpush.msra.mxu0 %v2913
        %3949 = vmatpush.msra.mxu0 %v2912
        %3950 = vmatpush.msra.mxu0 %v2911
        %3951 = vmatpush.msra.mxu0 %v2910
        %3952 = vmatpush.msra.mxu0 %v2909
        %3953 = vmatpush.msra.mxu0 %v2908
        %3954 = vmatpush.msra.mxu0 %v2907
        %3955 = vmatpush.msra.mxu0 %v2906
        %3956 = vmatpush.msra.mxu0 %v2905
        %3957 = vmatpush.msra.mxu0 %v2904
        %3958 = vmatpush.msra.mxu0 %v2903
        %3959 = vmatpush.msra.mxu0 %v2902
        %3960 = vmatpush.msra.mxu0 %v2901
        %3961 = vmatpush.msra.mxu0 %v2900
        %3962 = vmatpush.msra.mxu0 %v2899
        %3963 = vmatmul.f32.gmra.mxu0 %v2745
        %v3964 = vpop.f32.mrf.mxu0
        %v3965 = vadd.f32 %v3945, %v3964
        %3966 = vdwg.mxu0
        %3967 = vmatpush.msra.mxu0 %v2930
        %3968 = vmatpush.msra.mxu0 %v2929
        %3969 = vmatpush.msra.mxu0 %v2928
        %3970 = vmatpush.msra.mxu0 %v2927
        %3971 = vmatpush.msra.mxu0 %v2926
        %3972 = vmatpush.msra.mxu0 %v2925
        %3973 = vmatpush.msra.mxu0 %v2924
        %3974 = vmatpush.msra.mxu0 %v2923
        %3975 = vmatpush.msra.mxu0 %v2922
        %3976 = vmatpush.msra.mxu0 %v2921
        %3977 = vmatpush.msra.mxu0 %v2920
        %3978 = vmatpush.msra.mxu0 %v2919
        %3979 = vmatpush.msra.mxu0 %v2918
        %3980 = vmatpush.msra.mxu0 %v2917
        %3981 = vmatpush.msra.mxu0 %v2916
        %3982 = vmatpush.msra.mxu0 %v2915
        %3983 = vmatmul.f32.gmra.mxu0 %v2746
        %v3984 = vpop.f32.mrf.mxu0
        %v3985 = vadd.f32 %v3965, %v3984
        %3986 = vdwg.mxu0
        %3987 = vmatpush.msra.mxu0 %v2946
        %3988 = vmatpush.msra.mxu0 %v2945
        %3989 = vmatpush.msra.mxu0 %v2944
        %3990 = vmatpush.msra.mxu0 %v2943
        %3991 = vmatpush.msra.mxu0 %v2942
        %3992 = vmatpush.msra.mxu0 %v2941
        %3993 = vmatpush.msra.mxu0 %v2940
        %3994 = vmatpush.msra.mxu0 %v2939
        %3995 = vmatpush.msra.mxu0 %v2938
        %3996 = vmatpush.msra.mxu0 %v2937
        %3997 = vmatpush.msra.mxu0 %v2936
        %3998 = vmatpush.msra.mxu0 %v2935
        %3999 = vmatpush.msra.mxu0 %v2934
        %4000 = vmatpush.msra.mxu0 %v2933
        %4001 = vmatpush.msra.mxu0 %v2932
        %4002 = vmatpush.msra.mxu0 %v2931
        %4003 = vmatmul.f32.gmra.mxu0 %v2747
        %v4004 = vpop.f32.mrf.mxu0
        %v4005 = vadd.f32 %v3985, %v4004
        %4006 = vdwg.mxu0
        %4007 = vmatpush.msra.mxu0 %v2962
        %4008 = vmatpush.msra.mxu0 %v2961
        %4009 = vmatpush.msra.mxu0 %v2960
        %4010 = vmatpush.msra.mxu0 %v2959
        %4011 = vmatpush.msra.mxu0 %v2958
        %4012 = vmatpush.msra.mxu0 %v2957
        %4013 = vmatpush.msra.mxu0 %v2956
        %4014 = vmatpush.msra.mxu0 %v2955
        %4015 = vmatpush.msra.mxu0 %v2954
        %4016 = vmatpush.msra.mxu0 %v2953
        %4017 = vmatpush.msra.mxu0 %v2952
        %4018 = vmatpush.msra.mxu0 %v2951
        %4019 = vmatpush.msra.mxu0 %v2950
        %4020 = vmatpush.msra.mxu0 %v2949
        %4021 = vmatpush.msra.mxu0 %v2948
        %4022 = vmatpush.msra.mxu0 %v2947
        %4023 = vmatmul.f32.gmra.mxu0 %v2748
        %v4024 = vpop.f32.mrf.mxu0
        %v4025 = vadd.f32 %v4005, %v4024
        %4026 = vdwg.mxu0
        %4027 = vmatpush.msra.mxu0 %v2978
        %4028 = vmatpush.msra.mxu0 %v2977
        %4029 = vmatpush.msra.mxu0 %v2976
        %4030 = vmatpush.msra.mxu0 %v2975
        %4031 = vmatpush.msra.mxu0 %v2974
        %4032 = vmatpush.msra.mxu0 %v2973
        %4033 = vmatpush.msra.mxu0 %v2972
        %4034 = vmatpush.msra.mxu0 %v2971
        %4035 = vmatpush.msra.mxu0 %v2970
        %4036 = vmatpush.msra.mxu0 %v2969
        %4037 = vmatpush.msra.mxu0 %v2968
        %4038 = vmatpush.msra.mxu0 %v2967
        %4039 = vmatpush.msra.mxu0 %v2966
        %4040 = vmatpush.msra.mxu0 %v2965
        %4041 = vmatpush.msra.mxu0 %v2964
        %4042 = vmatpush.msra.mxu0 %v2963
        %4043 = vmatmul.f32.gmra.mxu0 %v2749
        %v4044 = vpop.f32.mrf.mxu0
        %v4045 = vadd.f32 %v4025, %v4044
        %4046 = vdwg.mxu0
        %4047 = vmatpush.msra.mxu0 %v2994
        %4048 = vmatpush.msra.mxu0 %v2993
        %4049 = vmatpush.msra.mxu0 %v2992
        %4050 = vmatpush.msra.mxu0 %v2991
        %4051 = vmatpush.msra.mxu0 %v2990
        %4052 = vmatpush.msra.mxu0 %v2989
        %4053 = vmatpush.msra.mxu0 %v2988
        %4054 = vmatpush.msra.mxu0 %v2987
        %4055 = vmatpush.msra.mxu0 %v2986
        %4056 = vmatpush.msra.mxu0 %v2985
        %4057 = vmatpush.msra.mxu0 %v2984
        %4058 = vmatpush.msra.mxu0 %v2983
        %4059 = vmatpush.msra.mxu0 %v2982
        %4060 = vmatpush.msra.mxu0 %v2981
        %4061 = vmatpush.msra.mxu0 %v2980
        %4062 = vmatpush.msra.mxu0 %v2979
        %4063 = vmatmul.f32.gmra.mxu0 %v2750
        %v4064 = vpop.f32.mrf.mxu0
        %v4065 = vadd.f32 %v4045, %v4064
        %4066 = vdwg.mxu0
        %4067 = vmatpush.msra.mxu0 %v3010
        %4068 = vmatpush.msra.mxu0 %v3009
        %4069 = vmatpush.msra.mxu0 %v3008
        %4070 = vmatpush.msra.mxu0 %v3007
        %4071 = vmatpush.msra.mxu0 %v3006
        %4072 = vmatpush.msra.mxu0 %v3005
        %4073 = vmatpush.msra.mxu0 %v3004
        %4074 = vmatpush.msra.mxu0 %v3003
        %4075 = vmatpush.msra.mxu0 %v3002
        %4076 = vmatpush.msra.mxu0 %v3001
        %4077 = vmatpush.msra.mxu0 %v3000
        %4078 = vmatpush.msra.mxu0 %v2999
        %4079 = vmatpush.msra.mxu0 %v2998
        %4080 = vmatpush.msra.mxu0 %v2997
        %4081 = vmatpush.msra.mxu0 %v2996
        %4082 = vmatpush.msra.mxu0 %v2995
        %4083 = vmatmul.f32.gmra.mxu0 %v2751
        %v4084 = vpop.f32.mrf.mxu0
        %v4085 = vadd.f32 %v4065, %v4084
        %4086 = vdwg.mxu0
        %4087 = vmatpush.msra.mxu0 %v3026
        %4088 = vmatpush.msra.mxu0 %v3025
        %4089 = vmatpush.msra.mxu0 %v3024
        %4090 = vmatpush.msra.mxu0 %v3023
        %4091 = vmatpush.msra.mxu0 %v3022
        %4092 = vmatpush.msra.mxu0 %v3021
        %4093 = vmatpush.msra.mxu0 %v3020
        %4094 = vmatpush.msra.mxu0 %v3019
        %4095 = vmatpush.msra.mxu0 %v3018
        %4096 = vmatpush.msra.mxu0 %v3017
        %4097 = vmatpush.msra.mxu0 %v3016
        %4098 = vmatpush.msra.mxu0 %v3015
        %4099 = vmatpush.msra.mxu0 %v3014
        %4100 = vmatpush.msra.mxu0 %v3013
        %4101 = vmatpush.msra.mxu0 %v3012
        %4102 = vmatpush.msra.mxu0 %v3011
        %4103 = vmatmul.f32.gmra.mxu0 %v2752
        %v4104 = vpop.f32.mrf.mxu0
        %v4105 = vadd.f32 %v4085, %v4104
        %4106 = vdwg.mxu0
        %4107 = vmatpush.msra.mxu0 %v3042
        %4108 = vmatpush.msra.mxu0 %v3041
        %4109 = vmatpush.msra.mxu0 %v3040
        %4110 = vmatpush.msra.mxu0 %v3039
        %4111 = vmatpush.msra.mxu0 %v3038
        %4112 = vmatpush.msra.mxu0 %v3037
        %4113 = vmatpush.msra.mxu0 %v3036
        %4114 = vmatpush.msra.mxu0 %v3035
        %4115 = vmatpush.msra.mxu0 %v3034
        %4116 = vmatpush.msra.mxu0 %v3033
        %4117 = vmatpush.msra.mxu0 %v3032
        %4118 = vmatpush.msra.mxu0 %v3031
        %4119 = vmatpush.msra.mxu0 %v3030
        %4120 = vmatpush.msra.mxu0 %v3029
        %4121 = vmatpush.msra.mxu0 %v3028
        %4122 = vmatpush.msra.mxu0 %v3027
        %4123 = vmatmul.f32.gmra.mxu0 %v2753
        %v4124 = vpop.f32.mrf.mxu0
        %v4125 = vadd.f32 %v4105, %v4124
        %4126 = vdwg.mxu0
        %4127 = vmatpush.msra.mxu0 %v3058
        %4128 = vmatpush.msra.mxu0 %v3057
        %4129 = vmatpush.msra.mxu0 %v3056
        %4130 = vmatpush.msra.mxu0 %v3055
        %4131 = vmatpush.msra.mxu0 %v3054
        %4132 = vmatpush.msra.mxu0 %v3053
        %4133 = vmatpush.msra.mxu0 %v3052
        %4134 = vmatpush.msra.mxu0 %v3051
        %4135 = vmatpush.msra.mxu0 %v3050
        %4136 = vmatpush.msra.mxu0 %v3049
        %4137 = vmatpush.msra.mxu0 %v3048
        %4138 = vmatpush.msra.mxu0 %v3047
        %4139 = vmatpush.msra.mxu0 %v3046
        %4140 = vmatpush.msra.mxu0 %v3045
        %4141 = vmatpush.msra.mxu0 %v3044
        %4142 = vmatpush.msra.mxu0 %v3043
        %4143 = vmatmul.f32.gmra.mxu0 %v2754
        %v4144 = vpop.f32.mrf.mxu0
        %v4145 = vadd.f32 %v4125, %v4144
        %4146 = vdwg.mxu0
        %4147 = vmatpush.msra.mxu0 %v3074
        %4148 = vmatpush.msra.mxu0 %v3073
        %4149 = vmatpush.msra.mxu0 %v3072
        %4150 = vmatpush.msra.mxu0 %v3071
        %4151 = vmatpush.msra.mxu0 %v3070
        %4152 = vmatpush.msra.mxu0 %v3069
        %4153 = vmatpush.msra.mxu0 %v3068
        %4154 = vmatpush.msra.mxu0 %v3067
        %4155 = vmatpush.msra.mxu0 %v3066
        %4156 = vmatpush.msra.mxu0 %v3065
        %4157 = vmatpush.msra.mxu0 %v3064
        %4158 = vmatpush.msra.mxu0 %v3063
        %4159 = vmatpush.msra.mxu0 %v3062
        %4160 = vmatpush.msra.mxu0 %v3061
        %4161 = vmatpush.msra.mxu0 %v3060
        %4162 = vmatpush.msra.mxu0 %v3059
        %4163 = vmatmul.f32.gmra.mxu0 %v2755
        %v4164 = vpop.f32.mrf.mxu0
        %v4165 = vadd.f32 %v4145, %v4164
        %4166 = vdwg.mxu0
        %4167 = vmatpush.msra.mxu0 %v3090
        %4168 = vmatpush.msra.mxu0 %v3089
        %4169 = vmatpush.msra.mxu0 %v3088
        %4170 = vmatpush.msra.mxu0 %v3087
        %4171 = vmatpush.msra.mxu0 %v3086
        %4172 = vmatpush.msra.mxu0 %v3085
        %4173 = vmatpush.msra.mxu0 %v3084
        %4174 = vmatpush.msra.mxu0 %v3083
        %4175 = vmatpush.msra.mxu0 %v3082
        %4176 = vmatpush.msra.mxu0 %v3081
        %4177 = vmatpush.msra.mxu0 %v3080
        %4178 = vmatpush.msra.mxu0 %v3079
        %4179 = vmatpush.msra.mxu0 %v3078
        %4180 = vmatpush.msra.mxu0 %v3077
        %4181 = vmatpush.msra.mxu0 %v3076
        %4182 = vmatpush.msra.mxu0 %v3075
        %4183 = vmatmul.f32.gmra.mxu0 %v2756
        %v4184 = vpop.f32.mrf.mxu0
        %v4185 = vadd.f32 %v4165, %v4184
        %4186 = vdwg.mxu0
        %4187 = vmatpush.msra.mxu0 %v3106
        %4188 = vmatpush.msra.mxu0 %v3105
        %4189 = vmatpush.msra.mxu0 %v3104
        %4190 = vmatpush.msra.mxu0 %v3103
        %4191 = vmatpush.msra.mxu0 %v3102
        %4192 = vmatpush.msra.mxu0 %v3101
        %4193 = vmatpush.msra.mxu0 %v3100
        %4194 = vmatpush.msra.mxu0 %v3099
        %4195 = vmatpush.msra.mxu0 %v3098
        %4196 = vmatpush.msra.mxu0 %v3097
        %4197 = vmatpush.msra.mxu0 %v3096
        %4198 = vmatpush.msra.mxu0 %v3095
        %4199 = vmatpush.msra.mxu0 %v3094
        %4200 = vmatpush.msra.mxu0 %v3093
        %4201 = vmatpush.msra.mxu0 %v3092
        %4202 = vmatpush.msra.mxu0 %v3091
        %4203 = vmatmul.f32.gmra.mxu0 %v2757
        %v4204 = vpop.f32.mrf.mxu0
        %v4205 = vadd.f32 %v4185, %v4204
        %4206 = vdwg.mxu0
        %4207 = vmatpush.msra.mxu0 %v3122
        %4208 = vmatpush.msra.mxu0 %v3121
        %4209 = vmatpush.msra.mxu0 %v3120
        %4210 = vmatpush.msra.mxu0 %v3119
        %4211 = vmatpush.msra.mxu0 %v3118
        %4212 = vmatpush.msra.mxu0 %v3117
        %4213 = vmatpush.msra.mxu0 %v3116
        %4214 = vmatpush.msra.mxu0 %v3115
        %4215 = vmatpush.msra.mxu0 %v3114
        %4216 = vmatpush.msra.mxu0 %v3113
        %4217 = vmatpush.msra.mxu0 %v3112
        %4218 = vmatpush.msra.mxu0 %v3111
        %4219 = vmatpush.msra.mxu0 %v3110
        %4220 = vmatpush.msra.mxu0 %v3109
        %4221 = vmatpush.msra.mxu0 %v3108
        %4222 = vmatpush.msra.mxu0 %v3107
        %4223 = vmatmul.f32.gmra.mxu0 %v2758
        %v4224 = vpop.f32.mrf.mxu0
        %v4225 = vadd.f32 %v4205, %v4224
        %4226 = vdwg.mxu0
        %4227 = vmatpush.msra.mxu0 %v3138
        %4228 = vmatpush.msra.mxu0 %v3137
        %4229 = vmatpush.msra.mxu0 %v3136
        %4230 = vmatpush.msra.mxu0 %v3135
        %4231 = vmatpush.msra.mxu0 %v3134
        %4232 = vmatpush.msra.mxu0 %v3133
        %4233 = vmatpush.msra.mxu0 %v3132
        %4234 = vmatpush.msra.mxu0 %v3131
        %4235 = vmatpush.msra.mxu0 %v3130
        %4236 = vmatpush.msra.mxu0 %v3129
        %4237 = vmatpush.msra.mxu0 %v3128
        %4238 = vmatpush.msra.mxu0 %v3127
        %4239 = vmatpush.msra.mxu0 %v3126
        %4240 = vmatpush.msra.mxu0 %v3125
        %4241 = vmatpush.msra.mxu0 %v3124
        %4242 = vmatpush.msra.mxu0 %v3123
        %4243 = vmatmul.f32.gmra.mxu0 %v2759
        %v4244 = vpop.f32.mrf.mxu0
        %v4245 = vadd.f32 %v4225, %v4244
        %4246 = vdwg.mxu0
        %4247 = vmatpush.msra.mxu0 %v3154
        %4248 = vmatpush.msra.mxu0 %v3153
        %4249 = vmatpush.msra.mxu0 %v3152
        %4250 = vmatpush.msra.mxu0 %v3151
        %4251 = vmatpush.msra.mxu0 %v3150
        %4252 = vmatpush.msra.mxu0 %v3149
        %4253 = vmatpush.msra.mxu0 %v3148
        %4254 = vmatpush.msra.mxu0 %v3147
        %4255 = vmatpush.msra.mxu0 %v3146
        %4256 = vmatpush.msra.mxu0 %v3145
        %4257 = vmatpush.msra.mxu0 %v3144
        %4258 = vmatpush.msra.mxu0 %v3143
        %4259 = vmatpush.msra.mxu0 %v3142
        %4260 = vmatpush.msra.mxu0 %v3141
        %4261 = vmatpush.msra.mxu0 %v3140
        %4262 = vmatpush.msra.mxu0 %v3139
        %4263 = vmatmul.f32.gmra.mxu0 %v2760
        %v4264 = vpop.f32.mrf.mxu0
        %v4265 = vadd.f32 %v4245, %v4264
        %4266 = vdwg.mxu0
        %4267 = vmatpush.msra.mxu0 %v3170
        %4268 = vmatpush.msra.mxu0 %v3169
        %4269 = vmatpush.msra.mxu0 %v3168
        %4270 = vmatpush.msra.mxu0 %v3167
        %4271 = vmatpush.msra.mxu0 %v3166
        %4272 = vmatpush.msra.mxu0 %v3165
        %4273 = vmatpush.msra.mxu0 %v3164
        %4274 = vmatpush.msra.mxu0 %v3163
        %4275 = vmatpush.msra.mxu0 %v3162
        %4276 = vmatpush.msra.mxu0 %v3161
        %4277 = vmatpush.msra.mxu0 %v3160
        %4278 = vmatpush.msra.mxu0 %v3159
        %4279 = vmatpush.msra.mxu0 %v3158
        %4280 = vmatpush.msra.mxu0 %v3157
        %4281 = vmatpush.msra.mxu0 %v3156
        %4282 = vmatpush.msra.mxu0 %v3155
        %4283 = vmatmul.f32.gmra.mxu0 %v2761
        %v4284 = vpop.f32.mrf.mxu0
        %v4285 = vadd.f32 %v4265, %v4284
        %4286 = vdwg.mxu0
        %4287 = vmatpush.msra.mxu0 %v3186
        %4288 = vmatpush.msra.mxu0 %v3185
        %4289 = vmatpush.msra.mxu0 %v3184
        %4290 = vmatpush.msra.mxu0 %v3183
        %4291 = vmatpush.msra.mxu0 %v3182
        %4292 = vmatpush.msra.mxu0 %v3181
        %4293 = vmatpush.msra.mxu0 %v3180
        %4294 = vmatpush.msra.mxu0 %v3179
        %4295 = vmatpush.msra.mxu0 %v3178
        %4296 = vmatpush.msra.mxu0 %v3177
        %4297 = vmatpush.msra.mxu0 %v3176
        %4298 = vmatpush.msra.mxu0 %v3175
        %4299 = vmatpush.msra.mxu0 %v3174
        %4300 = vmatpush.msra.mxu0 %v3173
        %4301 = vmatpush.msra.mxu0 %v3172
        %4302 = vmatpush.msra.mxu0 %v3171
        %4303 = vmatmul.f32.gmra.mxu0 %v2762
        %v4304 = vpop.f32.mrf.mxu0
        %v4305 = vadd.f32 %v4285, %v4304
        %4306 = vdwg.mxu0
        %4307 = vmatpush.msra.mxu0 %v3202
        %4308 = vmatpush.msra.mxu0 %v3201
        %4309 = vmatpush.msra.mxu0 %v3200
        %4310 = vmatpush.msra.mxu0 %v3199
        %4311 = vmatpush.msra.mxu0 %v3198
        %4312 = vmatpush.msra.mxu0 %v3197
        %4313 = vmatpush.msra.mxu0 %v3196
        %4314 = vmatpush.msra.mxu0 %v3195
        %4315 = vmatpush.msra.mxu0 %v3194
        %4316 = vmatpush.msra.mxu0 %v3193
        %4317 = vmatpush.msra.mxu0 %v3192
        %4318 = vmatpush.msra.mxu0 %v3191
        %4319 = vmatpush.msra.mxu0 %v3190
        %4320 = vmatpush.msra.mxu0 %v3189
        %4321 = vmatpush.msra.mxu0 %v3188
        %4322 = vmatpush.msra.mxu0 %v3187
        %4323 = vmatmul.f32.gmra.mxu0 %v2763
        %v4324 = vpop.f32.mrf.mxu0
        %v4325 = vadd.f32 %v4305, %v4324
        %4326 = vdwg.mxu0
        %4327 = vmatpush.msra.mxu0 %v3218
        %4328 = vmatpush.msra.mxu0 %v3217
        %4329 = vmatpush.msra.mxu0 %v3216
        %4330 = vmatpush.msra.mxu0 %v3215
        %4331 = vmatpush.msra.mxu0 %v3214
        %4332 = vmatpush.msra.mxu0 %v3213
        %4333 = vmatpush.msra.mxu0 %v3212
        %4334 = vmatpush.msra.mxu0 %v3211
        %4335 = vmatpush.msra.mxu0 %v3210
        %4336 = vmatpush.msra.mxu0 %v3209
        %4337 = vmatpush.msra.mxu0 %v3208
        %4338 = vmatpush.msra.mxu0 %v3207
        %4339 = vmatpush.msra.mxu0 %v3206
        %4340 = vmatpush.msra.mxu0 %v3205
        %4341 = vmatpush.msra.mxu0 %v3204
        %4342 = vmatpush.msra.mxu0 %v3203
        %4343 = vmatmul.f32.gmra.mxu0 %v2764
        %v4344 = vpop.f32.mrf.mxu0
        %v4345 = vadd.f32 %v4325, %v4344
        %4346 = vdwg.mxu0
        %4347 = vmatpush.msra.mxu0 %v3234
        %4348 = vmatpush.msra.mxu0 %v3233
        %4349 = vmatpush.msra.mxu0 %v3232
        %4350 = vmatpush.msra.mxu0 %v3231
        %4351 = vmatpush.msra.mxu0 %v3230
        %4352 = vmatpush.msra.mxu0 %v3229
        %4353 = vmatpush.msra.mxu0 %v3228
        %4354 = vmatpush.msra.mxu0 %v3227
        %4355 = vmatpush.msra.mxu0 %v3226
        %4356 = vmatpush.msra.mxu0 %v3225
        %4357 = vmatpush.msra.mxu0 %v3224
        %4358 = vmatpush.msra.mxu0 %v3223
        %4359 = vmatpush.msra.mxu0 %v3222
        %4360 = vmatpush.msra.mxu0 %v3221
        %4361 = vmatpush.msra.mxu0 %v3220
        %4362 = vmatpush.msra.mxu0 %v3219
        %4363 = vmatmul.f32.gmra.mxu0 %v2765
        %v4364 = vpop.f32.mrf.mxu0
        %v4365 = vadd.f32 %v4345, %v4364
        %4366 = vdwg.mxu0
        %4367 = vmatpush.msra.mxu0 %v3250
        %4368 = vmatpush.msra.mxu0 %v3249
        %4369 = vmatpush.msra.mxu0 %v3248
        %4370 = vmatpush.msra.mxu0 %v3247
        %4371 = vmatpush.msra.mxu0 %v3246
        %4372 = vmatpush.msra.mxu0 %v3245
        %4373 = vmatpush.msra.mxu0 %v3244
        %4374 = vmatpush.msra.mxu0 %v3243
        %4375 = vmatpush.msra.mxu0 %v3242
        %4376 = vmatpush.msra.mxu0 %v3241
        %4377 = vmatpush.msra.mxu0 %v3240
        %4378 = vmatpush.msra.mxu0 %v3239
        %4379 = vmatpush.msra.mxu0 %v3238
        %4380 = vmatpush.msra.mxu0 %v3237
        %4381 = vmatpush.msra.mxu0 %v3236
        %4382 = vmatpush.msra.mxu0 %v3235
        %4383 = vmatmul.f32.gmra.mxu0 %v2766
        %v4384 = vpop.f32.mrf.mxu0
        %v4385 = vadd.f32 %v4365, %v4384
        %4386 = vdwg.mxu0
        %4387 = vmatpush.msra.mxu0 %v3266
        %4388 = vmatpush.msra.mxu0 %v3265
        %4389 = vmatpush.msra.mxu0 %v3264
        %4390 = vmatpush.msra.mxu0 %v3263
        %4391 = vmatpush.msra.mxu0 %v3262
        %4392 = vmatpush.msra.mxu0 %v3261
        %4393 = vmatpush.msra.mxu0 %v3260
        %4394 = vmatpush.msra.mxu0 %v3259
        %4395 = vmatpush.msra.mxu0 %v3258
        %4396 = vmatpush.msra.mxu0 %v3257
        %4397 = vmatpush.msra.mxu0 %v3256
        %4398 = vmatpush.msra.mxu0 %v3255
        %4399 = vmatpush.msra.mxu0 %v3254
        %4400 = vmatpush.msra.mxu0 %v3253
        %4401 = vmatpush.msra.mxu0 %v3252
        %4402 = vmatpush.msra.mxu0 %v3251
        %4403 = vmatmul.f32.gmra.mxu0 %v2767
        %v4404 = vpop.f32.mrf.mxu0
        %v4405 = vadd.f32 %v4385, %v4404
        %4406 = vdwg.mxu0
        %4407 = vmatpush.msra.mxu0 %v3282
        %4408 = vmatpush.msra.mxu0 %v3281
        %4409 = vmatpush.msra.mxu0 %v3280
        %4410 = vmatpush.msra.mxu0 %v3279
        %4411 = vmatpush.msra.mxu0 %v3278
        %4412 = vmatpush.msra.mxu0 %v3277
        %4413 = vmatpush.msra.mxu0 %v3276
        %4414 = vmatpush.msra.mxu0 %v3275
        %4415 = vmatpush.msra.mxu0 %v3274
        %4416 = vmatpush.msra.mxu0 %v3273
        %4417 = vmatpush.msra.mxu0 %v3272
        %4418 = vmatpush.msra.mxu0 %v3271
        %4419 = vmatpush.msra.mxu0 %v3270
        %4420 = vmatpush.msra.mxu0 %v3269
        %4421 = vmatpush.msra.mxu0 %v3268
        %4422 = vmatpush.msra.mxu0 %v3267
        %4423 = vmatmul.f32.gmra.mxu0 %v2768
        %v4424 = vpop.f32.mrf.mxu0
        %v4425 = vadd.f32 %v4405, %v4424
        %4426 = vdwg.mxu0
        %4427 = vmatpush.msra.mxu0 %v3298
        %4428 = vmatpush.msra.mxu0 %v3297
        %4429 = vmatpush.msra.mxu0 %v3296
        %4430 = vmatpush.msra.mxu0 %v3295
        %4431 = vmatpush.msra.mxu0 %v3294
        %4432 = vmatpush.msra.mxu0 %v3293
        %4433 = vmatpush.msra.mxu0 %v3292
        %4434 = vmatpush.msra.mxu0 %v3291
        %4435 = vmatpush.msra.mxu0 %v3290
        %4436 = vmatpush.msra.mxu0 %v3289
        %4437 = vmatpush.msra.mxu0 %v3288
        %4438 = vmatpush.msra.mxu0 %v3287
        %4439 = vmatpush.msra.mxu0 %v3286
        %4440 = vmatpush.msra.mxu0 %v3285
        %4441 = vmatpush.msra.mxu0 %v3284
        %4442 = vmatpush.msra.mxu0 %v3283
        %4443 = vmatmul.f32.gmra.mxu0 %v2769
        %v4444 = vpop.f32.mrf.mxu0
        %v4445 = vadd.f32 %v4425, %v4444
        %4446 = vdwg.mxu0
        %4447 = vmatpush.msra.mxu0 %v3314
        %4448 = vmatpush.msra.mxu0 %v3313
        %4449 = vmatpush.msra.mxu0 %v3312
        %4450 = vmatpush.msra.mxu0 %v3311
        %4451 = vmatpush.msra.mxu0 %v3310
        %4452 = vmatpush.msra.mxu0 %v3309
        %4453 = vmatpush.msra.mxu0 %v3308
        %4454 = vmatpush.msra.mxu0 %v3307
        %4455 = vmatpush.msra.mxu0 %v3306
        %4456 = vmatpush.msra.mxu0 %v3305
        %4457 = vmatpush.msra.mxu0 %v3304
        %4458 = vmatpush.msra.mxu0 %v3303
        %4459 = vmatpush.msra.mxu0 %v3302
        %4460 = vmatpush.msra.mxu0 %v3301
        %4461 = vmatpush.msra.mxu0 %v3300
        %4462 = vmatpush.msra.mxu0 %v3299
        %4463 = vmatmul.f32.gmra.mxu0 %v2770
        %v4464 = vpop.f32.mrf.mxu0
        %v4465 = vadd.f32 %v4445, %v4464
        %4466 = vdwg.mxu0
        %4467 = vmatpush.msra.mxu0 %v3330
        %4468 = vmatpush.msra.mxu0 %v3329
        %4469 = vmatpush.msra.mxu0 %v3328
        %4470 = vmatpush.msra.mxu0 %v3327
        %4471 = vmatpush.msra.mxu0 %v3326
        %4472 = vmatpush.msra.mxu0 %v3325
        %4473 = vmatpush.msra.mxu0 %v3324
        %4474 = vmatpush.msra.mxu0 %v3323
        %4475 = vmatpush.msra.mxu0 %v3322
        %4476 = vmatpush.msra.mxu0 %v3321
        %4477 = vmatpush.msra.mxu0 %v3320
        %4478 = vmatpush.msra.mxu0 %v3319
        %4479 = vmatpush.msra.mxu0 %v3318
        %4480 = vmatpush.msra.mxu0 %v3317
        %4481 = vmatpush.msra.mxu0 %v3316
        %4482 = vmatpush.msra.mxu0 %v3315
        %4483 = vmatmul.f32.gmra.mxu0 %v2771
        %v4484 = vpop.f32.mrf.mxu0
        %v4485 = vadd.f32 %v4465, %v4484
        %4486 = vdwg.mxu0
        %4487 = vmatpush.msra.mxu0 %v3346
        %4488 = vmatpush.msra.mxu0 %v3345
        %4489 = vmatpush.msra.mxu0 %v3344
        %4490 = vmatpush.msra.mxu0 %v3343
        %4491 = vmatpush.msra.mxu0 %v3342
        %4492 = vmatpush.msra.mxu0 %v3341
        %4493 = vmatpush.msra.mxu0 %v3340
        %4494 = vmatpush.msra.mxu0 %v3339
        %4495 = vmatpush.msra.mxu0 %v3338
        %4496 = vmatpush.msra.mxu0 %v3337
        %4497 = vmatpush.msra.mxu0 %v3336
        %4498 = vmatpush.msra.mxu0 %v3335
        %4499 = vmatpush.msra.mxu0 %v3334
        %4500 = vmatpush.msra.mxu0 %v3333
        %4501 = vmatpush.msra.mxu0 %v3332
        %4502 = vmatpush.msra.mxu0 %v3331
        %4503 = vmatmul.f32.gmra.mxu0 %v2772
        %v4504 = vpop.f32.mrf.mxu0
        %v4505 = vadd.f32 %v4485, %v4504
        %4506 = vdwg.mxu0
        %4507 = vmatpush.msra.mxu0 %v3362
        %4508 = vmatpush.msra.mxu0 %v3361
        %4509 = vmatpush.msra.mxu0 %v3360
        %4510 = vmatpush.msra.mxu0 %v3359
        %4511 = vmatpush.msra.mxu0 %v3358
        %4512 = vmatpush.msra.mxu0 %v3357
        %4513 = vmatpush.msra.mxu0 %v3356
        %4514 = vmatpush.msra.mxu0 %v3355
        %4515 = vmatpush.msra.mxu0 %v3354
        %4516 = vmatpush.msra.mxu0 %v3353
        %4517 = vmatpush.msra.mxu0 %v3352
        %4518 = vmatpush.msra.mxu0 %v3351
        %4519 = vmatpush.msra.mxu0 %v3350
        %4520 = vmatpush.msra.mxu0 %v3349
        %4521 = vmatpush.msra.mxu0 %v3348
        %4522 = vmatpush.msra.mxu0 %v3347
        %4523 = vmatmul.f32.gmra.mxu0 %v2773
        %v4524 = vpop.f32.mrf.mxu0
        %v4525 = vadd.f32 %v4505, %v4524
        %4526 = vdwg.mxu0
        %4527 = vmatpush.msra.mxu0 %v3378
        %4528 = vmatpush.msra.mxu0 %v3377
        %4529 = vmatpush.msra.mxu0 %v3376
        %4530 = vmatpush.msra.mxu0 %v3375
        %4531 = vmatpush.msra.mxu0 %v3374
        %4532 = vmatpush.msra.mxu0 %v3373
        %4533 = vmatpush.msra.mxu0 %v3372
        %4534 = vmatpush.msra.mxu0 %v3371
        %4535 = vmatpush.msra.mxu0 %v3370
        %4536 = vmatpush.msra.mxu0 %v3369
        %4537 = vmatpush.msra.mxu0 %v3368
        %4538 = vmatpush.msra.mxu0 %v3367
        %4539 = vmatpush.msra.mxu0 %v3366
        %4540 = vmatpush.msra.mxu0 %v3365
        %4541 = vmatpush.msra.mxu0 %v3364
        %4542 = vmatpush.msra.mxu0 %v3363
        %4543 = vmatmul.f32.gmra.mxu0 %v2774
        %v4544 = vpop.f32.mrf.mxu0
        %v4545 = vadd.f32 %v4525, %v4544
        %4546 = vdwg.mxu0
        %4547 = vmatpush.msra.mxu0 %v3394
        %4548 = vmatpush.msra.mxu0 %v3393
        %4549 = vmatpush.msra.mxu0 %v3392
        %4550 = vmatpush.msra.mxu0 %v3391
        %4551 = vmatpush.msra.mxu0 %v3390
        %4552 = vmatpush.msra.mxu0 %v3389
        %4553 = vmatpush.msra.mxu0 %v3388
        %4554 = vmatpush.msra.mxu0 %v3387
        %4555 = vmatpush.msra.mxu0 %v3386
        %4556 = vmatpush.msra.mxu0 %v3385
        %4557 = vmatpush.msra.mxu0 %v3384
        %4558 = vmatpush.msra.mxu0 %v3383
        %4559 = vmatpush.msra.mxu0 %v3382
        %4560 = vmatpush.msra.mxu0 %v3381
        %4561 = vmatpush.msra.mxu0 %v3380
        %4562 = vmatpush.msra.mxu0 %v3379
        %4563 = vmatmul.f32.gmra.mxu0 %v2775
        %v4564 = vpop.f32.mrf.mxu0
        %v4565 = vadd.f32 %v4545, %v4564
        %4566 = vdwg.mxu0
        %4567 = vmatpush.msra.mxu0 %v3410
        %4568 = vmatpush.msra.mxu0 %v3409
        %4569 = vmatpush.msra.mxu0 %v3408
        %4570 = vmatpush.msra.mxu0 %v3407
        %4571 = vmatpush.msra.mxu0 %v3406
        %4572 = vmatpush.msra.mxu0 %v3405
        %4573 = vmatpush.msra.mxu0 %v3404
        %4574 = vmatpush.msra.mxu0 %v3403
        %4575 = vmatpush.msra.mxu0 %v3402
        %4576 = vmatpush.msra.mxu0 %v3401
        %4577 = vmatpush.msra.mxu0 %v3400
        %4578 = vmatpush.msra.mxu0 %v3399
        %4579 = vmatpush.msra.mxu0 %v3398
        %4580 = vmatpush.msra.mxu0 %v3397
        %4581 = vmatpush.msra.mxu0 %v3396
        %4582 = vmatpush.msra.mxu0 %v3395
        %4583 = vmatmul.f32.gmra.mxu0 %v2776
        %v4584 = vpop.f32.mrf.mxu0
        %v4585 = vadd.f32 %v4565, %v4584
        %4586 = vdwg.mxu0
        %4587 = vmatpush.msra.mxu0 %v3426
        %4588 = vmatpush.msra.mxu0 %v3425
        %4589 = vmatpush.msra.mxu0 %v3424
        %4590 = vmatpush.msra.mxu0 %v3423
        %4591 = vmatpush.msra.mxu0 %v3422
        %4592 = vmatpush.msra.mxu0 %v3421
        %4593 = vmatpush.msra.mxu0 %v3420
        %4594 = vmatpush.msra.mxu0 %v3419
        %4595 = vmatpush.msra.mxu0 %v3418
        %4596 = vmatpush.msra.mxu0 %v3417
        %4597 = vmatpush.msra.mxu0 %v3416
        %4598 = vmatpush.msra.mxu0 %v3415
        %4599 = vmatpush.msra.mxu0 %v3414
        %4600 = vmatpush.msra.mxu0 %v3413
        %4601 = vmatpush.msra.mxu0 %v3412
        %4602 = vmatpush.msra.mxu0 %v3411
        %4603 = vmatmul.f32.gmra.mxu0 %v2777
        %v4604 = vpop.f32.mrf.mxu0
        %v4605 = vadd.f32 %v4585, %v4604
        %4606 = vdwg.mxu0
        %4607 = vmatpush.msra.mxu0 %v3442
        %4608 = vmatpush.msra.mxu0 %v3441
        %4609 = vmatpush.msra.mxu0 %v3440
        %4610 = vmatpush.msra.mxu0 %v3439
        %4611 = vmatpush.msra.mxu0 %v3438
        %4612 = vmatpush.msra.mxu0 %v3437
        %4613 = vmatpush.msra.mxu0 %v3436
        %4614 = vmatpush.msra.mxu0 %v3435
        %4615 = vmatpush.msra.mxu0 %v3434
        %4616 = vmatpush.msra.mxu0 %v3433
        %4617 = vmatpush.msra.mxu0 %v3432
        %4618 = vmatpush.msra.mxu0 %v3431
        %4619 = vmatpush.msra.mxu0 %v3430
        %4620 = vmatpush.msra.mxu0 %v3429
        %4621 = vmatpush.msra.mxu0 %v3428
        %4622 = vmatpush.msra.mxu0 %v3427
        %4623 = vmatmul.f32.gmra.mxu0 %v2778
        %v4624 = vpop.f32.mrf.mxu0
        %v4625 = vadd.f32 %v4605, %v4624
        %4626 = vdwg.mxu0
        %4627 = vmatpush.msra.mxu0 %v3458
        %4628 = vmatpush.msra.mxu0 %v3457
        %4629 = vmatpush.msra.mxu0 %v3456
        %4630 = vmatpush.msra.mxu0 %v3455
        %4631 = vmatpush.msra.mxu0 %v3454
        %4632 = vmatpush.msra.mxu0 %v3453
        %4633 = vmatpush.msra.mxu0 %v3452
        %4634 = vmatpush.msra.mxu0 %v3451
        %4635 = vmatpush.msra.mxu0 %v3450
        %4636 = vmatpush.msra.mxu0 %v3449
        %4637 = vmatpush.msra.mxu0 %v3448
        %4638 = vmatpush.msra.mxu0 %v3447
        %4639 = vmatpush.msra.mxu0 %v3446
        %4640 = vmatpush.msra.mxu0 %v3445
        %4641 = vmatpush.msra.mxu0 %v3444
        %4642 = vmatpush.msra.mxu0 %v3443
        %4643 = vmatmul.f32.gmra.mxu0 %v2779
        %v4644 = vpop.f32.mrf.mxu0
        %v4645 = vadd.f32 %v4625, %v4644
        %4646 = vdwg.mxu0
        %4647 = vmatpush.msra.mxu0 %v3474
        %4648 = vmatpush.msra.mxu0 %v3473
        %4649 = vmatpush.msra.mxu0 %v3472
        %4650 = vmatpush.msra.mxu0 %v3471
        %4651 = vmatpush.msra.mxu0 %v3470
        %4652 = vmatpush.msra.mxu0 %v3469
        %4653 = vmatpush.msra.mxu0 %v3468
        %4654 = vmatpush.msra.mxu0 %v3467
        %4655 = vmatpush.msra.mxu0 %v3466
        %4656 = vmatpush.msra.mxu0 %v3465
        %4657 = vmatpush.msra.mxu0 %v3464
        %4658 = vmatpush.msra.mxu0 %v3463
        %4659 = vmatpush.msra.mxu0 %v3462
        %4660 = vmatpush.msra.mxu0 %v3461
        %4661 = vmatpush.msra.mxu0 %v3460
        %4662 = vmatpush.msra.mxu0 %v3459
        %4663 = vmatmul.f32.gmra.mxu0 %v2780
        %v4664 = vpop.f32.mrf.mxu0
        %v4665 = vadd.f32 %v4645, %v4664
        %4666 = vdwg.mxu0
        %4667 = vmatpush.msra.mxu0 %v3490
        %4668 = vmatpush.msra.mxu0 %v3489
        %4669 = vmatpush.msra.mxu0 %v3488
        %4670 = vmatpush.msra.mxu0 %v3487
        %4671 = vmatpush.msra.mxu0 %v3486
        %4672 = vmatpush.msra.mxu0 %v3485
        %4673 = vmatpush.msra.mxu0 %v3484
        %4674 = vmatpush.msra.mxu0 %v3483
        %4675 = vmatpush.msra.mxu0 %v3482
        %4676 = vmatpush.msra.mxu0 %v3481
        %4677 = vmatpush.msra.mxu0 %v3480
        %4678 = vmatpush.msra.mxu0 %v3479
        %4679 = vmatpush.msra.mxu0 %v3478
        %4680 = vmatpush.msra.mxu0 %v3477
        %4681 = vmatpush.msra.mxu0 %v3476
        %4682 = vmatpush.msra.mxu0 %v3475
        %4683 = vmatmul.f32.gmra.mxu0 %v2781
        %v4684 = vpop.f32.mrf.mxu0
        %v4685 = vadd.f32 %v4665, %v4684
        %4686 = vdwg.mxu0
        %4687 = vmatpush.msra.mxu0 %v3506
        %4688 = vmatpush.msra.mxu0 %v3505
        %4689 = vmatpush.msra.mxu0 %v3504
        %4690 = vmatpush.msra.mxu0 %v3503
        %4691 = vmatpush.msra.mxu0 %v3502
        %4692 = vmatpush.msra.mxu0 %v3501
        %4693 = vmatpush.msra.mxu0 %v3500
        %4694 = vmatpush.msra.mxu0 %v3499
        %4695 = vmatpush.msra.mxu0 %v3498
        %4696 = vmatpush.msra.mxu0 %v3497
        %4697 = vmatpush.msra.mxu0 %v3496
        %4698 = vmatpush.msra.mxu0 %v3495
        %4699 = vmatpush.msra.mxu0 %v3494
        %4700 = vmatpush.msra.mxu0 %v3493
        %4701 = vmatpush.msra.mxu0 %v3492
        %4702 = vmatpush.msra.mxu0 %v3491
        %4703 = vmatmul.f32.gmra.mxu0 %v2782
        %v4704 = vpop.f32.mrf.mxu0
        %v4705 = vadd.f32 %v4685, %v4704
        %4706 = vdwg.mxu0
        %4707 = vmatpush.msra.mxu0 %v3522
        %4708 = vmatpush.msra.mxu0 %v3521
        %4709 = vmatpush.msra.mxu0 %v3520
        %4710 = vmatpush.msra.mxu0 %v3519
        %4711 = vmatpush.msra.mxu0 %v3518
        %4712 = vmatpush.msra.mxu0 %v3517
        %4713 = vmatpush.msra.mxu0 %v3516
        %4714 = vmatpush.msra.mxu0 %v3515
        %4715 = vmatpush.msra.mxu0 %v3514
        %4716 = vmatpush.msra.mxu0 %v3513
        %4717 = vmatpush.msra.mxu0 %v3512
        %4718 = vmatpush.msra.mxu0 %v3511
        %4719 = vmatpush.msra.mxu0 %v3510
        %4720 = vmatpush.msra.mxu0 %v3509
        %4721 = vmatpush.msra.mxu0 %v3508
        %4722 = vmatpush.msra.mxu0 %v3507
        %4723 = vmatmul.f32.gmra.mxu0 %v2783
        %v4724 = vpop.f32.mrf.mxu0
        %v4725 = vadd.f32 %v4705, %v4724
        %4726 = vdwg.mxu0
        %4727 = vmatpush.msra.mxu0 %v3538
        %4728 = vmatpush.msra.mxu0 %v3537
        %4729 = vmatpush.msra.mxu0 %v3536
        %4730 = vmatpush.msra.mxu0 %v3535
        %4731 = vmatpush.msra.mxu0 %v3534
        %4732 = vmatpush.msra.mxu0 %v3533
        %4733 = vmatpush.msra.mxu0 %v3532
        %4734 = vmatpush.msra.mxu0 %v3531
        %4735 = vmatpush.msra.mxu0 %v3530
        %4736 = vmatpush.msra.mxu0 %v3529
        %4737 = vmatpush.msra.mxu0 %v3528
        %4738 = vmatpush.msra.mxu0 %v3527
        %4739 = vmatpush.msra.mxu0 %v3526
        %4740 = vmatpush.msra.mxu0 %v3525
        %4741 = vmatpush.msra.mxu0 %v3524
        %4742 = vmatpush.msra.mxu0 %v3523
        %4743 = vmatmul.f32.gmra.mxu0 %v2784
        %v4744 = vpop.f32.mrf.mxu0
        %v4745 = vadd.f32 %v4725, %v4744
        %4746 = vdwg.mxu0
        %4747 = vmatpush.msra.mxu0 %v3554
        %4748 = vmatpush.msra.mxu0 %v3553
        %4749 = vmatpush.msra.mxu0 %v3552
        %4750 = vmatpush.msra.mxu0 %v3551
        %4751 = vmatpush.msra.mxu0 %v3550
        %4752 = vmatpush.msra.mxu0 %v3549
        %4753 = vmatpush.msra.mxu0 %v3548
        %4754 = vmatpush.msra.mxu0 %v3547
        %4755 = vmatpush.msra.mxu0 %v3546
        %4756 = vmatpush.msra.mxu0 %v3545
        %4757 = vmatpush.msra.mxu0 %v3544
        %4758 = vmatpush.msra.mxu0 %v3543
        %4759 = vmatpush.msra.mxu0 %v3542
        %4760 = vmatpush.msra.mxu0 %v3541
        %4761 = vmatpush.msra.mxu0 %v3540
        %4762 = vmatpush.msra.mxu0 %v3539
        %4763 = vmatmul.f32.gmra.mxu0 %v2785
        %v4764 = vpop.f32.mrf.mxu0
        %v4765 = vadd.f32 %v4745, %v4764
        %4766 = vdwg.mxu0
        %4767 = vmatpush.msra.mxu0 %v3570
        %4768 = vmatpush.msra.mxu0 %v3569
        %4769 = vmatpush.msra.mxu0 %v3568
        %4770 = vmatpush.msra.mxu0 %v3567
        %4771 = vmatpush.msra.mxu0 %v3566
        %4772 = vmatpush.msra.mxu0 %v3565
        %4773 = vmatpush.msra.mxu0 %v3564
        %4774 = vmatpush.msra.mxu0 %v3563
        %4775 = vmatpush.msra.mxu0 %v3562
        %4776 = vmatpush.msra.mxu0 %v3561
        %4777 = vmatpush.msra.mxu0 %v3560
        %4778 = vmatpush.msra.mxu0 %v3559
        %4779 = vmatpush.msra.mxu0 %v3558
        %4780 = vmatpush.msra.mxu0 %v3557
        %4781 = vmatpush.msra.mxu0 %v3556
        %4782 = vmatpush.msra.mxu0 %v3555
        %4783 = vmatmul.f32.gmra.mxu0 %v2786
        %v4784 = vpop.f32.mrf.mxu0
        %v4785 = vadd.f32 %v4765, %v4784
        %4786 = vdwg.mxu0
        %4787 = vmatpush.msra.mxu0 %v3586
        %4788 = vmatpush.msra.mxu0 %v3585
        %4789 = vmatpush.msra.mxu0 %v3584
        %4790 = vmatpush.msra.mxu0 %v3583
        %4791 = vmatpush.msra.mxu0 %v3582
        %4792 = vmatpush.msra.mxu0 %v3581
        %4793 = vmatpush.msra.mxu0 %v3580
        %4794 = vmatpush.msra.mxu0 %v3579
        %4795 = vmatpush.msra.mxu0 %v3578
        %4796 = vmatpush.msra.mxu0 %v3577
        %4797 = vmatpush.msra.mxu0 %v3576
        %4798 = vmatpush.msra.mxu0 %v3575
        %4799 = vmatpush.msra.mxu0 %v3574
        %4800 = vmatpush.msra.mxu0 %v3573
        %4801 = vmatpush.msra.mxu0 %v3572
        %4802 = vmatpush.msra.mxu0 %v3571
        %4803 = vmatmul.f32.gmra.mxu0 %v2787
        %v4804 = vpop.f32.mrf.mxu0
        %v4805 = vadd.f32 %v4785, %v4804
        %4806 = vdwg.mxu0
        %4807 = vmatpush.msra.mxu0 %v3602
        %4808 = vmatpush.msra.mxu0 %v3601
        %4809 = vmatpush.msra.mxu0 %v3600
        %4810 = vmatpush.msra.mxu0 %v3599
        %4811 = vmatpush.msra.mxu0 %v3598
        %4812 = vmatpush.msra.mxu0 %v3597
        %4813 = vmatpush.msra.mxu0 %v3596
        %4814 = vmatpush.msra.mxu0 %v3595
        %4815 = vmatpush.msra.mxu0 %v3594
        %4816 = vmatpush.msra.mxu0 %v3593
        %4817 = vmatpush.msra.mxu0 %v3592
        %4818 = vmatpush.msra.mxu0 %v3591
        %4819 = vmatpush.msra.mxu0 %v3590
        %4820 = vmatpush.msra.mxu0 %v3589
        %4821 = vmatpush.msra.mxu0 %v3588
        %4822 = vmatpush.msra.mxu0 %v3587
        %4823 = vmatmul.f32.gmra.mxu0 %v2788
        %v4824 = vpop.f32.mrf.mxu0
        %v4825 = vadd.f32 %v4805, %v4824
        %4826 = vdwg.mxu0
        %4827 = vmatpush.msra.mxu0 %v3618
        %4828 = vmatpush.msra.mxu0 %v3617
        %4829 = vmatpush.msra.mxu0 %v3616
        %4830 = vmatpush.msra.mxu0 %v3615
        %4831 = vmatpush.msra.mxu0 %v3614
        %4832 = vmatpush.msra.mxu0 %v3613
        %4833 = vmatpush.msra.mxu0 %v3612
        %4834 = vmatpush.msra.mxu0 %v3611
        %4835 = vmatpush.msra.mxu0 %v3610
        %4836 = vmatpush.msra.mxu0 %v3609
        %4837 = vmatpush.msra.mxu0 %v3608
        %4838 = vmatpush.msra.mxu0 %v3607
        %4839 = vmatpush.msra.mxu0 %v3606
        %4840 = vmatpush.msra.mxu0 %v3605
        %4841 = vmatpush.msra.mxu0 %v3604
        %4842 = vmatpush.msra.mxu0 %v3603
        %4843 = vmatmul.f32.gmra.mxu0 %v2789
        %v4844 = vpop.f32.mrf.mxu0
        %v4845 = vadd.f32 %v4825, %v4844
        %4846 = vdwg.mxu0
        %4847 = vmatpush.msra.mxu0 %v3634
        %4848 = vmatpush.msra.mxu0 %v3633
        %4849 = vmatpush.msra.mxu0 %v3632
        %4850 = vmatpush.msra.mxu0 %v3631
        %4851 = vmatpush.msra.mxu0 %v3630
        %4852 = vmatpush.msra.mxu0 %v3629
        %4853 = vmatpush.msra.mxu0 %v3628
        %4854 = vmatpush.msra.mxu0 %v3627
        %4855 = vmatpush.msra.mxu0 %v3626
        %4856 = vmatpush.msra.mxu0 %v3625
        %4857 = vmatpush.msra.mxu0 %v3624
        %4858 = vmatpush.msra.mxu0 %v3623
        %4859 = vmatpush.msra.mxu0 %v3622
        %4860 = vmatpush.msra.mxu0 %v3621
        %4861 = vmatpush.msra.mxu0 %v3620
        %4862 = vmatpush.msra.mxu0 %v3619
        %4863 = vmatmul.f32.gmra.mxu0 %v2790
        %v4864 = vpop.f32.mrf.mxu0
        %v4865 = vadd.f32 %v4845, %v4864
        %4866 = vdwg.mxu0
        %4867 = vmatpush.msra.mxu0 %v3650
        %4868 = vmatpush.msra.mxu0 %v3649
        %4869 = vmatpush.msra.mxu0 %v3648
        %4870 = vmatpush.msra.mxu0 %v3647
        %4871 = vmatpush.msra.mxu0 %v3646
        %4872 = vmatpush.msra.mxu0 %v3645
        %4873 = vmatpush.msra.mxu0 %v3644
        %4874 = vmatpush.msra.mxu0 %v3643
        %4875 = vmatpush.msra.mxu0 %v3642
        %4876 = vmatpush.msra.mxu0 %v3641
        %4877 = vmatpush.msra.mxu0 %v3640
        %4878 = vmatpush.msra.mxu0 %v3639
        %4879 = vmatpush.msra.mxu0 %v3638
        %4880 = vmatpush.msra.mxu0 %v3637
        %4881 = vmatpush.msra.mxu0 %v3636
        %4882 = vmatpush.msra.mxu0 %v3635
        %4883 = vmatmul.f32.gmra.mxu0 %v2791
        %v4884 = vpop.f32.mrf.mxu0
        %v4885 = vadd.f32 %v4865, %v4884
        %4886 = vdwg.mxu0
        %4887 = vmatpush.msra.mxu0 %v3666
        %4888 = vmatpush.msra.mxu0 %v3665
        %4889 = vmatpush.msra.mxu0 %v3664
        %4890 = vmatpush.msra.mxu0 %v3663
        %4891 = vmatpush.msra.mxu0 %v3662
        %4892 = vmatpush.msra.mxu0 %v3661
        %4893 = vmatpush.msra.mxu0 %v3660
        %4894 = vmatpush.msra.mxu0 %v3659
        %4895 = vmatpush.msra.mxu0 %v3658
        %4896 = vmatpush.msra.mxu0 %v3657
        %4897 = vmatpush.msra.mxu0 %v3656
        %4898 = vmatpush.msra.mxu0 %v3655
        %4899 = vmatpush.msra.mxu0 %v3654
        %4900 = vmatpush.msra.mxu0 %v3653
        %4901 = vmatpush.msra.mxu0 %v3652
        %4902 = vmatpush.msra.mxu0 %v3651
        %4903 = vmatmul.f32.gmra.mxu0 %v2792
        %v4904 = vpop.f32.mrf.mxu0
        %v4905 = vadd.f32 %v4885, %v4904
        %4906 = vdwg.mxu0
        %4907 = vmatpush.msra.mxu0 %v3682
        %4908 = vmatpush.msra.mxu0 %v3681
        %4909 = vmatpush.msra.mxu0 %v3680
        %4910 = vmatpush.msra.mxu0 %v3679
        %4911 = vmatpush.msra.mxu0 %v3678
        %4912 = vmatpush.msra.mxu0 %v3677
        %4913 = vmatpush.msra.mxu0 %v3676
        %4914 = vmatpush.msra.mxu0 %v3675
        %4915 = vmatpush.msra.mxu0 %v3674
        %4916 = vmatpush.msra.mxu0 %v3673
        %4917 = vmatpush.msra.mxu0 %v3672
        %4918 = vmatpush.msra.mxu0 %v3671
        %4919 = vmatpush.msra.mxu0 %v3670
        %4920 = vmatpush.msra.mxu0 %v3669
        %4921 = vmatpush.msra.mxu0 %v3668
        %4922 = vmatpush.msra.mxu0 %v3667
        %4923 = vmatmul.f32.gmra.mxu0 %v2793
        %v4924 = vpop.f32.mrf.mxu0
        %v4925 = vadd.f32 %v4905, %v4924
        %4926 = vdwg.mxu0
        %4927 = vmatpush.msra.mxu0 %v3698
        %4928 = vmatpush.msra.mxu0 %v3697
        %4929 = vmatpush.msra.mxu0 %v3696
        %4930 = vmatpush.msra.mxu0 %v3695
        %4931 = vmatpush.msra.mxu0 %v3694
        %4932 = vmatpush.msra.mxu0 %v3693
        %4933 = vmatpush.msra.mxu0 %v3692
        %4934 = vmatpush.msra.mxu0 %v3691
        %4935 = vmatpush.msra.mxu0 %v3690
        %4936 = vmatpush.msra.mxu0 %v3689
        %4937 = vmatpush.msra.mxu0 %v3688
        %4938 = vmatpush.msra.mxu0 %v3687
        %4939 = vmatpush.msra.mxu0 %v3686
        %4940 = vmatpush.msra.mxu0 %v3685
        %4941 = vmatpush.msra.mxu0 %v3684
        %4942 = vmatpush.msra.mxu0 %v3683
        %4943 = vmatmul.f32.gmra.mxu0 %v2794
        %v4944 = vpop.f32.mrf.mxu0
        %v4945 = vadd.f32 %v4925, %v4944
        %4946 = vdwg.mxu0
        %4947 = vmatpush.msra.mxu0 %v3714
        %4948 = vmatpush.msra.mxu0 %v3713
        %4949 = vmatpush.msra.mxu0 %v3712
        %4950 = vmatpush.msra.mxu0 %v3711
        %4951 = vmatpush.msra.mxu0 %v3710
        %4952 = vmatpush.msra.mxu0 %v3709
        %4953 = vmatpush.msra.mxu0 %v3708
        %4954 = vmatpush.msra.mxu0 %v3707
        %4955 = vmatpush.msra.mxu0 %v3706
        %4956 = vmatpush.msra.mxu0 %v3705
        %4957 = vmatpush.msra.mxu0 %v3704
        %4958 = vmatpush.msra.mxu0 %v3703
        %4959 = vmatpush.msra.mxu0 %v3702
        %4960 = vmatpush.msra.mxu0 %v3701
        %4961 = vmatpush.msra.mxu0 %v3700
        %4962 = vmatpush.msra.mxu0 %v3699
        %4963 = vmatmul.f32.gmra.mxu0 %v2795
        %v4964 = vpop.f32.mrf.mxu0
        %v4965 = vadd.f32 %v4945, %v4964
        %4966 = vdwg.mxu0
        %4967 = vmatpush.msra.mxu0 %v3730
        %4968 = vmatpush.msra.mxu0 %v3729
        %4969 = vmatpush.msra.mxu0 %v3728
        %4970 = vmatpush.msra.mxu0 %v3727
        %4971 = vmatpush.msra.mxu0 %v3726
        %4972 = vmatpush.msra.mxu0 %v3725
        %4973 = vmatpush.msra.mxu0 %v3724
        %4974 = vmatpush.msra.mxu0 %v3723
        %4975 = vmatpush.msra.mxu0 %v3722
        %4976 = vmatpush.msra.mxu0 %v3721
        %4977 = vmatpush.msra.mxu0 %v3720
        %4978 = vmatpush.msra.mxu0 %v3719
        %4979 = vmatpush.msra.mxu0 %v3718
        %4980 = vmatpush.msra.mxu0 %v3717
        %4981 = vmatpush.msra.mxu0 %v3716
        %4982 = vmatpush.msra.mxu0 %v3715
        %4983 = vmatmul.f32.gmra.mxu0 %v2796
        %v4984 = vpop.f32.mrf.mxu0
        %v4985 = vadd.f32 %v4965, %v4984
        %4986 = vdwg.mxu0
        %4987 = vmatpush.msra.mxu0 %v3746
        %4988 = vmatpush.msra.mxu0 %v3745
        %4989 = vmatpush.msra.mxu0 %v3744
        %4990 = vmatpush.msra.mxu0 %v3743
        %4991 = vmatpush.msra.mxu0 %v3742
        %4992 = vmatpush.msra.mxu0 %v3741
        %4993 = vmatpush.msra.mxu0 %v3740
        %4994 = vmatpush.msra.mxu0 %v3739
        %4995 = vmatpush.msra.mxu0 %v3738
        %4996 = vmatpush.msra.mxu0 %v3737
        %4997 = vmatpush.msra.mxu0 %v3736
        %4998 = vmatpush.msra.mxu0 %v3735
        %4999 = vmatpush.msra.mxu0 %v3734
        %5000 = vmatpush.msra.mxu0 %v3733
        %5001 = vmatpush.msra.mxu0 %v3732
        %5002 = vmatpush.msra.mxu0 %v3731
        %5003 = vmatmul.f32.gmra.mxu0 %v2797
        %v5004 = vpop.f32.mrf.mxu0
        %v5005 = vadd.f32 %v4985, %v5004
        %5006 = vdwg.mxu0
        %5007 = vmatpush.msra.mxu0 %v3762
        %5008 = vmatpush.msra.mxu0 %v3761
        %5009 = vmatpush.msra.mxu0 %v3760
        %5010 = vmatpush.msra.mxu0 %v3759
        %5011 = vmatpush.msra.mxu0 %v3758
        %5012 = vmatpush.msra.mxu0 %v3757
        %5013 = vmatpush.msra.mxu0 %v3756
        %5014 = vmatpush.msra.mxu0 %v3755
        %5015 = vmatpush.msra.mxu0 %v3754
        %5016 = vmatpush.msra.mxu0 %v3753
        %5017 = vmatpush.msra.mxu0 %v3752
        %5018 = vmatpush.msra.mxu0 %v3751
        %5019 = vmatpush.msra.mxu0 %v3750
        %5020 = vmatpush.msra.mxu0 %v3749
        %5021 = vmatpush.msra.mxu0 %v3748
        %5022 = vmatpush.msra.mxu0 %v3747
        %5023 = vmatmul.f32.gmra.mxu0 %v2798
        %v5024 = vpop.f32.mrf.mxu0
        %v5025 = vadd.f32 %v5005, %v5024
        %5026 = vdwg.mxu0
        %5027 = vmatpush.msra.mxu0 %v3778
        %5028 = vmatpush.msra.mxu0 %v3777
        %5029 = vmatpush.msra.mxu0 %v3776
        %5030 = vmatpush.msra.mxu0 %v3775
        %5031 = vmatpush.msra.mxu0 %v3774
        %5032 = vmatpush.msra.mxu0 %v3773
        %5033 = vmatpush.msra.mxu0 %v3772
        %5034 = vmatpush.msra.mxu0 %v3771
        %5035 = vmatpush.msra.mxu0 %v3770
        %5036 = vmatpush.msra.mxu0 %v3769
        %5037 = vmatpush.msra.mxu0 %v3768
        %5038 = vmatpush.msra.mxu0 %v3767
        %5039 = vmatpush.msra.mxu0 %v3766
        %5040 = vmatpush.msra.mxu0 %v3765
        %5041 = vmatpush.msra.mxu0 %v3764
        %5042 = vmatpush.msra.mxu0 %v3763
        %5043 = vmatmul.f32.gmra.mxu0 %v2799
        %v5044 = vpop.f32.mrf.mxu0
        %v5045 = vadd.f32 %v5025, %v5044
        %5046 = vdwg.mxu0
        %5047 = vmatpush.msra.mxu0 %v3794
        %5048 = vmatpush.msra.mxu0 %v3793
        %5049 = vmatpush.msra.mxu0 %v3792
        %5050 = vmatpush.msra.mxu0 %v3791
        %5051 = vmatpush.msra.mxu0 %v3790
        %5052 = vmatpush.msra.mxu0 %v3789
        %5053 = vmatpush.msra.mxu0 %v3788
        %5054 = vmatpush.msra.mxu0 %v3787
        %5055 = vmatpush.msra.mxu0 %v3786
        %5056 = vmatpush.msra.mxu0 %v3785
        %5057 = vmatpush.msra.mxu0 %v3784
        %5058 = vmatpush.msra.mxu0 %v3783
        %5059 = vmatpush.msra.mxu0 %v3782
        %5060 = vmatpush.msra.mxu0 %v3781
        %5061 = vmatpush.msra.mxu0 %v3780
        %5062 = vmatpush.msra.mxu0 %v3779
        %5063 = vmatmul.f32.gmra.mxu0 %v2800
        %v5064 = vpop.f32.mrf.mxu0
        %v5065 = vadd.f32 %v5045, %v5064
        %5066 = vdwg.mxu0
        %5067 = vmatpush.msra.mxu0 %v3810
        %5068 = vmatpush.msra.mxu0 %v3809
        %5069 = vmatpush.msra.mxu0 %v3808
        %5070 = vmatpush.msra.mxu0 %v3807
        %5071 = vmatpush.msra.mxu0 %v3806
        %5072 = vmatpush.msra.mxu0 %v3805
        %5073 = vmatpush.msra.mxu0 %v3804
        %5074 = vmatpush.msra.mxu0 %v3803
        %5075 = vmatpush.msra.mxu0 %v3802
        %5076 = vmatpush.msra.mxu0 %v3801
        %5077 = vmatpush.msra.mxu0 %v3800
        %5078 = vmatpush.msra.mxu0 %v3799
        %5079 = vmatpush.msra.mxu0 %v3798
        %5080 = vmatpush.msra.mxu0 %v3797
        %5081 = vmatpush.msra.mxu0 %v3796
        %5082 = vmatpush.msra.mxu0 %v3795
        %5083 = vmatmul.f32.gmra.mxu0 %v2801
        %v5084 = vpop.f32.mrf.mxu0
        %v5085 = vadd.f32 %v5065, %v5084
        %5086 = vdwg.mxu0
        %5087 = vmatpush.msra.mxu0 %v3826
        %5088 = vmatpush.msra.mxu0 %v3825
        %5089 = vmatpush.msra.mxu0 %v3824
        %5090 = vmatpush.msra.mxu0 %v3823
        %5091 = vmatpush.msra.mxu0 %v3822
        %5092 = vmatpush.msra.mxu0 %v3821
        %5093 = vmatpush.msra.mxu0 %v3820
        %5094 = vmatpush.msra.mxu0 %v3819
        %5095 = vmatpush.msra.mxu0 %v3818
        %5096 = vmatpush.msra.mxu0 %v3817
        %5097 = vmatpush.msra.mxu0 %v3816
        %5098 = vmatpush.msra.mxu0 %v3815
        %5099 = vmatpush.msra.mxu0 %v3814
        %5100 = vmatpush.msra.mxu0 %v3813
        %5101 = vmatpush.msra.mxu0 %v3812
        %5102 = vmatpush.msra.mxu0 %v3811
        %5103 = vmatmul.f32.gmra.mxu0 %v2802
        %v5104 = vpop.f32.mrf.mxu0
        %v5105 = vadd.f32 %v5085, %v5104
        %5106 = vdwg.mxu0
        %v5107 = vadd.f32 %v2738, %v5105
        %5108 = vst [vmem:[#allocation3] sm:$0xff] %v5107
        // Predicated region
        $region65: #{tpu_custom_call.1} parent=39 // pred_check
          %p5109 = pneg %p361
        $region66: #{tpu_custom_call.1} parent=39 // pred_check_branch
          %5111 = sbr.rel (%p5109) target = $region68
        $region67: #{tpu_custom_call.1} parent=39 // pred_region
          %v5112 = vld [vmem:[#allocation2] sm:$0xff]
          %v5113 = vld [vmem:[#allocation3] sm:$0xff]
          %v5114 = vmul.f32 %v5112, %v5112
          %5115 = vadd.xlane.f32.xlu0 %v5114
          %v5116 = vpop.xlane.xlu0 %5115
          %v5117 = vrsqrt.pop %v5116
          %v5118 = vmul.f32 %v5117, %v5116
          %v5119 = vmul.f32 %v5118, %v5117
          %v5120 = vmul.f32 0.5, %v5119
          %v5121 = vsub.f32 1.5, %v5120
          %v5122 = vmul.f32 %v5117, %v5121
          %v5123 = vmul.f32 %v5116, %v5122
          %vm5124 = vcmp.eq.f32.partialorder %v5116, inf
          %v5125 = vsel %vm5124, %v5116, %v5123
          %vm5126 = vcmp.eq.f32.partialorder %v5116, 0.0
          %v5127 = vand.u32 %v5116, 2147483648
          %v5128 = vsel %vm5126, %v5127, %v5125
          %v5129 = vadd.f32 %v5128, 1e-06
          %v5130 = vrcp.pop %v5129
          %v5131 = vmul.f32 %v5129, %v5130
          %v5132 = vsub.f32 1.0, %v5131
          %v5133 = vmul.f32 %v5130, %v5132
          %v5134 = vadd.f32 %v5130, %v5133
          %vm5135 = vweird.f32 %v5129
          %vm5136 = vweird.f32 %v5130
          %vm5137 = vmor %vm5135, %vm5136
          %v5138 = vsel %vm5137, %v5130, %v5134
          %v5139 = vand.u32 2147483647, %v5129
          %vm5140 = vcmp.eq.f32.partialorder %v5139, 8.507059e+37
          %v5141 = vand.u32 %v5129, 2147483648
          %v5142 = vor.u32 1.1754944e-38, %v5141
          %v5143 = vsel %vm5140, %v5142, %v5138
          %v5144 = vmul.f32 %v5112, %v5143
          %v5145 = vmul.f32 %v5113, %v5113
          %5146 = vadd.xlane.f32.xlu0 %v5145
          %v5147 = vpop.xlane.xlu0 %5146
          %v5148 = vrsqrt.pop %v5147
          %v5149 = vmul.f32 %v5148, %v5147
          %v5150 = vmul.f32 %v5149, %v5148
          %v5151 = vmul.f32 0.5, %v5150
          %v5152 = vsub.f32 1.5, %v5151
          %v5153 = vmul.f32 %v5148, %v5152
          %v5154 = vmul.f32 %v5147, %v5153
          %vm5155 = vcmp.eq.f32.partialorder %v5147, inf
          %v5156 = vsel %vm5155, %v5147, %v5154
          %vm5157 = vcmp.eq.f32.partialorder %v5147, 0.0
          %v5158 = vand.u32 %v5147, 2147483648
          %v5159 = vsel %vm5157, %v5158, %v5156
          %v5160 = vadd.f32 %v5159, 1e-06
          %v5161 = vrcp.pop %v5160
          %v5162 = vmul.f32 %v5160, %v5161
          %v5163 = vsub.f32 1.0, %v5162
          %v5164 = vmul.f32 %v5161, %v5163
          %v5165 = vadd.f32 %v5161, %v5164
          %vm5166 = vweird.f32 %v5160
          %vm5167 = vweird.f32 %v5161
          %vm5168 = vmor %vm5166, %vm5167
          %v5169 = vsel %vm5168, %v5161, %v5165
          %v5170 = vand.u32 2147483647, %v5160
          %vm5171 = vcmp.eq.f32.partialorder %v5170, 8.507059e+37
          %v5172 = vand.u32 %v5160, 2147483648
          %v5173 = vor.u32 1.1754944e-38, %v5172
          %v5174 = vsel %vm5171, %v5173, %v5169
          %v5175 = vmul.f32 %v5113, %v5174
          %v5176 = vadd.f32 %v5144, %v5175
          %v5177 = vmul.f32 %v5176, 0.5
          %v5178 = vld [vmem:[#allocation10] sm:$0xff]
          %v5179 = vld [vmem:[#allocation10 + $0x8] sm:$0xff]
          %v5180 = vld [vmem:[#allocation10 + $0x10] sm:$0xff]
          %v5181 = vld [vmem:[#allocation10 + $0x18] sm:$0xff]
          %v5182 = vld [vmem:[#allocation10 + $0x20] sm:$0xff]
          %v5183 = vld [vmem:[#allocation10 + $0x28] sm:$0xff]
          %v5184 = vld [vmem:[#allocation10 + $0x30] sm:$0xff]
          %v5185 = vld [vmem:[#allocation10 + $0x38] sm:$0xff]
          %v5186 = vld [vmem:[#allocation10 + $0x40] sm:$0xff]
          %v5187 = vld [vmem:[#allocation10 + $0x48] sm:$0xff]
          %v5188 = vld [vmem:[#allocation10 + $0x50] sm:$0xff]
          %v5189 = vld [vmem:[#allocation10 + $0x58] sm:$0xff]
          %v5190 = vld [vmem:[#allocation10 + $0x60] sm:$0xff]
          %v5191 = vld [vmem:[#allocation10 + $0x68] sm:$0xff]
          %v5192 = vld [vmem:[#allocation10 + $0x70] sm:$0xff]
          %v5193 = vld [vmem:[#allocation10 + $0x78] sm:$0xff]
          %v5194 = vld [vmem:[#allocation12] sm:$0x1]
          %v5196 = vperm.slane %v5194, 0
          %5198 = vmatpush.msra.mxu0 %v5193
          %5199 = vmatpush.msra.mxu0 %v5192
          %5200 = vmatpush.msra.mxu0 %v5191
          %5201 = vmatpush.msra.mxu0 %v5190
          %5202 = vmatpush.msra.mxu0 %v5189
          %5203 = vmatpush.msra.mxu0 %v5188
          %5204 = vmatpush.msra.mxu0 %v5187
          %5205 = vmatpush.msra.mxu0 %v5186
          %5206 = vmatpush.msra.mxu0 %v5185
          %5207 = vmatpush.msra.mxu0 %v5184
          %5208 = vmatpush.msra.mxu0 %v5183
          %5209 = vmatpush.msra.mxu0 %v5182
          %5210 = vmatpush.msra.mxu0 %v5181
          %5211 = vmatpush.msra.mxu0 %v5180
          %5212 = vmatpush.msra.mxu0 %v5179
          %5213 = vmatpush.msra.mxu0 %v5178
          %5214 = vmatmul.f32.gmra.mxu0 %v5177
          %v5215 = vpop.f32.mrf.mxu0
          %v5216 = vadd.f32 %v5196, %v5215
          %5217 = vdwg.mxu0
          %5218 = vst [vmem:[%s357] sm:$0xff] %v5216
        $region68: #{tpu_custom_call.1} parent=39 // pred_fallthru
          _
        %s5219 = sand.u32 %s170, 1
        %s5220 = scalar_lea.sflag [#allocation6], %s5219
        %s5221 = sand.u32 %s170, 1
        %s5222 = smul.addr %s5221, 8
        %s5223 = scalar_lea.vmem [#allocation13], %s5222
        // Predicated region
        $region69: #{tpu_custom_call.1} parent=39 // pred_check
          %p5224 = pneg %p180
        $region70: #{tpu_custom_call.1} parent=39 // pred_check_branch
          %5226 = sbr.rel (%p5224) target = $region72
        $region71: #{tpu_custom_call.1} parent=39 // pred_region
          %5228 = vsyncadd %s5220, 0
          %s5229 = smul.addr %s30, 8
          %s5230 = scalar_lea.hbm %s5, %s5229
          %s5232 = sshll.u32 %s5223, 4
          %s5233 = int_to_ptr.vmem [resolvable:$true] %s5232
          %s5234 = sshll.u32 %s5230, 4
          %s5235 = int_to_ptr.hbm [resolvable:$true] %s5234
          %5237 = dma.vmem_to_hbm [thread:$0]  %s5233, 128, %s5235, %s5220
        $region72: #{tpu_custom_call.1} parent=39 // pred_fallthru
          _
      $region40: #{tpu_custom_call.1} parent=5 // pred_fallthru
        _
      %p5238 = scmp.le.s32.totalorder 2, %s21
      // Predicated region
      $region73: #{tpu_custom_call.1} parent=5 // pred_check
        %p5239 = pneg %p5238
      $region74: #{tpu_custom_call.1} parent=5 // pred_check_branch
        %5241 = sbr.rel (%p5239) target = $region76
      $region75: #{tpu_custom_call.1} parent=5 // pred_region
        %s5242 = ssub.s32 %s21, 2
        // Predicated region
        $region77: #{tpu_custom_call.1} parent=75 // pred_check
          %p5243 = pneg %p186
        $region78: #{tpu_custom_call.1} parent=75 // pred_check_branch
          %5245 = sbr.rel (%p5243) target = $region80
        $region79: #{tpu_custom_call.1} parent=75 // pred_region
          %s5246 = sand.u32 %s171, 1
          %s5247 = scalar_lea.sflag [#allocation6], %s5246
          %s5248 = sand.u32 %s171, 1
          %s5249 = smul.addr %s5248, 8
          %s5250 = scalar_lea.vmem [#allocation13], %s5249
          %5252 = dma.done %s5247, 128
        $region80: #{tpu_custom_call.1} parent=75 // pred_fallthru
          _
      $region76: #{tpu_custom_call.1} parent=5 // pred_fallthru
        _
    $region6: #{tpu_custom_call.1} parent=1 // loop_footer
      %s25 = sadd.s32 1, %s21
    $region7: #{tpu_custom_call.1} parent=1 // loop_footer_branch
      %20 = sbr.rel target = $region3
    $region8: #{tpu_custom_call.1} parent=1 // loop_exit
      _
    %5253 = vsyncpa [#allocation5], 1
    %s5254 = scalar_lea.sflag [#allocation5], 1
    %5255 = vsyncpa %s5254, 1
    %5256 = vsyncpa [#allocation8], 1
    %s5257 = scalar_lea.sflag [#allocation8], 1
    %5258 = vsyncpa %s5257, 1
    %5259 = vsyncpa [#allocation11], 1
    %5260 = vsyncpa [#allocation6], 1
    %s5261 = scalar_lea.sflag [#allocation6], 1
    %5262 = vsyncpa %s5261, 1

</llo_original>
